<compile_context>
chip_gen: v6e
topology: v6e:2x2x1
jax: 0.10.0
libtpu: 0.0.40
codegen_flags: <defaults>
</compile_context>

<pallas_src>
import functools

import jax
import jax.numpy as jnp
from jax import lax
from jax.experimental import pallas as pl
from jax.experimental.pallas import tpu as pltpu


# ---------------------------------------------------------------------------
# helpers / constants
# ---------------------------------------------------------------------------
_NC_PAD = 128    # lane-padded class dimension (lane-dense output stores)
_PRE_ROWS = 16   # sublane-padded channel rows for the packed w_pre slot
                 # (16 keeps every blob row-offset a multiple of the bf16 tile)


def _vmem():
    return pl.BlockSpec(memory_space=pltpu.MemorySpace.VMEM)


# ---------------------------------------------------------------------------
# fused kernel: feature projection + CPGB (conv x2 + FC) + OAMB (LSTM + FC)
# ---------------------------------------------------------------------------
def _wogma_kernel(x_ref, w128_ref, w512_ref, bias_ref, out_ref, *, L, F, H):
    f32 = jnp.float32
    bf16 = jnp.bfloat16
    NCP = _NC_PAD
    PRE = _PRE_ROWS

    # ---- static row offsets inside the packed lane-128 bf16 weight blob ----
    o_pre = 0
    o_w1 = o_pre + PRE          # 16
    o_w2 = o_w1 + 3 * F         # 16 + 96
    o_fcc = o_w2 + 3 * H        # ... + 384
    o_fco = o_fcc + H           # ... + 128

    w_pre = w128_ref[o_pre:o_pre + PRE, 0:F]          # (PRE, F)  bf16
    w1 = w128_ref[o_w1:o_w1 + 3 * F, 0:H]             # (3F, H)
    w2 = w128_ref[o_w2:o_w2 + 3 * H, 0:H]             # (3H, H)
    wfc_c = w128_ref[o_fcc:o_fcc + H, :]               # (H, 128)
    wfc_o = w128_ref[o_fco:o_fco + H, :]               # (H, 128)

    w_ih = w512_ref[0:F, :]                             # (F, 4H)  bf16
    w_hh = w512_ref[F:F + H, :]                         # (H, 4H)

    b_pre = bias_ref[0:1, 0:F]                          # f32 rows of bias blob
    b1 = bias_ref[1:2, 0:H]
    b2 = bias_ref[2:3, 0:H]
    bfc_c = bias_ref[3:4, 0:NCP]
    b_lstm = bias_ref[4:5, :]                           # (1, 4H) = b_ih + b_hh
    bfc_o = bias_ref[5:6, 0:NCP]

    # ---- 1) local feature extraction (T,V mean-pool done on host) ----------
    feats = jnp.dot(x_ref[...], w_pre, preferred_element_type=f32) + b_pre  # (L,F)

    # ---- 2) CPGB: Conv1d(k=3, pad=1) + ReLU (x2), then FC -------------------
    row = lax.broadcasted_iota(jnp.int32, (L, 1), 0)
    not_first = (row != 0).astype(f32)       # zeros row 0 of the "prev" shift
    not_last = (row != L - 1).astype(f32)    # zeros row L-1 of the "next" shift

    def conv1d_k3_relu(x, w_cat, b):
        # x: (L, Cin) f32 ; w_cat: (3*Cin, Cout) bf16, taps [prev, mid, next]
        x_prev = pltpu.roll(x, 1, 0) * not_first       # x[t-1], zero-padded
        x_next = pltpu.roll(x, L - 1, 0) * not_last    # x[t+1], zero-padded
        x_cat = jnp.concatenate(
            [x_prev.astype(bf16), x.astype(bf16), x_next.astype(bf16)], axis=-1)
        y = jnp.dot(x_cat, w_cat, preferred_element_type=f32) + b
        return jnp.maximum(y, 0.0)

    h1 = conv1d_k3_relu(feats, w1, b1)                  # (L, H)
    h2 = conv1d_k3_relu(h1, w2, b2)                     # (L, H)
    out_ref[:, 0:NCP] = (
        jnp.dot(h2.astype(bf16), wfc_c, preferred_element_type=f32) + bfc_c)

    # ---- 3) OAMB: LSTM (hoisted input projection) + FC ----------------------
    x_proj = (jnp.dot(feats.astype(bf16), w_ih, preferred_element_type=f32)
              + b_lstm)                                 # (L, 4H) f32

    h = jnp.zeros((1, H), f32)
    c = jnp.zeros((1, H), f32)
    hs = []
    for t in range(L):  # fully unrolled; static sublane indices everywhere
        gates = x_proj[t:t + 1, :] + jnp.dot(
            h.astype(bf16), w_hh, preferred_element_type=f32)       # (1, 4H)
        # gate columns were pre-permuted on the host to [i, f, o | g]:
        sig = jax.nn.sigmoid(gates[:, 0:3 * H])   # one EUP push covers i, f, o
        g_g = jnp.tanh(gates[:, 3 * H:4 * H])     # one EUP push for g
        i_g = sig[:, 0:H]
        f_g = sig[:, H:2 * H]
        o_g = sig[:, 2 * H:3 * H]
        c = f_g * c + i_g * g_g
        h = o_g * jnp.tanh(c)
        hs.append(h)
    y = jnp.concatenate(hs, axis=0)                     # (L, H) register-resident
    out_ref[:, NCP:2 * NCP] = (
        jnp.dot(y.astype(bf16), wfc_o, preferred_element_type=f32) + bfc_o)


# ---------------------------------------------------------------------------
# wrapper: host-side weight packing + single pallas_call
# ---------------------------------------------------------------------------
def wogma_fused(bag, params, *, num_classes=2):
    L, C_in, T, V = bag.shape
    F = params["w_pre"].shape[1]
    H = params["w_hh"].shape[0]
    NCP = _NC_PAD
    PRE = _PRE_ROWS
    assert C_in <= PRE and H <= NCP and num_classes <= NCP
    bf16 = jnp.bfloat16

    # mean-pool over (T, V) in the wrapper (tiny fused XLA reduce); pad the
    # channel dim to PRE so it matches the packed w_pre slot.
    x = bag.mean(axis=(2, 3))                                   # (L, C_in) f32
    x = jnp.pad(x, ((0, 0), (0, PRE - C_in))).astype(bf16)      # (L, PRE) bf16

    # ---- pack every lane-128 weight into one bf16 blob ----------------------
    def pad_lanes(w, width):
        return jnp.pad(w, ((0, 0), (0, width - w.shape[1])))

    w_pre_blk = jnp.zeros((PRE, NCP), jnp.float32).at[:C_in, :F].set(params["w_pre"])
    w1_cat = params["w1"].reshape(3 * F, H)    # taps [prev, mid, next] stacked on K
    w2_cat = params["w2"].reshape(3 * H, H)
    w128 = jnp.concatenate([
        w_pre_blk,                              # rows [0, PRE)
        pad_lanes(w1_cat, NCP),                 # rows [PRE, PRE+3F)
        pad_lanes(w2_cat, NCP),                 # rows [.., +3H)
        pad_lanes(params["wfc_c"], NCP),        # rows [.., +H)
        pad_lanes(params["wfc_o"], NCP),        # rows [.., +H)
    ], axis=0).astype(bf16)

    # ---- LSTM weights: reorder gate columns i,f,g,o -> i,f,o,g and pack ------
    def reorder_gates(a):
        i, f, g, o = jnp.split(a, 4, axis=-1)
        return jnp.concatenate([i, f, o, g], axis=-1)

    w512 = jnp.concatenate([
        reorder_gates(params["w_ih"]),          # (F, 4H)
        reorder_gates(params["w_hh"]),          # (H, 4H)
    ], axis=0).astype(bf16)

    # ---- pack all biases into one f32 blob (one row per bias) ---------------
    bias = jnp.zeros((8, 4 * H), jnp.float32)
    bias = bias.at[0, :F].set(params["b_pre"][0])
    bias = bias.at[1, :H].set(params["b1"][0])
    bias = bias.at[2, :H].set(params["b2"][0])
    bias = bias.at[3, :num_classes].set(params["bfc_c"][0])
    bias = bias.at[4, :].set(reorder_gates(params["b_lstm"])[0])
    bias = bias.at[5, :num_classes].set(params["bfc_o"][0])

    out = pl.pallas_call(
        functools.partial(_wogma_kernel, L=L, F=F, H=H),
        out_shape=jax.ShapeDtypeStruct((L, 2 * NCP), jnp.float32),
        in_specs=[_vmem()] * 4,
        out_specs=_vmem(),
    )(x, w128, w512, bias)

    return out[:, :num_classes], out[:, NCP:NCP + num_classes]


# ---------------------------------------------------------------------------
# top-k aggregation / losses / pseudo labels (tiny plain-JAX glue)
# ---------------------------------------------------------------------------
def _topk_mean(clip_logits, k):
    # per-class mean of the k largest clip logits (== torch.topk(...).values.mean())
    vals, _ = lax.top_k(clip_logits.T, k)   # (C, k)
    return jnp.mean(vals, axis=-1)          # (C,)


def _cross_entropy(scores, gt_label):
    # equivalent to nn.CrossEntropyLoss()(scores.unsqueeze(0), [gt_label])
    return jax.nn.logsumexp(scores) - scores[gt_label]


def _bce_with_logits(x, y):
    # equivalent to nn.BCEWithLogitsLoss()(x, y)
    return jnp.mean(jnp.maximum(x, 0.0) - x * y + jnp.log1p(jnp.exp(-jnp.abs(x))))


def wogma_forward(bag, params, gt_label, *, top_k_ratio=8,
                  theta_class=0.4, theta_score=0.3, num_classes=2):
    L = bag.shape[0]
    k = max(1, L // top_k_ratio)

    clip_cpgb, clip_oamb = wogma_fused(bag, params, num_classes=num_classes)

    vid_cpgb = _topk_mean(clip_cpgb, k)
    vid_oamb = _topk_mean(clip_oamb, k)

    gt = jnp.asarray(gt_label, jnp.int32)
    loss_pMIL = _cross_entropy(vid_cpgb, gt)

    # pseudo labels, binary path (num_classes == 2): jit-safe replacement of the
    # Python `if gt_label == 1 and sigmoid(video_scores[1]) >= theta_class` gate.
    # TODO(synk): multi-class (>2) pseudo-label / ignore_index path not implemented.
    pos_prob = jax.nn.sigmoid(vid_cpgb[1])
    clip_probs = jax.nn.sigmoid(clip_cpgb[:, 1])
    pseudo_pos = jnp.where(
        (gt == 1) & (pos_prob >= theta_class),
        (clip_probs >= theta_score).astype(jnp.float32),
        jnp.zeros_like(clip_probs),
    )
    pseudo = jnp.zeros_like(clip_cpgb).at[:, 1].set(pseudo_pos)

    loss_FML = _bce_with_logits(clip_oamb.reshape(-1), pseudo.reshape(-1))
    loss_oMIL = _cross_entropy(vid_oamb, gt)
    loss_total = loss_pMIL + loss_FML + loss_oMIL

    return {
        "loss_total": loss_total,
        "loss_pMIL": loss_pMIL,
        "loss_FML": loss_FML,
        "loss_oMIL": loss_oMIL,
        "clip_logits_cpgb": clip_cpgb,
        "clip_logits_oamb": clip_oamb,
        "video_scores_cpgb": vid_cpgb,
        "video_scores_oamb": vid_oamb,
    }


# ---------------------------------------------------------------------------
# main
# ---------------------------------------------------------------------------
if __name__ == "__main__":
    # small shapes consistent with the module defaults
    L, C_in, T, V = 16, 4, 16, 16          # bag of L clips
    F, H, NC = 32, 128, 2                  # feature_dim, hidden_dim, num_classes
    gt_label = 1

    key = jax.random.PRNGKey(0)
    keys = jax.random.split(key, 14)
    s = 0.1

    # TODO(synk): the real pretrained ST-GCN is external; it is emulated here by
    # a deterministic linear projection (project-then-mean(dim=[2,3]) equals
    # mean-pool-then-project for a linear extractor).
    params = {
        "w_pre": jax.random.normal(keys[0], (C_in, F), jnp.float32) * s,
        "b_pre": jax.random.normal(keys[1], (1, F), jnp.float32) * s,
        # Conv1d weights stored as (tap k, C_in, C_out) == torch W.permute(2,1,0)
        "w1": jax.random.normal(keys[2], (3, F, H), jnp.float32) * s,
        "b1": jax.random.normal(keys[3], (1, H), jnp.float32) * s,
        "w2": jax.random.normal(keys[4], (3, H, H), jnp.float32) * s,
        "b2": jax.random.normal(keys[5], (1, H), jnp.float32) * s,
        "wfc_c": jax.random.normal(keys[6], (H, NC), jnp.float32) * s,
        "bfc_c": jax.random.normal(keys[7], (1, NC), jnp.float32) * s,
        # LSTM weights stored transposed: (F, 4H), (H, 4H); gate order i,f,g,o
        "w_ih": jax.random.normal(keys[8], (F, 4 * H), jnp.float32) * s,
        "w_hh": jax.random.normal(keys[9], (H, 4 * H), jnp.float32) * s,
        "b_lstm": jax.random.normal(keys[10], (1, 4 * H), jnp.float32) * s,  # b_ih+b_hh
        "wfc_o": jax.random.normal(keys[11], (H, NC), jnp.float32) * s,
        "bfc_o": jax.random.normal(keys[12], (1, NC), jnp.float32) * s,
    }

    bag = jax.random.normal(keys[13], (L, C_in, T, V), jnp.float32)

    out = wogma_forward(bag, params, gt_label)
    out = jax.block_until_ready(out)

    assert out["clip_logits_cpgb"].shape == (L, NC)
    assert out["clip_logits_oamb"].shape == (L, NC)
    assert out["video_scores_cpgb"].shape == (NC,)
    assert out["video_scores_oamb"].shape == (NC,)
    assert bool(jnp.isfinite(out["loss_total"]))

    print("KERNEL_OK")
</pallas_src>

<mosaic_0001>
module attributes {stable_mosaic.version = 11 : i64} {
  func.func @_wogma_kernel(%arg0: memref<16x16xbf16, #tpu.memory_space<vmem>>, %arg1: memref<752x128xbf16, #tpu.memory_space<vmem>>, %arg2: memref<160x512xbf16, #tpu.memory_space<vmem>>, %arg3: memref<8x512xf32, #tpu.memory_space<vmem>>, %arg4: memref<16x256xf32, #tpu.memory_space<vmem>>) attributes {dimension_semantics = [], scalar_prefetch = 0 : i64, scratch_operands = 0 : i64, tpu.core_type = #tpu.core_type<tc>} {
    %c0 = arith.constant 0 : index
    %c0_0 = arith.constant 0 : index
    %0 = vector.load %arg1[%c0, %c0_0] : memref<752x128xbf16, #tpu.memory_space<vmem>>, vector<16x32xbf16>
    %c16 = arith.constant 16 : index
    %c0_1 = arith.constant 0 : index
    %1 = vector.load %arg1[%c16, %c0_1] : memref<752x128xbf16, #tpu.memory_space<vmem>>, vector<96x128xbf16>
    %c112 = arith.constant 112 : index
    %c0_2 = arith.constant 0 : index
    %2 = vector.load %arg1[%c112, %c0_2] : memref<752x128xbf16, #tpu.memory_space<vmem>>, vector<384x128xbf16>
    %c496 = arith.constant 496 : index
    %c0_3 = arith.constant 0 : index
    %3 = vector.load %arg1[%c496, %c0_3] : memref<752x128xbf16, #tpu.memory_space<vmem>>, vector<128x128xbf16>
    %c624 = arith.constant 624 : index
    %c0_4 = arith.constant 0 : index
    %4 = vector.load %arg1[%c624, %c0_4] : memref<752x128xbf16, #tpu.memory_space<vmem>>, vector<128x128xbf16>
    %c0_5 = arith.constant 0 : index
    %c0_6 = arith.constant 0 : index
    %5 = vector.load %arg2[%c0_5, %c0_6] : memref<160x512xbf16, #tpu.memory_space<vmem>>, vector<32x512xbf16>
    %c32 = arith.constant 32 : index
    %c0_7 = arith.constant 0 : index
    %6 = vector.load %arg2[%c32, %c0_7] : memref<160x512xbf16, #tpu.memory_space<vmem>>, vector<128x512xbf16>
    %c0_8 = arith.constant 0 : index
    %c0_9 = arith.constant 0 : index
    %7 = vector.load %arg3[%c0_8, %c0_9] : memref<8x512xf32, #tpu.memory_space<vmem>>, vector<1x32xf32>
    %c1 = arith.constant 1 : index
    %c0_10 = arith.constant 0 : index
    %8 = vector.load %arg3[%c1, %c0_10] : memref<8x512xf32, #tpu.memory_space<vmem>>, vector<1x128xf32>
    %c2 = arith.constant 2 : index
    %c0_11 = arith.constant 0 : index
    %9 = vector.load %arg3[%c2, %c0_11] : memref<8x512xf32, #tpu.memory_space<vmem>>, vector<1x128xf32>
    %c3 = arith.constant 3 : index
    %c0_12 = arith.constant 0 : index
    %10 = vector.load %arg3[%c3, %c0_12] : memref<8x512xf32, #tpu.memory_space<vmem>>, vector<1x128xf32>
    %c4 = arith.constant 4 : index
    %c0_13 = arith.constant 0 : index
    %11 = vector.load %arg3[%c4, %c0_13] : memref<8x512xf32, #tpu.memory_space<vmem>>, vector<1x512xf32>
    %c5 = arith.constant 5 : index
    %c0_14 = arith.constant 0 : index
    %12 = vector.load %arg3[%c5, %c0_14] : memref<8x512xf32, #tpu.memory_space<vmem>>, vector<1x128xf32>
    %c0_15 = arith.constant 0 : index
    %c0_16 = arith.constant 0 : index
    %13 = vector.load %arg0[%c0_15, %c0_16] : memref<16x16xbf16, #tpu.memory_space<vmem>>, vector<16x16xbf16>
    %cst = arith.constant dense<0.000000e+00> : vector<16x32xf32>
    %14 = tpu.matmul %13, %0, %cst {dimension_numbers = #tpu.dot_dimension_numbers<[1], [0], [0], [1], [0, 0, 1, 1], [], []>} : vector<16x16xbf16>, vector<16x32xbf16>, vector<16x32xf32> -> vector<16x32xf32>
    %15 = vector.broadcast %7 : vector<1x32xf32> to vector<16x32xf32>
    %16 = arith.addf %14, %15 : vector<16x32xf32>
    %17 = tpu.iota {dimensions = array<i32: 0>} : vector<16x1xi32>
    %c0_i32 = arith.constant 0 : i32
    %18 = vector.broadcast %c0_i32 : i32 to vector<16x1xi32>
    %19 = arith.cmpi ne, %17, %18 : vector<16x1xi32>
    %20 = arith.extui %19 : vector<16x1xi1> to vector<16x1xi32>
    %21 = arith.sitofp %20 : vector<16x1xi32> to vector<16x1xf32>
    %c15_i32 = arith.constant 15 : i32
    %22 = vector.broadcast %c15_i32 : i32 to vector<16x1xi32>
    %23 = arith.cmpi ne, %17, %22 : vector<16x1xi32>
    %24 = arith.extui %23 : vector<16x1xi1> to vector<16x1xi32>
    %25 = arith.sitofp %24 : vector<16x1xi32> to vector<16x1xf32>
    %c1_i32 = arith.constant 1 : i32
    %26 = tpu.dynamic_rotate %16 by %c1_i32 dim 0 : vector<16x32xf32>, i32 -> vector<16x32xf32>
    %27 = vector.broadcast %21 : vector<16x1xf32> to vector<16x32xf32>
    %28 = arith.mulf %26, %27 : vector<16x32xf32>
    %c15_i32_17 = arith.constant 15 : i32
    %29 = tpu.dynamic_rotate %16 by %c15_i32_17 dim 0 : vector<16x32xf32>, i32 -> vector<16x32xf32>
    %30 = vector.broadcast %25 : vector<16x1xf32> to vector<16x32xf32>
    %31 = arith.mulf %29, %30 : vector<16x32xf32>
    %32 = arith.truncf %28 : vector<16x32xf32> to vector<16x32xbf16>
    %33 = arith.truncf %16 : vector<16x32xf32> to vector<16x32xbf16>
    %34 = arith.truncf %31 : vector<16x32xf32> to vector<16x32xbf16>
    %35 = tpu.concatenate %32, %33, %34 in 1 : vector<16x32xbf16>, vector<16x32xbf16>, vector<16x32xbf16> -> vector<16x96xbf16>
    %cst_18 = arith.constant dense<0.000000e+00> : vector<16x128xf32>
    %36 = tpu.matmul %35, %1, %cst_18 {dimension_numbers = #tpu.dot_dimension_numbers<[1], [0], [0], [1], [0, 0, 1, 1], [], []>} : vector<16x96xbf16>, vector<96x128xbf16>, vector<16x128xf32> -> vector<16x128xf32>
    %37 = vector.broadcast %8 : vector<1x128xf32> to vector<16x128xf32>
    %38 = arith.addf %36, %37 : vector<16x128xf32>
    %cst_19 = arith.constant 0.000000e+00 : f32
    %39 = vector.broadcast %cst_19 : f32 to vector<16x128xf32>
    %40 = arith.maximumf %38, %39 : vector<16x128xf32>
    %c1_i32_20 = arith.constant 1 : i32
    %41 = tpu.dynamic_rotate %40 by %c1_i32_20 dim 0 : vector<16x128xf32>, i32 -> vector<16x128xf32>
    %42 = vector.broadcast %21 : vector<16x1xf32> to vector<16x128xf32>
    %43 = arith.mulf %41, %42 : vector<16x128xf32>
    %c15_i32_21 = arith.constant 15 : i32
    %44 = tpu.dynamic_rotate %40 by %c15_i32_21 dim 0 : vector<16x128xf32>, i32 -> vector<16x128xf32>
    %45 = vector.broadcast %25 : vector<16x1xf32> to vector<16x128xf32>
    %46 = arith.mulf %44, %45 : vector<16x128xf32>
    %47 = arith.truncf %43 : vector<16x128xf32> to vector<16x128xbf16>
    %48 = arith.truncf %40 : vector<16x128xf32> to vector<16x128xbf16>
    %49 = arith.truncf %46 : vector<16x128xf32> to vector<16x128xbf16>
    %50 = tpu.concatenate %47, %48, %49 in 1 : vector<16x128xbf16>, vector<16x128xbf16>, vector<16x128xbf16> -> vector<16x384xbf16>
    %cst_22 = arith.constant dense<0.000000e+00> : vector<16x128xf32>
    %51 = tpu.matmul %50, %2, %cst_22 {dimension_numbers = #tpu.dot_dimension_numbers<[1], [0], [0], [1], [0, 0, 1, 1], [], []>} : vector<16x384xbf16>, vector<384x128xbf16>, vector<16x128xf32> -> vector<16x128xf32>
    %52 = vector.broadcast %9 : vector<1x128xf32> to vector<16x128xf32>
    %53 = arith.addf %51, %52 : vector<16x128xf32>
    %cst_23 = arith.constant 0.000000e+00 : f32
    %54 = vector.broadcast %cst_23 : f32 to vector<16x128xf32>
    %55 = arith.maximumf %53, %54 : vector<16x128xf32>
    %56 = arith.truncf %55 : vector<16x128xf32> to vector<16x128xbf16>
    %cst_24 = arith.constant dense<0.000000e+00> : vector<16x128xf32>
    %57 = tpu.matmul %56, %3, %cst_24 {dimension_numbers = #tpu.dot_dimension_numbers<[1], [0], [0], [1], [0, 0, 1, 1], [], []>} : vector<16x128xbf16>, vector<128x128xbf16>, vector<16x128xf32> -> vector<16x128xf32>
    %58 = vector.broadcast %10 : vector<1x128xf32> to vector<16x128xf32>
    %59 = arith.addf %57, %58 : vector<16x128xf32>
    %c0_25 = arith.constant 0 : index
    %c0_26 = arith.constant 0 : index
    %60 = vector.load %arg4[%c0_25, %c0_26] : memref<16x256xf32, #tpu.memory_space<vmem>>, vector<16x128xf32>
    tpu.vector_store %arg4[%c0_25, %c0_26], %59 {strides = array<i32>} : memref<16x256xf32, #tpu.memory_space<vmem>>, vector<16x128xf32>,
    %61 = arith.truncf %16 : vector<16x32xf32> to vector<16x32xbf16>
    %cst_27 = arith.constant dense<0.000000e+00> : vector<16x512xf32>
    %62 = tpu.matmul %61, %5, %cst_27 {dimension_numbers = #tpu.dot_dimension_numbers<[1], [0], [0], [1], [0, 0, 1, 1], [], []>} : vector<16x32xbf16>, vector<32x512xbf16>, vector<16x512xf32> -> vector<16x512xf32>
    %63 = vector.broadcast %11 : vector<1x512xf32> to vector<16x512xf32>
    %64 = arith.addf %62, %63 : vector<16x512xf32>
    %cst_28 = arith.constant 0.000000e+00 : f32
    %65 = vector.broadcast %cst_28 : f32 to vector<1x128xf32>
    %cst_29 = arith.constant 0.000000e+00 : f32
    %66 = vector.broadcast %cst_29 : f32 to vector<1x128xf32>
    %67 = vector.extract_strided_slice %64 {offsets = [0, 0], sizes = [1, 512], strides = [1, 1]} : vector<16x512xf32> to vector<1x512xf32>
    %68 = arith.truncf %65 : vector<1x128xf32> to vector<1x128xbf16>
    %cst_30 = arith.constant dense<0.000000e+00> : vector<1x512xf32>
    %69 = tpu.matmul %68, %6, %cst_30 {dimension_numbers = #tpu.dot_dimension_numbers<[1], [0], [0], [1], [0, 0, 1, 1], [], []>} : vector<1x128xbf16>, vector<128x512xbf16>, vector<1x512xf32> -> vector<1x512xf32>
    %70 = arith.addf %67, %69 : vector<1x512xf32>
    %71 = vector.extract_strided_slice %70 {offsets = [0, 0], sizes = [1, 384], strides = [1, 1]} : vector<1x512xf32> to vector<1x384xf32>
    %72 = arith.negf %71 : vector<1x384xf32>
    %73 = math.exp %72 : vector<1x384xf32>
    %cst_31 = arith.constant 1.000000e+00 : f32
    %74 = vector.broadcast %cst_31 : f32 to vector<1x384xf32>
    %75 = arith.addf %74, %73 : vector<1x384xf32>
    %76 = arith.divf %74, %75 : vector<1x384xf32>
    %77 = vector.extract_strided_slice %70 {offsets = [0, 384], sizes = [1, 128], strides = [1, 1]} : vector<1x512xf32> to vector<1x128xf32>
    %78 = math.tanh %77 : vector<1x128xf32>
    %79 = vector.extract_strided_slice %76 {offsets = [0, 0], sizes = [1, 128], strides = [1, 1]} : vector<1x384xf32> to vector<1x128xf32>
    %80 = vector.extract_strided_slice %76 {offsets = [0, 128], sizes = [1, 128], strides = [1, 1]} : vector<1x384xf32> to vector<1x128xf32>
    %81 = vector.extract_strided_slice %76 {offsets = [0, 256], sizes = [1, 128], strides = [1, 1]} : vector<1x384xf32> to vector<1x128xf32>
    %82 = arith.mulf %80, %66 : vector<1x128xf32>
    %83 = arith.mulf %79, %78 : vector<1x128xf32>
    %84 = arith.addf %82, %83 : vector<1x128xf32>
    %85 = math.tanh %84 : vector<1x128xf32>
    %86 = arith.mulf %81, %85 : vector<1x128xf32>
    %87 = vector.extract_strided_slice %64 {offsets = [1, 0], sizes = [1, 512], strides = [1, 1]} : vector<16x512xf32> to vector<1x512xf32>
    %88 = arith.truncf %86 : vector<1x128xf32> to vector<1x128xbf16>
    %cst_32 = arith.constant dense<0.000000e+00> : vector<1x512xf32>
    %89 = tpu.matmul %88, %6, %cst_32 {dimension_numbers = #tpu.dot_dimension_numbers<[1], [0], [0], [1], [0, 0, 1, 1], [], []>} : vector<1x128xbf16>, vector<128x512xbf16>, vector<1x512xf32> -> vector<1x512xf32>
    %90 = arith.addf %87, %89 : vector<1x512xf32>
    %91 = vector.extract_strided_slice %90 {offsets = [0, 0], sizes = [1, 384], strides = [1, 1]} : vector<1x512xf32> to vector<1x384xf32>
    %92 = arith.negf %91 : vector<1x384xf32>
    %93 = math.exp %92 : vector<1x384xf32>
    %cst_33 = arith.constant 1.000000e+00 : f32
    %94 = vector.broadcast %cst_33 : f32 to vector<1x384xf32>
    %95 = arith.addf %94, %93 : vector<1x384xf32>
    %96 = arith.divf %94, %95 : vector<1x384xf32>
    %97 = vector.extract_strided_slice %90 {offsets = [0, 384], sizes = [1, 128], strides = [1, 1]} : vector<1x512xf32> to vector<1x128xf32>
    %98 = math.tanh %97 : vector<1x128xf32>
    %99 = vector.extract_strided_slice %96 {offsets = [0, 0], sizes = [1, 128], strides = [1, 1]} : vector<1x384xf32> to vector<1x128xf32>
    %100 = vector.extract_strided_slice %96 {offsets = [0, 128], sizes = [1, 128], strides = [1, 1]} : vector<1x384xf32> to vector<1x128xf32>
    %101 = vector.extract_strided_slice %96 {offsets = [0, 256], sizes = [1, 128], strides = [1, 1]} : vector<1x384xf32> to vector<1x128xf32>
    %102 = arith.mulf %100, %84 : vector<1x128xf32>
    %103 = arith.mulf %99, %98 : vector<1x128xf32>
    %104 = arith.addf %102, %103 : vector<1x128xf32>
    %105 = math.tanh %104 : vector<1x128xf32>
    %106 = arith.mulf %101, %105 : vector<1x128xf32>
    %107 = vector.extract_strided_slice %64 {offsets = [2, 0], sizes = [1, 512], strides = [1, 1]} : vector<16x512xf32> to vector<1x512xf32>
    %108 = arith.truncf %106 : vector<1x128xf32> to vector<1x128xbf16>
    %cst_34 = arith.constant dense<0.000000e+00> : vector<1x512xf32>
    %109 = tpu.matmul %108, %6, %cst_34 {dimension_numbers = #tpu.dot_dimension_numbers<[1], [0], [0], [1], [0, 0, 1, 1], [], []>} : vector<1x128xbf16>, vector<128x512xbf16>, vector<1x512xf32> -> vector<1x512xf32>
    %110 = arith.addf %107, %109 : vector<1x512xf32>
    %111 = vector.extract_strided_slice %110 {offsets = [0, 0], sizes = [1, 384], strides = [1, 1]} : vector<1x512xf32> to vector<1x384xf32>
    %112 = arith.negf %111 : vector<1x384xf32>
    %113 = math.exp %112 : vector<1x384xf32>
    %cst_35 = arith.constant 1.000000e+00 : f32
    %114 = vector.broadcast %cst_35 : f32 to vector<1x384xf32>
    %115 = arith.addf %114, %113 : vector<1x384xf32>
    %116 = arith.divf %114, %115 : vector<1x384xf32>
    %117 = vector.extract_strided_slice %110 {offsets = [0, 384], sizes = [1, 128], strides = [1, 1]} : vector<1x512xf32> to vector<1x128xf32>
    %118 = math.tanh %117 : vector<1x128xf32>
    %119 = vector.extract_strided_slice %116 {offsets = [0, 0], sizes = [1, 128], strides = [1, 1]} : vector<1x384xf32> to vector<1x128xf32>
    %120 = vector.extract_strided_slice %116 {offsets = [0, 128], sizes = [1, 128], strides = [1, 1]} : vector<1x384xf32> to vector<1x128xf32>
    %121 = vector.extract_strided_slice %116 {offsets = [0, 256], sizes = [1, 128], strides = [1, 1]} : vector<1x384xf32> to vector<1x128xf32>
    %122 = arith.mulf %120, %104 : vector<1x128xf32>
    %123 = arith.mulf %119, %118 : vector<1x128xf32>
    %124 = arith.addf %122, %123 : vector<1x128xf32>
    %125 = math.tanh %124 : vector<1x128xf32>
    %126 = arith.mulf %121, %125 : vector<1x128xf32>
    %127 = vector.extract_strided_slice %64 {offsets = [3, 0], sizes = [1, 512], strides = [1, 1]} : vector<16x512xf32> to vector<1x512xf32>
    %128 = arith.truncf %126 : vector<1x128xf32> to vector<1x128xbf16>
    %cst_36 = arith.constant dense<0.000000e+00> : vector<1x512xf32>
    %129 = tpu.matmul %128, %6, %cst_36 {dimension_numbers = #tpu.dot_dimension_numbers<[1], [0], [0], [1], [0, 0, 1, 1], [], []>} : vector<1x128xbf16>, vector<128x512xbf16>, vector<1x512xf32> -> vector<1x512xf32>
    %130 = arith.addf %127, %129 : vector<1x512xf32>
    %131 = vector.extract_strided_slice %130 {offsets = [0, 0], sizes = [1, 384], strides = [1, 1]} : vector<1x512xf32> to vector<1x384xf32>
    %132 = arith.negf %131 : vector<1x384xf32>
    %133 = math.exp %132 : vector<1x384xf32>
    %cst_37 = arith.constant 1.000000e+00 : f32
    %134 = vector.broadcast %cst_37 : f32 to vector<1x384xf32>
    %135 = arith.addf %134, %133 : vector<1x384xf32>
    %136 = arith.divf %134, %135 : vector<1x384xf32>
    %137 = vector.extract_strided_slice %130 {offsets = [0, 384], sizes = [1, 128], strides = [1, 1]} : vector<1x512xf32> to vector<1x128xf32>
    %138 = math.tanh %137 : vector<1x128xf32>
    %139 = vector.extract_strided_slice %136 {offsets = [0, 0], sizes = [1, 128], strides = [1, 1]} : vector<1x384xf32> to vector<1x128xf32>
    %140 = vector.extract_strided_slice %136 {offsets = [0, 128], sizes = [1, 128], strides = [1, 1]} : vector<1x384xf32> to vector<1x128xf32>
    %141 = vector.extract_strided_slice %136 {offsets = [0, 256], sizes = [1, 128], strides = [1, 1]} : vector<1x384xf32> to vector<1x128xf32>
    %142 = arith.mulf %140, %124 : vector<1x128xf32>
    %143 = arith.mulf %139, %138 : vector<1x128xf32>
    %144 = arith.addf %142, %143 : vector<1x128xf32>
    %145 = math.tanh %144 : vector<1x128xf32>
    %146 = arith.mulf %141, %145 : vector<1x128xf32>
    %147 = vector.extract_strided_slice %64 {offsets = [4, 0], sizes = [1, 512], strides = [1, 1]} : vector<16x512xf32> to vector<1x512xf32>
    %148 = arith.truncf %146 : vector<1x128xf32> to vector<1x128xbf16>
    %cst_38 = arith.constant dense<0.000000e+00> : vector<1x512xf32>
    %149 = tpu.matmul %148, %6, %cst_38 {dimension_numbers = #tpu.dot_dimension_numbers<[1], [0], [0], [1], [0, 0, 1, 1], [], []>} : vector<1x128xbf16>, vector<128x512xbf16>, vector<1x512xf32> -> vector<1x512xf32>
    %150 = arith.addf %147, %149 : vector<1x512xf32>
    %151 = vector.extract_strided_slice %150 {offsets = [0, 0], sizes = [1, 384], strides = [1, 1]} : vector<1x512xf32> to vector<1x384xf32>
    %152 = arith.negf %151 : vector<1x384xf32>
    %153 = math.exp %152 : vector<1x384xf32>
    %cst_39 = arith.constant 1.000000e+00 : f32
    %154 = vector.broadcast %cst_39 : f32 to vector<1x384xf32>
    %155 = arith.addf %154, %153 : vector<1x384xf32>
    %156 = arith.divf %154, %155 : vector<1x384xf32>
    %157 = vector.extract_strided_slice %150 {offsets = [0, 384], sizes = [1, 128], strides = [1, 1]} : vector<1x512xf32> to vector<1x128xf32>
    %158 = math.tanh %157 : vector<1x128xf32>
    %159 = vector.extract_strided_slice %156 {offsets = [0, 0], sizes = [1, 128], strides = [1, 1]} : vector<1x384xf32> to vector<1x128xf32>
    %160 = vector.extract_strided_slice %156 {offsets = [0, 128], sizes = [1, 128], strides = [1, 1]} : vector<1x384xf32> to vector<1x128xf32>
    %161 = vector.extract_strided_slice %156 {offsets = [0, 256], sizes = [1, 128], strides = [1, 1]} : vector<1x384xf32> to vector<1x128xf32>
    %162 = arith.mulf %160, %144 : vector<1x128xf32>
    %163 = arith.mulf %159, %158 : vector<1x128xf32>
    %164 = arith.addf %162, %163 : vector<1x128xf32>
    %165 = math.tanh %164 : vector<1x128xf32>
    %166 = arith.mulf %161, %165 : vector<1x128xf32>
    %167 = vector.extract_strided_slice %64 {offsets = [5, 0], sizes = [1, 512], strides = [1, 1]} : vector<16x512xf32> to vector<1x512xf32>
    %168 = arith.truncf %166 : vector<1x128xf32> to vector<1x128xbf16>
    %cst_40 = arith.constant dense<0.000000e+00> : vector<1x512xf32>
    %169 = tpu.matmul %168, %6, %cst_40 {dimension_numbers = #tpu.dot_dimension_numbers<[1], [0], [0], [1], [0, 0, 1, 1], [], []>} : vector<1x128xbf16>, vector<128x512xbf16>, vector<1x512xf32> -> vector<1x512xf32>
    %170 = arith.addf %167, %169 : vector<1x512xf32>
    %171 = vector.extract_strided_slice %170 {offsets = [0, 0], sizes = [1, 384], strides = [1, 1]} : vector<1x512xf32> to vector<1x384xf32>
    %172 = arith.negf %171 : vector<1x384xf32>
    %173 = math.exp %172 : vector<1x384xf32>
    %cst_41 = arith.constant 1.000000e+00 : f32
    %174 = vector.broadcast %cst_41 : f32 to vector<1x384xf32>
    %175 = arith.addf %174, %173 : vector<1x384xf32>
    %176 = arith.divf %174, %175 : vector<1x384xf32>
    %177 = vector.extract_strided_slice %170 {offsets = [0, 384], sizes = [1, 128], strides = [1, 1]} : vector<1x512xf32> to vector<1x128xf32>
    %178 = math.tanh %177 : vector<1x128xf32>
    %179 = vector.extract_strided_slice %176 {offsets = [0, 0], sizes = [1, 128], strides = [1, 1]} : vector<1x384xf32> to vector<1x128xf32>
    %180 = vector.extract_strided_slice %176 {offsets = [0, 128], sizes = [1, 128], strides = [1, 1]} : vector<1x384xf32> to vector<1x128xf32>
    %181 = vector.extract_strided_slice %176 {offsets = [0, 256], sizes = [1, 128], strides = [1, 1]} : vector<1x384xf32> to vector<1x128xf32>
    %182 = arith.mulf %180, %164 : vector<1x128xf32>
    %183 = arith.mulf %179, %178 : vector<1x128xf32>
    %184 = arith.addf %182, %183 : vector<1x128xf32>
    %185 = math.tanh %184 : vector<1x128xf32>
    %186 = arith.mulf %181, %185 : vector<1x128xf32>
    %187 = vector.extract_strided_slice %64 {offsets = [6, 0], sizes = [1, 512], strides = [1, 1]} : vector<16x512xf32> to vector<1x512xf32>
    %188 = arith.truncf %186 : vector<1x128xf32> to vector<1x128xbf16>
    %cst_42 = arith.constant dense<0.000000e+00> : vector<1x512xf32>
    %189 = tpu.matmul %188, %6, %cst_42 {dimension_numbers = #tpu.dot_dimension_numbers<[1], [0], [0], [1], [0, 0, 1, 1], [], []>} : vector<1x128xbf16>, vector<128x512xbf16>, vector<1x512xf32> -> vector<1x512xf32>
    %190 = arith.addf %187, %189 : vector<1x512xf32>
    %191 = vector.extract_strided_slice %190 {offsets = [0, 0], sizes = [1, 384], strides = [1, 1]} : vector<1x512xf32> to vector<1x384xf32>
    %192 = arith.negf %191 : vector<1x384xf32>
    %193 = math.exp %192 : vector<1x384xf32>
    %cst_43 = arith.constant 1.000000e+00 : f32
    %194 = vector.broadcast %cst_43 : f32 to vector<1x384xf32>
    %195 = arith.addf %194, %193 : vector<1x384xf32>
    %196 = arith.divf %194, %195 : vector<1x384xf32>
    %197 = vector.extract_strided_slice %190 {offsets = [0, 384], sizes = [1, 128], strides = [1, 1]} : vector<1x512xf32> to vector<1x128xf32>
    %198 = math.tanh %197 : vector<1x128xf32>
    %199 = vector.extract_strided_slice %196 {offsets = [0, 0], sizes = [1, 128], strides = [1, 1]} : vector<1x384xf32> to vector<1x128xf32>
    %200 = vector.extract_strided_slice %196 {offsets = [0, 128], sizes = [1, 128], strides = [1, 1]} : vector<1x384xf32> to vector<1x128xf32>
    %201 = vector.extract_strided_slice %196 {offsets = [0, 256], sizes = [1, 128], strides = [1, 1]} : vector<1x384xf32> to vector<1x128xf32>
    %202 = arith.mulf %200, %184 : vector<1x128xf32>
    %203 = arith.mulf %199, %198 : vector<1x128xf32>
    %204 = arith.addf %202, %203 : vector<1x128xf32>
    %205 = math.tanh %204 : vector<1x128xf32>
    %206 = arith.mulf %201, %205 : vector<1x128xf32>
    %207 = vector.extract_strided_slice %64 {offsets = [7, 0], sizes = [1, 512], strides = [1, 1]} : vector<16x512xf32> to vector<1x512xf32>
    %208 = arith.truncf %206 : vector<1x128xf32> to vector<1x128xbf16>
    %cst_44 = arith.constant dense<0.000000e+00> : vector<1x512xf32>
    %209 = tpu.matmul %208, %6, %cst_44 {dimension_numbers = #tpu.dot_dimension_numbers<[1], [0], [0], [1], [0, 0, 1, 1], [], []>} : vector<1x128xbf16>, vector<128x512xbf16>, vector<1x512xf32> -> vector<1x512xf32>
    %210 = arith.addf %207, %209 : vector<1x512xf32>
    %211 = vector.extract_strided_slice %210 {offsets = [0, 0], sizes = [1, 384], strides = [1, 1]} : vector<1x512xf32> to vector<1x384xf32>
    %212 = arith.negf %211 : vector<1x384xf32>
    %213 = math.exp %212 : vector<1x384xf32>
    %cst_45 = arith.constant 1.000000e+00 : f32
    %214 = vector.broadcast %cst_45 : f32 to vector<1x384xf32>
    %215 = arith.addf %214, %213 : vector<1x384xf32>
    %216 = arith.divf %214, %215 : vector<1x384xf32>
    %217 = vector.extract_strided_slice %210 {offsets = [0, 384], sizes = [1, 128], strides = [1, 1]} : vector<1x512xf32> to vector<1x128xf32>
    %218 = math.tanh %217 : vector<1x128xf32>
    %219 = vector.extract_strided_slice %216 {offsets = [0, 0], sizes = [1, 128], strides = [1, 1]} : vector<1x384xf32> to vector<1x128xf32>
    %220 = vector.extract_strided_slice %216 {offsets = [0, 128], sizes = [1, 128], strides = [1, 1]} : vector<1x384xf32> to vector<1x128xf32>
    %221 = vector.extract_strided_slice %216 {offsets = [0, 256], sizes = [1, 128], strides = [1, 1]} : vector<1x384xf32> to vector<1x128xf32>
    %222 = arith.mulf %220, %204 : vector<1x128xf32>
    %223 = arith.mulf %219, %218 : vector<1x128xf32>
    %224 = arith.addf %222, %223 : vector<1x128xf32>
    %225 = math.tanh %224 : vector<1x128xf32>
    %226 = arith.mulf %221, %225 : vector<1x128xf32>
    %227 = vector.extract_strided_slice %64 {offsets = [8, 0], sizes = [1, 512], strides = [1, 1]} : vector<16x512xf32> to vector<1x512xf32>
    %228 = arith.truncf %226 : vector<1x128xf32> to vector<1x128xbf16>
    %cst_46 = arith.constant dense<0.000000e+00> : vector<1x512xf32>
    %229 = tpu.matmul %228, %6, %cst_46 {dimension_numbers = #tpu.dot_dimension_numbers<[1], [0], [0], [1], [0, 0, 1, 1], [], []>} : vector<1x128xbf16>, vector<128x512xbf16>, vector<1x512xf32> -> vector<1x512xf32>
    %230 = arith.addf %227, %229 : vector<1x512xf32>
    %231 = vector.extract_strided_slice %230 {offsets = [0, 0], sizes = [1, 384], strides = [1, 1]} : vector<1x512xf32> to vector<1x384xf32>
    %232 = arith.negf %231 : vector<1x384xf32>
    %233 = math.exp %232 : vector<1x384xf32>
    %cst_47 = arith.constant 1.000000e+00 : f32
    %234 = vector.broadcast %cst_47 : f32 to vector<1x384xf32>
    %235 = arith.addf %234, %233 : vector<1x384xf32>
    %236 = arith.divf %234, %235 : vector<1x384xf32>
    %237 = vector.extract_strided_slice %230 {offsets = [0, 384], sizes = [1, 128], strides = [1, 1]} : vector<1x512xf32> to vector<1x128xf32>
    %238 = math.tanh %237 : vector<1x128xf32>
    %239 = vector.extract_strided_slice %236 {offsets = [0, 0], sizes = [1, 128], strides = [1, 1]} : vector<1x384xf32> to vector<1x128xf32>
    %240 = vector.extract_strided_slice %236 {offsets = [0, 128], sizes = [1, 128], strides = [1, 1]} : vector<1x384xf32> to vector<1x128xf32>
    %241 = vector.extract_strided_slice %236 {offsets = [0, 256], sizes = [1, 128], strides = [1, 1]} : vector<1x384xf32> to vector<1x128xf32>
    %242 = arith.mulf %240, %224 : vector<1x128xf32>
    %243 = arith.mulf %239, %238 : vector<1x128xf32>
    %244 = arith.addf %242, %243 : vector<1x128xf32>
    %245 = math.tanh %244 : vector<1x128xf32>
    %246 = arith.mulf %241, %245 : vector<1x128xf32>
    %247 = vector.extract_strided_slice %64 {offsets = [9, 0], sizes = [1, 512], strides = [1, 1]} : vector<16x512xf32> to vector<1x512xf32>
    %248 = arith.truncf %246 : vector<1x128xf32> to vector<1x128xbf16>
    %cst_48 = arith.constant dense<0.000000e+00> : vector<1x512xf32>
    %249 = tpu.matmul %248, %6, %cst_48 {dimension_numbers = #tpu.dot_dimension_numbers<[1], [0], [0], [1], [0, 0, 1, 1], [], []>} : vector<1x128xbf16>, vector<128x512xbf16>, vector<1x512xf32> -> vector<1x512xf32>
    %250 = arith.addf %247, %249 : vector<1x512xf32>
    %251 = vector.extract_strided_slice %250 {offsets = [0, 0], sizes = [1, 384], strides = [1, 1]} : vector<1x512xf32> to vector<1x384xf32>
    %252 = arith.negf %251 : vector<1x384xf32>
    %253 = math.exp %252 : vector<1x384xf32>
    %cst_49 = arith.constant 1.000000e+00 : f32
    %254 = vector.broadcast %cst_49 : f32 to vector<1x384xf32>
    %255 = arith.addf %254, %253 : vector<1x384xf32>
    %256 = arith.divf %254, %255 : vector<1x384xf32>
    %257 = vector.extract_strided_slice %250 {offsets = [0, 384], sizes = [1, 128], strides = [1, 1]} : vector<1x512xf32> to vector<1x128xf32>
    %258 = math.tanh %257 : vector<1x128xf32>
    %259 = vector.extract_strided_slice %256 {offsets = [0, 0], sizes = [1, 128], strides = [1, 1]} : vector<1x384xf32> to vector<1x128xf32>
    %260 = vector.extract_strided_slice %256 {offsets = [0, 128], sizes = [1, 128], strides = [1, 1]} : vector<1x384xf32> to vector<1x128xf32>
    %261 = vector.extract_strided_slice %256 {offsets = [0, 256], sizes = [1, 128], strides = [1, 1]} : vector<1x384xf32> to vector<1x128xf32>
    %262 = arith.mulf %260, %244 : vector<1x128xf32>
    %263 = arith.mulf %259, %258 : vector<1x128xf32>
    %264 = arith.addf %262, %263 : vector<1x128xf32>
    %265 = math.tanh %264 : vector<1x128xf32>
    %266 = arith.mulf %261, %265 : vector<1x128xf32>
    %267 = vector.extract_strided_slice %64 {offsets = [10, 0], sizes = [1, 512], strides = [1, 1]} : vector<16x512xf32> to vector<1x512xf32>
    %268 = arith.truncf %266 : vector<1x128xf32> to vector<1x128xbf16>
    %cst_50 = arith.constant dense<0.000000e+00> : vector<1x512xf32>
    %269 = tpu.matmul %268, %6, %cst_50 {dimension_numbers = #tpu.dot_dimension_numbers<[1], [0], [0], [1], [0, 0, 1, 1], [], []>} : vector<1x128xbf16>, vector<128x512xbf16>, vector<1x512xf32> -> vector<1x512xf32>
    %270 = arith.addf %267, %269 : vector<1x512xf32>
    %271 = vector.extract_strided_slice %270 {offsets = [0, 0], sizes = [1, 384], strides = [1, 1]} : vector<1x512xf32> to vector<1x384xf32>
    %272 = arith.negf %271 : vector<1x384xf32>
    %273 = math.exp %272 : vector<1x384xf32>
    %cst_51 = arith.constant 1.000000e+00 : f32
    %274 = vector.broadcast %cst_51 : f32 to vector<1x384xf32>
    %275 = arith.addf %274, %273 : vector<1x384xf32>
    %276 = arith.divf %274, %275 : vector<1x384xf32>
    %277 = vector.extract_strided_slice %270 {offsets = [0, 384], sizes = [1, 128], strides = [1, 1]} : vector<1x512xf32> to vector<1x128xf32>
    %278 = math.tanh %277 : vector<1x128xf32>
    %279 = vector.extract_strided_slice %276 {offsets = [0, 0], sizes = [1, 128], strides = [1, 1]} : vector<1x384xf32> to vector<1x128xf32>
    %280 = vector.extract_strided_slice %276 {offsets = [0, 128], sizes = [1, 128], strides = [1, 1]} : vector<1x384xf32> to vector<1x128xf32>
    %281 = vector.extract_strided_slice %276 {offsets = [0, 256], sizes = [1, 128], strides = [1, 1]} : vector<1x384xf32> to vector<1x128xf32>
    %282 = arith.mulf %280, %264 : vector<1x128xf32>
    %283 = arith.mulf %279, %278 : vector<1x128xf32>
    %284 = arith.addf %282, %283 : vector<1x128xf32>
    %285 = math.tanh %284 : vector<1x128xf32>
    %286 = arith.mulf %281, %285 : vector<1x128xf32>
    %287 = vector.extract_strided_slice %64 {offsets = [11, 0], sizes = [1, 512], strides = [1, 1]} : vector<16x512xf32> to vector<1x512xf32>
    %288 = arith.truncf %286 : vector<1x128xf32> to vector<1x128xbf16>
    %cst_52 = arith.constant dense<0.000000e+00> : vector<1x512xf32>
    %289 = tpu.matmul %288, %6, %cst_52 {dimension_numbers = #tpu.dot_dimension_numbers<[1], [0], [0], [1], [0, 0, 1, 1], [], []>} : vector<1x128xbf16>, vector<128x512xbf16>, vector<1x512xf32> -> vector<1x512xf32>
    %290 = arith.addf %287, %289 : vector<1x512xf32>
    %291 = vector.extract_strided_slice %290 {offsets = [0, 0], sizes = [1, 384], strides = [1, 1]} : vector<1x512xf32> to vector<1x384xf32>
    %292 = arith.negf %291 : vector<1x384xf32>
    %293 = math.exp %292 : vector<1x384xf32>
    %cst_53 = arith.constant 1.000000e+00 : f32
    %294 = vector.broadcast %cst_53 : f32 to vector<1x384xf32>
    %295 = arith.addf %294, %293 : vector<1x384xf32>
    %296 = arith.divf %294, %295 : vector<1x384xf32>
    %297 = vector.extract_strided_slice %290 {offsets = [0, 384], sizes = [1, 128], strides = [1, 1]} : vector<1x512xf32> to vector<1x128xf32>
    %298 = math.tanh %297 : vector<1x128xf32>
    %299 = vector.extract_strided_slice %296 {offsets = [0, 0], sizes = [1, 128], strides = [1, 1]} : vector<1x384xf32> to vector<1x128xf32>
    %300 = vector.extract_strided_slice %296 {offsets = [0, 128], sizes = [1, 128], strides = [1, 1]} : vector<1x384xf32> to vector<1x128xf32>
    %301 = vector.extract_strided_slice %296 {offsets = [0, 256], sizes = [1, 128], strides = [1, 1]} : vector<1x384xf32> to vector<1x128xf32>
    %302 = arith.mulf %300, %284 : vector<1x128xf32>
    %303 = arith.mulf %299, %298 : vector<1x128xf32>
    %304 = arith.addf %302, %303 : vector<1x128xf32>
    %305 = math.tanh %304 : vector<1x128xf32>
    %306 = arith.mulf %301, %305 : vector<1x128xf32>
    %307 = vector.extract_strided_slice %64 {offsets = [12, 0], sizes = [1, 512], strides = [1, 1]} : vector<16x512xf32> to vector<1x512xf32>
    %308 = arith.truncf %306 : vector<1x128xf32> to vector<1x128xbf16>
    %cst_54 = arith.constant dense<0.000000e+00> : vector<1x512xf32>
    %309 = tpu.matmul %308, %6, %cst_54 {dimension_numbers = #tpu.dot_dimension_numbers<[1], [0], [0], [1], [0, 0, 1, 1], [], []>} : vector<1x128xbf16>, vector<128x512xbf16>, vector<1x512xf32> -> vector<1x512xf32>
    %310 = arith.addf %307, %309 : vector<1x512xf32>
    %311 = vector.extract_strided_slice %310 {offsets = [0, 0], sizes = [1, 384], strides = [1, 1]} : vector<1x512xf32> to vector<1x384xf32>
    %312 = arith.negf %311 : vector<1x384xf32>
    %313 = math.exp %312 : vector<1x384xf32>
    %cst_55 = arith.constant 1.000000e+00 : f32
    %314 = vector.broadcast %cst_55 : f32 to vector<1x384xf32>
    %315 = arith.addf %314, %313 : vector<1x384xf32>
    %316 = arith.divf %314, %315 : vector<1x384xf32>
    %317 = vector.extract_strided_slice %310 {offsets = [0, 384], sizes = [1, 128], strides = [1, 1]} : vector<1x512xf32> to vector<1x128xf32>
    %318 = math.tanh %317 : vector<1x128xf32>
    %319 = vector.extract_strided_slice %316 {offsets = [0, 0], sizes = [1, 128], strides = [1, 1]} : vector<1x384xf32> to vector<1x128xf32>
    %320 = vector.extract_strided_slice %316 {offsets = [0, 128], sizes = [1, 128], strides = [1, 1]} : vector<1x384xf32> to vector<1x128xf32>
    %321 = vector.extract_strided_slice %316 {offsets = [0, 256], sizes = [1, 128], strides = [1, 1]} : vector<1x384xf32> to vector<1x128xf32>
    %322 = arith.mulf %320, %304 : vector<1x128xf32>
    %323 = arith.mulf %319, %318 : vector<1x128xf32>
    %324 = arith.addf %322, %323 : vector<1x128xf32>
    %325 = math.tanh %324 : vector<1x128xf32>
    %326 = arith.mulf %321, %325 : vector<1x128xf32>
    %327 = vector.extract_strided_slice %64 {offsets = [13, 0], sizes = [1, 512], strides = [1, 1]} : vector<16x512xf32> to vector<1x512xf32>
    %328 = arith.truncf %326 : vector<1x128xf32> to vector<1x128xbf16>
    %cst_56 = arith.constant dense<0.000000e+00> : vector<1x512xf32>
    %329 = tpu.matmul %328, %6, %cst_56 {dimension_numbers = #tpu.dot_dimension_numbers<[1], [0], [0], [1], [0, 0, 1, 1], [], []>} : vector<1x128xbf16>, vector<128x512xbf16>, vector<1x512xf32> -> vector<1x512xf32>
    %330 = arith.addf %327, %329 : vector<1x512xf32>
    %331 = vector.extract_strided_slice %330 {offsets = [0, 0], sizes = [1, 384], strides = [1, 1]} : vector<1x512xf32> to vector<1x384xf32>
    %332 = arith.negf %331 : vector<1x384xf32>
    %333 = math.exp %332 : vector<1x384xf32>
    %cst_57 = arith.constant 1.000000e+00 : f32
    %334 = vector.broadcast %cst_57 : f32 to vector<1x384xf32>
    %335 = arith.addf %334, %333 : vector<1x384xf32>
    %336 = arith.divf %334, %335 : vector<1x384xf32>
    %337 = vector.extract_strided_slice %330 {offsets = [0, 384], sizes = [1, 128], strides = [1, 1]} : vector<1x512xf32> to vector<1x128xf32>
    %338 = math.tanh %337 : vector<1x128xf32>
    %339 = vector.extract_strided_slice %336 {offsets = [0, 0], sizes = [1, 128], strides = [1, 1]} : vector<1x384xf32> to vector<1x128xf32>
    %340 = vector.extract_strided_slice %336 {offsets = [0, 128], sizes = [1, 128], strides = [1, 1]} : vector<1x384xf32> to vector<1x128xf32>
    %341 = vector.extract_strided_slice %336 {offsets = [0, 256], sizes = [1, 128], strides = [1, 1]} : vector<1x384xf32> to vector<1x128xf32>
    %342 = arith.mulf %340, %324 : vector<1x128xf32>
    %343 = arith.mulf %339, %338 : vector<1x128xf32>
    %344 = arith.addf %342, %343 : vector<1x128xf32>
    %345 = math.tanh %344 : vector<1x128xf32>
    %346 = arith.mulf %341, %345 : vector<1x128xf32>
    %347 = vector.extract_strided_slice %64 {offsets = [14, 0], sizes = [1, 512], strides = [1, 1]} : vector<16x512xf32> to vector<1x512xf32>
    %348 = arith.truncf %346 : vector<1x128xf32> to vector<1x128xbf16>
    %cst_58 = arith.constant dense<0.000000e+00> : vector<1x512xf32>
    %349 = tpu.matmul %348, %6, %cst_58 {dimension_numbers = #tpu.dot_dimension_numbers<[1], [0], [0], [1], [0, 0, 1, 1], [], []>} : vector<1x128xbf16>, vector<128x512xbf16>, vector<1x512xf32> -> vector<1x512xf32>
    %350 = arith.addf %347, %349 : vector<1x512xf32>
    %351 = vector.extract_strided_slice %350 {offsets = [0, 0], sizes = [1, 384], strides = [1, 1]} : vector<1x512xf32> to vector<1x384xf32>
    %352 = arith.negf %351 : vector<1x384xf32>
    %353 = math.exp %352 : vector<1x384xf32>
    %cst_59 = arith.constant 1.000000e+00 : f32
    %354 = vector.broadcast %cst_59 : f32 to vector<1x384xf32>
    %355 = arith.addf %354, %353 : vector<1x384xf32>
    %356 = arith.divf %354, %355 : vector<1x384xf32>
    %357 = vector.extract_strided_slice %350 {offsets = [0, 384], sizes = [1, 128], strides = [1, 1]} : vector<1x512xf32> to vector<1x128xf32>
    %358 = math.tanh %357 : vector<1x128xf32>
    %359 = vector.extract_strided_slice %356 {offsets = [0, 0], sizes = [1, 128], strides = [1, 1]} : vector<1x384xf32> to vector<1x128xf32>
    %360 = vector.extract_strided_slice %356 {offsets = [0, 128], sizes = [1, 128], strides = [1, 1]} : vector<1x384xf32> to vector<1x128xf32>
    %361 = vector.extract_strided_slice %356 {offsets = [0, 256], sizes = [1, 128], strides = [1, 1]} : vector<1x384xf32> to vector<1x128xf32>
    %362 = arith.mulf %360, %344 : vector<1x128xf32>
    %363 = arith.mulf %359, %358 : vector<1x128xf32>
    %364 = arith.addf %362, %363 : vector<1x128xf32>
    %365 = math.tanh %364 : vector<1x128xf32>
    %366 = arith.mulf %361, %365 : vector<1x128xf32>
    %367 = vector.extract_strided_slice %64 {offsets = [15, 0], sizes = [1, 512], strides = [1, 1]} : vector<16x512xf32> to vector<1x512xf32>
    %368 = arith.truncf %366 : vector<1x128xf32> to vector<1x128xbf16>
    %cst_60 = arith.constant dense<0.000000e+00> : vector<1x512xf32>
    %369 = tpu.matmul %368, %6, %cst_60 {dimension_numbers = #tpu.dot_dimension_numbers<[1], [0], [0], [1], [0, 0, 1, 1], [], []>} : vector<1x128xbf16>, vector<128x512xbf16>, vector<1x512xf32> -> vector<1x512xf32>
    %370 = arith.addf %367, %369 : vector<1x512xf32>
    %371 = vector.extract_strided_slice %370 {offsets = [0, 0], sizes = [1, 384], strides = [1, 1]} : vector<1x512xf32> to vector<1x384xf32>
    %372 = arith.negf %371 : vector<1x384xf32>
    %373 = math.exp %372 : vector<1x384xf32>
    %cst_61 = arith.constant 1.000000e+00 : f32
    %374 = vector.broadcast %cst_61 : f32 to vector<1x384xf32>
    %375 = arith.addf %374, %373 : vector<1x384xf32>
    %376 = arith.divf %374, %375 : vector<1x384xf32>
    %377 = vector.extract_strided_slice %370 {offsets = [0, 384], sizes = [1, 128], strides = [1, 1]} : vector<1x512xf32> to vector<1x128xf32>
    %378 = math.tanh %377 : vector<1x128xf32>
    %379 = vector.extract_strided_slice %376 {offsets = [0, 0], sizes = [1, 128], strides = [1, 1]} : vector<1x384xf32> to vector<1x128xf32>
    %380 = vector.extract_strided_slice %376 {offsets = [0, 128], sizes = [1, 128], strides = [1, 1]} : vector<1x384xf32> to vector<1x128xf32>
    %381 = vector.extract_strided_slice %376 {offsets = [0, 256], sizes = [1, 128], strides = [1, 1]} : vector<1x384xf32> to vector<1x128xf32>
    %382 = arith.mulf %380, %364 : vector<1x128xf32>
    %383 = arith.mulf %379, %378 : vector<1x128xf32>
    %384 = arith.addf %382, %383 : vector<1x128xf32>
    %385 = math.tanh %384 : vector<1x128xf32>
    %386 = arith.mulf %381, %385 : vector<1x128xf32>
    %387 = tpu.concatenate %86, %106, %126, %146, %166, %186, %206, %226, %246, %266, %286, %306, %326, %346, %366, %386 in 0 : vector<1x128xf32>, vector<1x128xf32>, vector<1x128xf32>, vector<1x128xf32>, vector<1x128xf32>, vector<1x128xf32>, vector<1x128xf32>, vector<1x128xf32>, vector<1x128xf32>, vector<1x128xf32>, vector<1x128xf32>, vector<1x128xf32>, vector<1x128xf32>, vector<1x128xf32>, vector<1x128xf32>, vector<1x128xf32> -> vector<16x128xf32>
    %388 = arith.truncf %387 : vector<16x128xf32> to vector<16x128xbf16>
    %cst_62 = arith.constant dense<0.000000e+00> : vector<16x128xf32>
    %389 = tpu.matmul %388, %4, %cst_62 {dimension_numbers = #tpu.dot_dimension_numbers<[1], [0], [0], [1], [0, 0, 1, 1], [], []>} : vector<16x128xbf16>, vector<128x128xbf16>, vector<16x128xf32> -> vector<16x128xf32>
    %390 = vector.broadcast %12 : vector<1x128xf32> to vector<16x128xf32>
    %391 = arith.addf %389, %390 : vector<16x128xf32>
    %c0_63 = arith.constant 0 : index
    %c128 = arith.constant 128 : index
    %392 = vector.load %arg4[%c0_63, %c128] : memref<16x256xf32, #tpu.memory_space<vmem>>, vector<16x128xf32>
    tpu.vector_store %arg4[%c0_63, %c128], %391 {strides = array<i32>} : memref<16x256xf32, #tpu.memory_space<vmem>>, vector<16x128xf32>,
    return
  }
}

</mosaic_0001>

<llo_original>
// kernel: tpu_custom_call.1
$region0: #{tpu_custom_call.1}
  #allocation0 [shape = 'u32[]', space=smem, size = 0x4, offset = 0x4, fixed_abs, tag = 'smem constant byte address 0x4 - core index']
  #allocation1 [shape = 'u32[144,128]{1,0:T(1,128)}', space=vmem, size = 0x12000, scoped, tag = 'internal scratch']
  %s0 = inlined_call_operand.hbm [shape: bf16[16,16], index: 0, kind: input, shape index: {}]
  %s1 = inlined_call_operand.hbm [shape: bf16[752,128], index: 1, kind: input, shape index: {}]
  %s2 = inlined_call_operand.hbm [shape: bf16[160,512], index: 2, kind: input, shape index: {}]
  %s3 = inlined_call_operand.hbm [shape: f32[8,512], index: 3, kind: input, shape index: {}]
  %s4 = inlined_call_operand.hbm [shape: f32[16,256], index: 4, kind: output, shape index: {}]
  %s5 = sld [smem:[#allocation0]]
  $region42: #{tpu_custom_call.1} parent=0
    _
  %s7 = ssub.s32 1, %s5
  %s8 = scalar_select 0, %s7, %s5
  $region1: #{tpu_custom_call.1} parent=0
    #allocation2 [shape = 'u8[4096]{0}', space=vmem, size = 0x1000, scoped, tag = 'input window, operand 0, single buffered']
    #allocation3 [shape = 's32[1]{0}', space=sflag, size = 0x4, scoped, tag = 'scoped memory for tpu_custom_call.1']
    #allocation4 [shape = 's32[1]{0}', space=sflag, size = 0x4, scoped, tag = 'scoped memory for tpu_custom_call.1']
    #allocation5 [shape = 'u8[192512]{0}', space=vmem, size = 0x2f000, scoped, tag = 'input window, operand 1, single buffered']
    #allocation6 [shape = 's32[1]{0}', space=sflag, size = 0x4, scoped, tag = 'scoped memory for tpu_custom_call.1']
    #allocation7 [shape = 'u8[163840]{0}', space=vmem, size = 0x28000, scoped, tag = 'input window, operand 2, single buffered']
    #allocation8 [shape = 'u8[16384]{0}', space=vmem, size = 0x4000, scoped, tag = 'input window, operand 3, single buffered']
    #allocation9 [shape = 's32[1]{0}', space=sflag, size = 0x4, scoped, tag = 'scoped memory for tpu_custom_call.1']
    #allocation10 [shape = 'u8[16384]{0}', space=vmem, size = 0x4000, scoped, tag = 'output window, operand 0, single buffered']
    %9 = vsyncpa [#allocation3], 0
    %10 = vsyncpa [#allocation6], 0
    %11 = vsyncpa [#allocation9], 0
    %12 = vsyncpa [#allocation4], 0
    // Predicated region
    $region2: #{tpu_custom_call.1} parent=1 // pred_check
      _
    $region3: #{tpu_custom_call.1} parent=1 // pred_check_branch
      %14 = sbr.rel (0) target = $region5
    $region4: #{tpu_custom_call.1} parent=1 // pred_region
      %s16 = ssub.s32 128, 128
      %17 = vsyncadd [#allocation3], %s16
      %s18 = sshll.u32 [#allocation2], 4
      %s19 = int_to_ptr.vmem [resolvable:$true] %s18
      %24 = dma.hbm_to_vmem [thread:$0]  %s0, 128, %s19, [#allocation3], 64, 64, 4
    $region5: #{tpu_custom_call.1} parent=1 // pred_fallthru
      _
    // Predicated region
    $region6: #{tpu_custom_call.1} parent=1 // pred_check
      _
    $region7: #{tpu_custom_call.1} parent=1 // pred_check_branch
      %26 = sbr.rel (0) target = $region9
    $region8: #{tpu_custom_call.1} parent=1 // pred_region
      %s28 = ssub.s32 6016, 6016
      %29 = vsyncadd [#allocation6], %s28
      %s30 = sshll.u32 [#allocation5], 4
      %s31 = int_to_ptr.vmem [resolvable:$true] %s30
      %36 = dma.hbm_to_vmem [thread:$0]  %s1, 6016, %s31, [#allocation6], 64, 64, 4
    $region9: #{tpu_custom_call.1} parent=1 // pred_fallthru
      _
    // Predicated region
    $region10: #{tpu_custom_call.1} parent=1 // pred_check
      _
    $region11: #{tpu_custom_call.1} parent=1 // pred_check_branch
      %38 = sbr.rel (0) target = $region13
    $region12: #{tpu_custom_call.1} parent=1 // pred_region
      %s40 = ssub.s32 5120, 5120
      %41 = vsyncadd [#allocation6], %s40
      %s42 = sshll.u32 [#allocation7], 4
      %s43 = int_to_ptr.vmem [resolvable:$true] %s42
      %48 = dma.hbm_to_vmem [thread:$0]  %s2, 5120, %s43, [#allocation6], 256, 256, 16
    $region13: #{tpu_custom_call.1} parent=1 // pred_fallthru
      _
    // Predicated region
    $region14: #{tpu_custom_call.1} parent=1 // pred_check
      _
    $region15: #{tpu_custom_call.1} parent=1 // pred_check_branch
      %50 = sbr.rel (0) target = $region17
    $region16: #{tpu_custom_call.1} parent=1 // pred_region
      %s52 = ssub.s32 512, 512
      %53 = vsyncadd [#allocation9], %s52
      %s55 = sshll.u32 [#allocation8], 4
      %s56 = int_to_ptr.vmem [resolvable:$true] %s55
      %58 = dma.hbm_to_vmem [thread:$0]  %s3, 512, %s56, [#allocation9]
    $region17: #{tpu_custom_call.1} parent=1 // pred_fallthru
      _
    // Predicated region
    $region18: #{tpu_custom_call.1} parent=1 // pred_check
      _
    $region19: #{tpu_custom_call.1} parent=1 // pred_check_branch
      %60 = sbr.rel (0) target = $region21
    $region20: #{tpu_custom_call.1} parent=1 // pred_region
      %61 = dma.done [#allocation3], 128
    $region21: #{tpu_custom_call.1} parent=1 // pred_fallthru
      _
    // Predicated region
    $region22: #{tpu_custom_call.1} parent=1 // pred_check
      _
    $region23: #{tpu_custom_call.1} parent=1 // pred_check_branch
      %63 = sbr.rel (0) target = $region25
    $region24: #{tpu_custom_call.1} parent=1 // pred_region
      %64 = dma.done [#allocation6], 6016
    $region25: #{tpu_custom_call.1} parent=1 // pred_fallthru
      _
    // Predicated region
    $region26: #{tpu_custom_call.1} parent=1 // pred_check
      _
    $region27: #{tpu_custom_call.1} parent=1 // pred_check_branch
      %66 = sbr.rel (0) target = $region29
    $region28: #{tpu_custom_call.1} parent=1 // pred_region
      %67 = dma.done [#allocation6], 5120
    $region29: #{tpu_custom_call.1} parent=1 // pred_fallthru
      _
    // Predicated region
    $region30: #{tpu_custom_call.1} parent=1 // pred_check
      _
    $region31: #{tpu_custom_call.1} parent=1 // pred_check_branch
      %69 = sbr.rel (0) target = $region33
    $region32: #{tpu_custom_call.1} parent=1 // pred_region
      %70 = dma.done [#allocation9], 512
    $region33: #{tpu_custom_call.1} parent=1 // pred_fallthru
      _
    %v72 = vld [vmem:[#allocation5] sm:$0xf]
    %v73 = vld [vmem:[#allocation5 + $0x4] sm:$0xf]
    %v74 = vld [vmem:[#allocation5 + $0x8] sm:$0xf]
    %v75 = vld [vmem:[#allocation5 + $0xc] sm:$0xf]
    %v76 = vld [vmem:[#allocation5 + $0x10] sm:$0xf]
    %v77 = vld [vmem:[#allocation5 + $0x14] sm:$0xf]
    %v78 = vld [vmem:[#allocation5 + $0x18] sm:$0xf]
    %v79 = vld [vmem:[#allocation5 + $0x1c] sm:$0xf]
    %v80 = vld [vmem:[#allocation5 + $0x20] sm:$0xf]
    %v81 = vld [vmem:[#allocation5 + $0x24] sm:$0xf]
    %v82 = vld [vmem:[#allocation5 + $0x28] sm:$0xf]
    %v83 = vld [vmem:[#allocation5 + $0x2c] sm:$0xf]
    %v84 = vld [vmem:[#allocation5 + $0x30] sm:$0xf]
    %v85 = vld [vmem:[#allocation5 + $0x34] sm:$0xf]
    %v86 = vld [vmem:[#allocation5 + $0x38] sm:$0xf]
    %v87 = vld [vmem:[#allocation5 + $0x3c] sm:$0xf]
    %v88 = vld [vmem:[#allocation5 + $0x40] sm:$0xf]
    %v89 = vld [vmem:[#allocation5 + $0x44] sm:$0xf]
    %v90 = vld [vmem:[#allocation5 + $0x48] sm:$0xf]
    %v91 = vld [vmem:[#allocation5 + $0x4c] sm:$0xf]
    %v92 = vld [vmem:[#allocation5 + $0x50] sm:$0xf]
    %v93 = vld [vmem:[#allocation5 + $0x54] sm:$0xf]
    %v94 = vld [vmem:[#allocation5 + $0x58] sm:$0xf]
    %v95 = vld [vmem:[#allocation5 + $0x5c] sm:$0xf]
    %v96 = vld [vmem:[#allocation5 + $0x60] sm:$0xf]
    %v97 = vld [vmem:[#allocation5 + $0x64] sm:$0xf]
    %v98 = vld [vmem:[#allocation5 + $0x68] sm:$0xf]
    %v99 = vld [vmem:[#allocation5 + $0x6c] sm:$0xf]
    %v100 = vld [vmem:[#allocation5 + $0x70] sm:$0xf]
    %v101 = vld [vmem:[#allocation5 + $0x74] sm:$0xf]
    %v102 = vld [vmem:[#allocation5 + $0x78] sm:$0xf]
    %v103 = vld [vmem:[#allocation5 + $0x7c] sm:$0xf]
    %v104 = vld [vmem:[#allocation5 + $0x80] sm:$0xf]
    %v105 = vld [vmem:[#allocation5 + $0x84] sm:$0xf]
    %v106 = vld [vmem:[#allocation5 + $0x88] sm:$0xf]
    %v107 = vld [vmem:[#allocation5 + $0x8c] sm:$0xf]
    %v108 = vld [vmem:[#allocation5 + $0x90] sm:$0xf]
    %v109 = vld [vmem:[#allocation5 + $0x94] sm:$0xf]
    %v110 = vld [vmem:[#allocation5 + $0x98] sm:$0xf]
    %v111 = vld [vmem:[#allocation5 + $0x9c] sm:$0xf]
    %v112 = vld [vmem:[#allocation5 + $0xa0] sm:$0xf]
    %v113 = vld [vmem:[#allocation5 + $0xa4] sm:$0xf]
    %v114 = vld [vmem:[#allocation5 + $0xa8] sm:$0xf]
    %v115 = vld [vmem:[#allocation5 + $0xac] sm:$0xf]
    %v116 = vld [vmem:[#allocation5 + $0xb0] sm:$0xf]
    %v117 = vld [vmem:[#allocation5 + $0xb4] sm:$0xf]
    %v118 = vld [vmem:[#allocation5 + $0xb8] sm:$0xf]
    %v119 = vld [vmem:[#allocation5 + $0xbc] sm:$0xf]
    %v120 = vld [vmem:[#allocation5 + $0xc0] sm:$0xf]
    %v121 = vld [vmem:[#allocation5 + $0xc4] sm:$0xf]
    %v122 = vld [vmem:[#allocation5 + $0xc8] sm:$0xf]
    %v123 = vld [vmem:[#allocation5 + $0xcc] sm:$0xf]
    %v124 = vld [vmem:[#allocation5 + $0xd0] sm:$0xf]
    %v125 = vld [vmem:[#allocation5 + $0xd4] sm:$0xf]
    %v126 = vld [vmem:[#allocation5 + $0xd8] sm:$0xf]
    %v127 = vld [vmem:[#allocation5 + $0xdc] sm:$0xf]
    %v128 = vld [vmem:[#allocation5 + $0xe0] sm:$0xf]
    %v129 = vld [vmem:[#allocation5 + $0xe4] sm:$0xf]
    %v130 = vld [vmem:[#allocation5 + $0xe8] sm:$0xf]
    %v131 = vld [vmem:[#allocation5 + $0xec] sm:$0xf]
    %v132 = vld [vmem:[#allocation5 + $0xf0] sm:$0xf]
    %v133 = vld [vmem:[#allocation5 + $0xf4] sm:$0xf]
    %v134 = vld [vmem:[#allocation5 + $0xf8] sm:$0xf]
    %v135 = vld [vmem:[#allocation5 + $0xfc] sm:$0xf]
    %v136 = vld [vmem:[#allocation5 + $0x100] sm:$0xf]
    %v137 = vld [vmem:[#allocation5 + $0x104] sm:$0xf]
    %v138 = vld [vmem:[#allocation5 + $0x108] sm:$0xf]
    %v139 = vld [vmem:[#allocation5 + $0x10c] sm:$0xf]
    %v140 = vld [vmem:[#allocation5 + $0x110] sm:$0xf]
    %v141 = vld [vmem:[#allocation5 + $0x114] sm:$0xf]
    %v142 = vld [vmem:[#allocation5 + $0x118] sm:$0xf]
    %v143 = vld [vmem:[#allocation5 + $0x11c] sm:$0xf]
    %v144 = vld [vmem:[#allocation5 + $0x120] sm:$0xf]
    %v145 = vld [vmem:[#allocation5 + $0x124] sm:$0xf]
    %v146 = vld [vmem:[#allocation5 + $0x128] sm:$0xf]
    %v147 = vld [vmem:[#allocation5 + $0x12c] sm:$0xf]
    %v148 = vld [vmem:[#allocation5 + $0x130] sm:$0xf]
    %v149 = vld [vmem:[#allocation5 + $0x134] sm:$0xf]
    %v150 = vld [vmem:[#allocation5 + $0x138] sm:$0xf]
    %v151 = vld [vmem:[#allocation5 + $0x13c] sm:$0xf]
    %v152 = vld [vmem:[#allocation5 + $0x140] sm:$0xf]
    %v153 = vld [vmem:[#allocation5 + $0x144] sm:$0xf]
    %v154 = vld [vmem:[#allocation5 + $0x148] sm:$0xf]
    %v155 = vld [vmem:[#allocation5 + $0x14c] sm:$0xf]
    %v156 = vld [vmem:[#allocation5 + $0x150] sm:$0xf]
    %v157 = vld [vmem:[#allocation5 + $0x154] sm:$0xf]
    %v158 = vld [vmem:[#allocation5 + $0x158] sm:$0xf]
    %v159 = vld [vmem:[#allocation5 + $0x15c] sm:$0xf]
    %v160 = vld [vmem:[#allocation5 + $0x160] sm:$0xf]
    %v161 = vld [vmem:[#allocation5 + $0x164] sm:$0xf]
    %v162 = vld [vmem:[#allocation5 + $0x168] sm:$0xf]
    %v163 = vld [vmem:[#allocation5 + $0x16c] sm:$0xf]
    %v164 = vld [vmem:[#allocation5 + $0x170] sm:$0xf]
    %v165 = vld [vmem:[#allocation5 + $0x174] sm:$0xf]
    %v166 = vld [vmem:[#allocation7] sm:$0xff]
    %v167 = vld [vmem:[#allocation7 + $0x8] sm:$0xff]
    %v168 = vld [vmem:[#allocation7 + $0x10] sm:$0xff]
    %v169 = vld [vmem:[#allocation7 + $0x18] sm:$0xff]
    %v170 = vld [vmem:[#allocation7 + $0x20] sm:$0xff]
    %v171 = vld [vmem:[#allocation7 + $0x28] sm:$0xff]
    %v172 = vld [vmem:[#allocation7 + $0x30] sm:$0xff]
    %v173 = vld [vmem:[#allocation7 + $0x38] sm:$0xff]
    %v174 = vld [vmem:[#allocation7 + $0x40] sm:$0xff]
    %v175 = vld [vmem:[#allocation7 + $0x48] sm:$0xff]
    %v176 = vld [vmem:[#allocation7 + $0x50] sm:$0xff]
    %v177 = vld [vmem:[#allocation7 + $0x58] sm:$0xff]
    %v178 = vld [vmem:[#allocation7 + $0x60] sm:$0xff]
    %v179 = vld [vmem:[#allocation7 + $0x68] sm:$0xff]
    %v180 = vld [vmem:[#allocation7 + $0x70] sm:$0xff]
    %v181 = vld [vmem:[#allocation7 + $0x78] sm:$0xff]
    %v182 = vld [vmem:[#allocation7 + $0x80] sm:$0xff]
    %v183 = vld [vmem:[#allocation7 + $0x88] sm:$0xff]
    %v184 = vld [vmem:[#allocation7 + $0x90] sm:$0xff]
    %v185 = vld [vmem:[#allocation7 + $0x98] sm:$0xff]
    %v186 = vld [vmem:[#allocation7 + $0xa0] sm:$0xff]
    %v187 = vld [vmem:[#allocation7 + $0xa8] sm:$0xff]
    %v188 = vld [vmem:[#allocation7 + $0xb0] sm:$0xff]
    %v189 = vld [vmem:[#allocation7 + $0xb8] sm:$0xff]
    %v190 = vld [vmem:[#allocation7 + $0xc0] sm:$0xff]
    %v191 = vld [vmem:[#allocation7 + $0xc8] sm:$0xff]
    %v192 = vld [vmem:[#allocation7 + $0xd0] sm:$0xff]
    %v193 = vld [vmem:[#allocation7 + $0xd8] sm:$0xff]
    %v194 = vld [vmem:[#allocation7 + $0xe0] sm:$0xff]
    %v195 = vld [vmem:[#allocation7 + $0xe8] sm:$0xff]
    %v196 = vld [vmem:[#allocation7 + $0xf0] sm:$0xff]
    %v197 = vld [vmem:[#allocation7 + $0xf8] sm:$0xff]
    %v198 = vld [vmem:[#allocation7 + $0x100] sm:$0xff]
    %v199 = vld [vmem:[#allocation7 + $0x108] sm:$0xff]
    %v200 = vld [vmem:[#allocation7 + $0x110] sm:$0xff]
    %v201 = vld [vmem:[#allocation7 + $0x118] sm:$0xff]
    %v202 = vld [vmem:[#allocation7 + $0x120] sm:$0xff]
    %v203 = vld [vmem:[#allocation7 + $0x128] sm:$0xff]
    %v204 = vld [vmem:[#allocation7 + $0x130] sm:$0xff]
    %v205 = vld [vmem:[#allocation7 + $0x138] sm:$0xff]
    %v206 = vld [vmem:[#allocation8] ss:$0 sm:$0xff]
    %v207 = vld [vmem:[#allocation8 + $0x1] ss:$0 sm:$0xff]
    %v208 = vld [vmem:[#allocation8 + $0x2] ss:$0 sm:$0xff]
    %v209 = vld [vmem:[#allocation8 + $0x3] ss:$0 sm:$0xff]
    %s210 = scalar_lea.vmem [#allocation8], 4
    %v211 = vld [vmem:[%s210] ss:$8 sm:$0xf]
    %v212 = vld [vmem:[#allocation8 + $0x5] ss:$0 sm:$0xff]
    %v213 = vld [vmem:[#allocation2] sm:$0xf]
    %v214 = vld [vmem:[#allocation2 + $0x4] sm:$0xf]
    %v217 = vunpack.c.l.b16 %v213
    %v218 = vunpack.c.l.b16 %v214
    %v219 = vpack.c.b16 %v218, %v217
    %v222 = vunpack.c.l.b16 %v72
    %v223 = vunpack.c.l.b16 %v73
    %v224 = vpack.c.b16 %v223, %v222
    %vm226 = vcmask 130048
    %v228 = vsel %vm226, %v219, 0
    %230 = vmatprep.subr.bf16.mxu0 0
    %231 = vmatpush1.bf16.msra.mxu0 0
    %232 = vmatprep.subr.bf16.mxu0 0
    %233 = vmatpush1.bf16.msra.mxu0 0
    %234 = vmatprep.subr.bf16.mxu0 0
    %235 = vmatpush1.bf16.msra.mxu0 0
    %236 = vmatprep.subr.bf16.mxu0 0
    %237 = vmatpush1.bf16.msra.mxu0 0
    %238 = vmatprep.subr.bf16.mxu0 0
    %239 = vmatpush1.bf16.msra.mxu0 0
    %240 = vmatprep.subr.bf16.mxu0 0
    %241 = vmatpush1.bf16.msra.mxu0 0
    %242 = vmatprep.subr.bf16.mxu0 0
    %243 = vmatpush1.bf16.msra.mxu0 0
    %244 = vmatprep.subr.bf16.mxu0 0
    %245 = vmatpush1.bf16.msra.mxu0 %v224
    %246 = vmatprep.subr.bf16.mxu0 0
    %247 = vmatpush2.bf16.msra.mxu0 0
    %248 = vmatprep.subr.bf16.mxu0 0
    %249 = vmatpush2.bf16.msra.mxu0 0
    %250 = vmatprep.subr.bf16.mxu0 0
    %251 = vmatpush2.bf16.msra.mxu0 0
    %252 = vmatprep.subr.bf16.mxu0 0
    %253 = vmatpush2.bf16.msra.mxu0 0
    %254 = vmatprep.subr.bf16.mxu0 0
    %255 = vmatpush2.bf16.msra.mxu0 0
    %256 = vmatprep.subr.bf16.mxu0 0
    %257 = vmatpush2.bf16.msra.mxu0 0
    %258 = vmatprep.subr.bf16.mxu0 0
    %259 = vmatpush2.bf16.msra.mxu0 0
    %260 = vmatprep.subr.bf16.mxu0 0
    %261 = vmatpush2.bf16.msra.mxu0 0
    %262 = vmatprep.mubr.bf16.mxu0 0
    %263 = vmatmul.mubr.bf16.gmra.mxu0 %v228
    %v264 = vpop.f32.mrf.mxu0
    %v265 = vadd.f32 %v206, %v264
    %v266 = vpop.f32.mrf.mxu0
    %v267 = vpop.f32.mrf.mxu0
    %v268 = vadd.f32 %v206, %v267
    %v269 = vpop.f32.mrf.mxu0
    %270 = vdwg.mxu0
    %v271 = vlaneseq
    %v272 = vshrl.u32 %v271, 7
    %v273 = vadd.s32 %v272, 8
    %vm274 = vcmp.ne.s32.totalorder %v272, 0
    %vm275 = vcmp.ne.s32.totalorder %v273, 0
    %v276 = vsel %vm274, 1, 0
    %v277 = vsel %vm275, 1, 0
    %v278 = vcvt.s32.f32 %v276
    %v279 = vcvt.s32.f32 %v277
    %vm280 = vcmp.ne.s32.totalorder %v272, 15
    %vm281 = vcmp.ne.s32.totalorder %v273, 15
    %v282 = vsel %vm280, 1, 0
    %v283 = vsel %vm281, 1, 0
    %v284 = vcvt.s32.f32 %v282
    %v285 = vcvt.s32.f32 %v283
    %v286 = vrot.slane %v265, 7
    %v287 = vrot.slane %v268, 7
    %vm288 = vcmp.lt.s32.totalorder %v272, 1
    %v289 = vsel %vm288, %v286, %v287
    %v290 = vsel %vm288, %v287, %v286
    %v291 = vmul.f32 %v290, %v278
    %v292 = vmul.f32 %v289, %v279
    %v293 = vrot.slane %v265, 1
    %v294 = vrot.slane %v268, 1
    %vm295 = vcmp.lt.s32.totalorder %v272, 7
    %v296 = vsel %vm295, %v293, %v294
    %v297 = vsel %vm295, %v294, %v293
    %v298 = vmul.f32 %v296, %v284
    %v299 = vmul.f32 %v297, %v285
    %v300 = vpack.c.bf16 %v292, %v291
    %v301 = vpack.c.bf16 %v268, %v265
    %v302 = vpack.c.bf16 %v299, %v298
    %304 = vrot.lane.b32.xlu0 %v301, 32
    %v305 = vpop.permute.xlu0 %304
    %307 = vrot.lane.b32.xlu0 %v302, 64
    %v308 = vpop.permute.xlu0 %307
    %vm309 = vcmask 261120
    %v312 = vsel %vm309, %v300, %v305
    %vm313 = vcmask 523264
    %v315 = vsel %vm313, %v312, %v308
    %v328 = vunpack.c.l.b16 %v74
    %v329 = vunpack.c.l.b16 %v75
    %v330 = vunpack.c.l.b16 %v76
    %v331 = vunpack.c.l.b16 %v77
    %v332 = vunpack.c.l.b16 %v78
    %v333 = vunpack.c.l.b16 %v79
    %v334 = vunpack.c.l.b16 %v80
    %v335 = vunpack.c.l.b16 %v81
    %v336 = vunpack.c.l.b16 %v82
    %v337 = vunpack.c.l.b16 %v83
    %v338 = vunpack.c.l.b16 %v84
    %v339 = vunpack.c.l.b16 %v85
    %v340 = vpack.c.b16 %v329, %v328
    %v341 = vpack.c.b16 %v331, %v330
    %v342 = vpack.c.b16 %v333, %v332
    %v343 = vpack.c.b16 %v335, %v334
    %v344 = vpack.c.b16 %v337, %v336
    %v345 = vpack.c.b16 %v339, %v338
    %vm352 = vcmask 785408
    %v353 = vsel %vm352, %v315, 0
    %355 = vmatprep.subr.bf16.mxu0 0
    %356 = vmatpush1.bf16.msra.mxu0 0
    %357 = vmatprep.subr.bf16.mxu0 0
    %358 = vmatpush1.bf16.msra.mxu0 0
    %359 = vmatprep.subr.bf16.mxu0 0
    %360 = vmatpush1.bf16.msra.mxu0 %v345
    %361 = vmatprep.subr.bf16.mxu0 0
    %362 = vmatpush1.bf16.msra.mxu0 %v344
    %363 = vmatprep.subr.bf16.mxu0 0
    %364 = vmatpush1.bf16.msra.mxu0 %v343
    %365 = vmatprep.subr.bf16.mxu0 0
    %366 = vmatpush1.bf16.msra.mxu0 %v342
    %367 = vmatprep.subr.bf16.mxu0 0
    %368 = vmatpush1.bf16.msra.mxu0 %v341
    %369 = vmatprep.subr.bf16.mxu0 0
    %370 = vmatpush1.bf16.msra.mxu0 %v340
    %371 = vmatprep.subr.bf16.mxu0 0
    %372 = vmatpush2.bf16.msra.mxu0 0
    %373 = vmatprep.subr.bf16.mxu0 0
    %374 = vmatpush2.bf16.msra.mxu0 0
    %375 = vmatprep.subr.bf16.mxu0 0
    %376 = vmatpush2.bf16.msra.mxu0 0
    %377 = vmatprep.subr.bf16.mxu0 0
    %378 = vmatpush2.bf16.msra.mxu0 0
    %379 = vmatprep.subr.bf16.mxu0 0
    %380 = vmatpush2.bf16.msra.mxu0 0
    %381 = vmatprep.subr.bf16.mxu0 0
    %382 = vmatpush2.bf16.msra.mxu0 0
    %383 = vmatprep.subr.bf16.mxu0 0
    %384 = vmatpush2.bf16.msra.mxu0 0
    %385 = vmatprep.subr.bf16.mxu0 0
    %386 = vmatpush2.bf16.msra.mxu0 0
    %387 = vmatprep.mubr.bf16.mxu0 0
    %388 = vmatmul.mubr.bf16.gmra.mxu0 %v353
    %v389 = vpop.f32.mrf.mxu0
    %v390 = vadd.f32 %v207, %v389
    %v391 = vpop.f32.mrf.mxu0
    %v392 = vpop.f32.mrf.mxu0
    %v393 = vadd.f32 %v207, %v392
    %v394 = vpop.f32.mrf.mxu0
    %395 = vdwg.mxu0
    %v396 = vmax.f32 %v390, 0.0
    %v397 = vmax.f32 %v393, 0.0
    %v398 = vrot.slane %v396, 7
    %v399 = vrot.slane %v397, 7
    %v400 = vsel %vm288, %v398, %v399
    %v401 = vsel %vm288, %v399, %v398
    %v402 = vmul.f32 %v401, %v278
    %v403 = vmul.f32 %v400, %v279
    %v404 = vrot.slane %v396, 1
    %v405 = vrot.slane %v397, 1
    %v406 = vsel %vm295, %v404, %v405
    %v407 = vsel %vm295, %v405, %v404
    %v408 = vmul.f32 %v406, %v284
    %v409 = vmul.f32 %v407, %v285
    %v410 = vpack.c.bf16 %v403, %v402
    %v411 = vpack.c.bf16 %v397, %v396
    %v412 = vpack.c.bf16 %v409, %v408
    %v461 = vunpack.c.l.b16 %v86
    %v462 = vunpack.c.l.b16 %v87
    %v463 = vunpack.c.l.b16 %v88
    %v464 = vunpack.c.l.b16 %v89
    %v465 = vunpack.c.l.b16 %v90
    %v466 = vunpack.c.l.b16 %v91
    %v467 = vunpack.c.l.b16 %v92
    %v468 = vunpack.c.l.b16 %v93
    %v469 = vunpack.c.l.b16 %v94
    %v470 = vunpack.c.l.b16 %v95
    %v471 = vunpack.c.l.b16 %v96
    %v472 = vunpack.c.l.b16 %v97
    %v473 = vunpack.c.l.b16 %v98
    %v474 = vunpack.c.l.b16 %v99
    %v475 = vunpack.c.l.b16 %v100
    %v476 = vunpack.c.l.b16 %v101
    %v477 = vunpack.c.l.b16 %v102
    %v478 = vunpack.c.l.b16 %v103
    %v479 = vunpack.c.l.b16 %v104
    %v480 = vunpack.c.l.b16 %v105
    %v481 = vunpack.c.l.b16 %v106
    %v482 = vunpack.c.l.b16 %v107
    %v483 = vunpack.c.l.b16 %v108
    %v484 = vunpack.c.l.b16 %v109
    %v485 = vunpack.c.l.b16 %v110
    %v486 = vunpack.c.l.b16 %v111
    %v487 = vunpack.c.l.b16 %v112
    %v488 = vunpack.c.l.b16 %v113
    %v489 = vunpack.c.l.b16 %v114
    %v490 = vunpack.c.l.b16 %v115
    %v491 = vunpack.c.l.b16 %v116
    %v492 = vunpack.c.l.b16 %v117
    %v493 = vunpack.c.l.b16 %v118
    %v494 = vunpack.c.l.b16 %v119
    %v495 = vunpack.c.l.b16 %v120
    %v496 = vunpack.c.l.b16 %v121
    %v497 = vunpack.c.l.b16 %v122
    %v498 = vunpack.c.l.b16 %v123
    %v499 = vunpack.c.l.b16 %v124
    %v500 = vunpack.c.l.b16 %v125
    %v501 = vunpack.c.l.b16 %v126
    %v502 = vunpack.c.l.b16 %v127
    %v503 = vunpack.c.l.b16 %v128
    %v504 = vunpack.c.l.b16 %v129
    %v505 = vunpack.c.l.b16 %v130
    %v506 = vunpack.c.l.b16 %v131
    %v507 = vunpack.c.l.b16 %v132
    %v508 = vunpack.c.l.b16 %v133
    %v509 = vpack.c.b16 %v462, %v461
    %v510 = vpack.c.b16 %v464, %v463
    %v511 = vpack.c.b16 %v466, %v465
    %v512 = vpack.c.b16 %v468, %v467
    %v513 = vpack.c.b16 %v470, %v469
    %v514 = vpack.c.b16 %v472, %v471
    %v515 = vpack.c.b16 %v474, %v473
    %v516 = vpack.c.b16 %v476, %v475
    %v517 = vpack.c.b16 %v478, %v477
    %v518 = vpack.c.b16 %v480, %v479
    %v519 = vpack.c.b16 %v482, %v481
    %v520 = vpack.c.b16 %v484, %v483
    %v521 = vpack.c.b16 %v486, %v485
    %v522 = vpack.c.b16 %v488, %v487
    %v523 = vpack.c.b16 %v490, %v489
    %v524 = vpack.c.b16 %v492, %v491
    %v525 = vpack.c.b16 %v494, %v493
    %v526 = vpack.c.b16 %v496, %v495
    %v527 = vpack.c.b16 %v498, %v497
    %v528 = vpack.c.b16 %v500, %v499
    %v529 = vpack.c.b16 %v502, %v501
    %v530 = vpack.c.b16 %v504, %v503
    %v531 = vpack.c.b16 %v506, %v505
    %v532 = vpack.c.b16 %v508, %v507
    %557 = vmatprep.subr.bf16.mxu0 0
    %558 = vmatpush1.bf16.msra.mxu0 %v516
    %559 = vmatprep.subr.bf16.mxu0 0
    %560 = vmatpush1.bf16.msra.mxu0 %v515
    %561 = vmatprep.subr.bf16.mxu0 0
    %562 = vmatpush1.bf16.msra.mxu0 %v514
    %563 = vmatprep.subr.bf16.mxu0 0
    %564 = vmatpush1.bf16.msra.mxu0 %v513
    %565 = vmatprep.subr.bf16.mxu0 0
    %566 = vmatpush1.bf16.msra.mxu0 %v512
    %567 = vmatprep.subr.bf16.mxu0 0
    %568 = vmatpush1.bf16.msra.mxu0 %v511
    %569 = vmatprep.subr.bf16.mxu0 0
    %570 = vmatpush1.bf16.msra.mxu0 %v510
    %571 = vmatprep.subr.bf16.mxu0 0
    %572 = vmatpush1.bf16.msra.mxu0 %v509
    %573 = vmatprep.subr.bf16.mxu0 0
    %574 = vmatpush2.bf16.msra.mxu0 %v524
    %575 = vmatprep.subr.bf16.mxu0 0
    %576 = vmatpush2.bf16.msra.mxu0 %v523
    %577 = vmatprep.subr.bf16.mxu0 0
    %578 = vmatpush2.bf16.msra.mxu0 %v522
    %579 = vmatprep.subr.bf16.mxu0 0
    %580 = vmatpush2.bf16.msra.mxu0 %v521
    %581 = vmatprep.subr.bf16.mxu0 0
    %582 = vmatpush2.bf16.msra.mxu0 %v520
    %583 = vmatprep.subr.bf16.mxu0 0
    %584 = vmatpush2.bf16.msra.mxu0 %v519
    %585 = vmatprep.subr.bf16.mxu0 0
    %586 = vmatpush2.bf16.msra.mxu0 %v518
    %587 = vmatprep.subr.bf16.mxu0 0
    %588 = vmatpush2.bf16.msra.mxu0 %v517
    %589 = vmatprep.mubr.bf16.mxu0 %v411
    %590 = vmatmul.mubr.bf16.gmra.mxu0 %v410
    %v591 = vpop.f32.mrf.mxu0
    %v592 = vadd.f32 %v208, %v591
    %v593 = vpop.f32.mrf.mxu0
    %v594 = vpop.f32.mrf.mxu0
    %v595 = vadd.f32 %v208, %v594
    %v596 = vpop.f32.mrf.mxu0
    %597 = vdwg.mxu0
    %598 = vmatprep.subr.bf16.mxu0 0
    %599 = vmatpush1.bf16.msra.mxu0 %v532
    %600 = vmatprep.subr.bf16.mxu0 0
    %601 = vmatpush1.bf16.msra.mxu0 %v531
    %602 = vmatprep.subr.bf16.mxu0 0
    %603 = vmatpush1.bf16.msra.mxu0 %v530
    %604 = vmatprep.subr.bf16.mxu0 0
    %605 = vmatpush1.bf16.msra.mxu0 %v529
    %606 = vmatprep.subr.bf16.mxu0 0
    %607 = vmatpush1.bf16.msra.mxu0 %v528
    %608 = vmatprep.subr.bf16.mxu0 0
    %609 = vmatpush1.bf16.msra.mxu0 %v527
    %610 = vmatprep.subr.bf16.mxu0 0
    %611 = vmatpush1.bf16.msra.mxu0 %v526
    %612 = vmatprep.subr.bf16.mxu0 0
    %613 = vmatpush1.bf16.msra.mxu0 %v525
    %614 = vmatprep.subr.bf16.mxu0 0
    %615 = vmatpush2.bf16.msra.mxu0 0
    %616 = vmatprep.subr.bf16.mxu0 0
    %617 = vmatpush2.bf16.msra.mxu0 0
    %618 = vmatprep.subr.bf16.mxu0 0
    %619 = vmatpush2.bf16.msra.mxu0 0
    %620 = vmatprep.subr.bf16.mxu0 0
    %621 = vmatpush2.bf16.msra.mxu0 0
    %622 = vmatprep.subr.bf16.mxu0 0
    %623 = vmatpush2.bf16.msra.mxu0 0
    %624 = vmatprep.subr.bf16.mxu0 0
    %625 = vmatpush2.bf16.msra.mxu0 0
    %626 = vmatprep.subr.bf16.mxu0 0
    %627 = vmatpush2.bf16.msra.mxu0 0
    %628 = vmatprep.subr.bf16.mxu0 0
    %629 = vmatpush2.bf16.msra.mxu0 0
    %630 = vmatprep.mubr.bf16.mxu0 0
    %631 = vmatmul.mubr.bf16.gmra.mxu0 %v412
    %v632 = vpop.f32.mrf.mxu0
    %v633 = vadd.f32 %v592, %v632
    %v634 = vpop.f32.mrf.mxu0
    %v635 = vpop.f32.mrf.mxu0
    %v636 = vadd.f32 %v595, %v635
    %v637 = vpop.f32.mrf.mxu0
    %638 = vdwg.mxu0
    %v639 = vmax.f32 %v633, 0.0
    %v640 = vmax.f32 %v636, 0.0
    %v641 = vpack.c.bf16 %v640, %v639
    %v658 = vunpack.c.l.b16 %v134
    %v659 = vunpack.c.l.b16 %v135
    %v660 = vunpack.c.l.b16 %v136
    %v661 = vunpack.c.l.b16 %v137
    %v662 = vunpack.c.l.b16 %v138
    %v663 = vunpack.c.l.b16 %v139
    %v664 = vunpack.c.l.b16 %v140
    %v665 = vunpack.c.l.b16 %v141
    %v666 = vunpack.c.l.b16 %v142
    %v667 = vunpack.c.l.b16 %v143
    %v668 = vunpack.c.l.b16 %v144
    %v669 = vunpack.c.l.b16 %v145
    %v670 = vunpack.c.l.b16 %v146
    %v671 = vunpack.c.l.b16 %v147
    %v672 = vunpack.c.l.b16 %v148
    %v673 = vunpack.c.l.b16 %v149
    %v674 = vpack.c.b16 %v659, %v658
    %v675 = vpack.c.b16 %v661, %v660
    %v676 = vpack.c.b16 %v663, %v662
    %v677 = vpack.c.b16 %v665, %v664
    %v678 = vpack.c.b16 %v667, %v666
    %v679 = vpack.c.b16 %v669, %v668
    %v680 = vpack.c.b16 %v671, %v670
    %v681 = vpack.c.b16 %v673, %v672
    %690 = vmatprep.subr.bf16.mxu0 0
    %691 = vmatpush1.bf16.msra.mxu0 %v681
    %692 = vmatprep.subr.bf16.mxu0 0
    %693 = vmatpush1.bf16.msra.mxu0 %v680
    %694 = vmatprep.subr.bf16.mxu0 0
    %695 = vmatpush1.bf16.msra.mxu0 %v679
    %696 = vmatprep.subr.bf16.mxu0 0
    %697 = vmatpush1.bf16.msra.mxu0 %v678
    %698 = vmatprep.subr.bf16.mxu0 0
    %699 = vmatpush1.bf16.msra.mxu0 %v677
    %700 = vmatprep.subr.bf16.mxu0 0
    %701 = vmatpush1.bf16.msra.mxu0 %v676
    %702 = vmatprep.subr.bf16.mxu0 0
    %703 = vmatpush1.bf16.msra.mxu0 %v675
    %704 = vmatprep.subr.bf16.mxu0 0
    %705 = vmatpush1.bf16.msra.mxu0 %v674
    %706 = vmatprep.subr.bf16.mxu0 0
    %707 = vmatpush2.bf16.msra.mxu0 0
    %708 = vmatprep.subr.bf16.mxu0 0
    %709 = vmatpush2.bf16.msra.mxu0 0
    %710 = vmatprep.subr.bf16.mxu0 0
    %711 = vmatpush2.bf16.msra.mxu0 0
    %712 = vmatprep.subr.bf16.mxu0 0
    %713 = vmatpush2.bf16.msra.mxu0 0
    %714 = vmatprep.subr.bf16.mxu0 0
    %715 = vmatpush2.bf16.msra.mxu0 0
    %716 = vmatprep.subr.bf16.mxu0 0
    %717 = vmatpush2.bf16.msra.mxu0 0
    %718 = vmatprep.subr.bf16.mxu0 0
    %719 = vmatpush2.bf16.msra.mxu0 0
    %720 = vmatprep.subr.bf16.mxu0 0
    %721 = vmatpush2.bf16.msra.mxu0 0
    %722 = vmatprep.mubr.bf16.mxu0 0
    %723 = vmatmul.mubr.bf16.gmra.mxu0 %v641
    %v724 = vpop.f32.mrf.mxu0
    %v725 = vadd.f32 %v209, %v724
    %v726 = vpop.f32.mrf.mxu0
    %v727 = vpop.f32.mrf.mxu0
    %v728 = vadd.f32 %v209, %v727
    %v729 = vpop.f32.mrf.mxu0
    %730 = vdwg.mxu0
    %731 = vst [vmem:[#allocation10] sm:$0xff] %v725
    %732 = vst [vmem:[#allocation10 + $0x10] sm:$0xff] %v728
    %v734 = vlaneseq
    %v735 = vshrl.u32 %v734, 7
    %v736 = vsub.s32 0, %v735
    %v737 = vrot.slane %v211, %v736
    %v738 = vlaneseq
    %v739 = vshrl.u32 %v738, 7
    %v740 = vsub.s32 1, %v739
    %v741 = vrot.slane %v211, %v740
    %v742 = vlaneseq
    %v743 = vshrl.u32 %v742, 7
    %v744 = vsub.s32 2, %v743
    %v745 = vrot.slane %v211, %v744
    %v746 = vlaneseq
    %v747 = vshrl.u32 %v746, 7
    %v748 = vsub.s32 3, %v747
    %v749 = vrot.slane %v211, %v748
    %v762 = vunpack.c.l.b16 %v166
    %v763 = vunpack.c.h.b16 %v166
    %v764 = vunpack.c.l.b16 %v167
    %v765 = vunpack.c.h.b16 %v167
    %v766 = vunpack.c.l.b16 %v168
    %v767 = vunpack.c.h.b16 %v168
    %v768 = vunpack.c.l.b16 %v169
    %v769 = vunpack.c.h.b16 %v169
    %v770 = vunpack.c.l.b16 %v170
    %v771 = vunpack.c.h.b16 %v170
    %v772 = vunpack.c.l.b16 %v171
    %v773 = vunpack.c.h.b16 %v171
    %v774 = vunpack.c.l.b16 %v172
    %v775 = vunpack.c.h.b16 %v172
    %v776 = vunpack.c.l.b16 %v173
    %v777 = vunpack.c.h.b16 %v173
    %v778 = vpack.c.b16 %v766, %v762
    %v779 = vpack.c.b16 %v767, %v763
    %v780 = vpack.c.b16 %v768, %v764
    %v781 = vpack.c.b16 %v769, %v765
    %v782 = vpack.c.b16 %v774, %v770
    %v783 = vpack.c.b16 %v775, %v771
    %v784 = vpack.c.b16 %v776, %v772
    %v785 = vpack.c.b16 %v777, %v773
    %v795 = vsel %vm309, %v301, 0
    %797 = vmatprep.subr.bf16.mxu0 0
    %798 = vmatpush1.bf16.msra.mxu0 0
    %799 = vmatprep.subr.bf16.mxu0 0
    %800 = vmatpush1.bf16.msra.mxu0 0
    %801 = vmatprep.subr.bf16.mxu0 0
    %802 = vmatpush1.bf16.msra.mxu0 0
    %803 = vmatprep.subr.bf16.mxu0 0
    %804 = vmatpush1.bf16.msra.mxu0 0
    %805 = vmatprep.subr.bf16.mxu0 0
    %806 = vmatpush1.bf16.msra.mxu0 0
    %807 = vmatprep.subr.bf16.mxu0 0
    %808 = vmatpush1.bf16.msra.mxu0 0
    %809 = vmatprep.subr.bf16.mxu0 %v783
    %810 = vmatpush1.bf16.msra.mxu0 %v782
    %811 = vmatprep.subr.bf16.mxu0 %v779
    %812 = vmatpush1.bf16.msra.mxu0 %v778
    %813 = vmatprep.subr.bf16.mxu0 0
    %814 = vmatpush2.bf16.msra.mxu0 0
    %815 = vmatprep.subr.bf16.mxu0 0
    %816 = vmatpush2.bf16.msra.mxu0 0
    %817 = vmatprep.subr.bf16.mxu0 0
    %818 = vmatpush2.bf16.msra.mxu0 0
    %819 = vmatprep.subr.bf16.mxu0 0
    %820 = vmatpush2.bf16.msra.mxu0 0
    %821 = vmatprep.subr.bf16.mxu0 0
    %822 = vmatpush2.bf16.msra.mxu0 0
    %823 = vmatprep.subr.bf16.mxu0 0
    %824 = vmatpush2.bf16.msra.mxu0 0
    %825 = vmatprep.subr.bf16.mxu0 0
    %826 = vmatpush2.bf16.msra.mxu0 0
    %827 = vmatprep.subr.bf16.mxu0 0
    %828 = vmatpush2.bf16.msra.mxu0 0
    %829 = vmatprep.mubr.bf16.mxu0 0
    %830 = vmatmul.mubr.bf16.gmra.mxu0 %v795
    %v831 = vpop.f32.mrf.mxu0
    %v832 = vadd.f32 %v737, %v831
    %v833 = vpop.f32.mrf.mxu0
    %v834 = vadd.f32 %v741, %v833
    %v835 = vpop.f32.mrf.mxu0
    %v836 = vadd.f32 %v737, %v835
    %v837 = vpop.f32.mrf.mxu0
    %v838 = vadd.f32 %v741, %v837
    %839 = vdwg.mxu0
    %840 = vmatprep.subr.bf16.mxu0 0
    %841 = vmatpush1.bf16.msra.mxu0 0
    %842 = vmatprep.subr.bf16.mxu0 0
    %843 = vmatpush1.bf16.msra.mxu0 0
    %844 = vmatprep.subr.bf16.mxu0 0
    %845 = vmatpush1.bf16.msra.mxu0 0
    %846 = vmatprep.subr.bf16.mxu0 0
    %847 = vmatpush1.bf16.msra.mxu0 0
    %848 = vmatprep.subr.bf16.mxu0 0
    %849 = vmatpush1.bf16.msra.mxu0 0
    %850 = vmatprep.subr.bf16.mxu0 0
    %851 = vmatpush1.bf16.msra.mxu0 0
    %852 = vmatprep.subr.bf16.mxu0 %v785
    %853 = vmatpush1.bf16.msra.mxu0 %v784
    %854 = vmatprep.subr.bf16.mxu0 %v781
    %855 = vmatpush1.bf16.msra.mxu0 %v780
    %856 = vmatprep.subr.bf16.mxu0 0
    %857 = vmatpush2.bf16.msra.mxu0 0
    %858 = vmatprep.subr.bf16.mxu0 0
    %859 = vmatpush2.bf16.msra.mxu0 0
    %860 = vmatprep.subr.bf16.mxu0 0
    %861 = vmatpush2.bf16.msra.mxu0 0
    %862 = vmatprep.subr.bf16.mxu0 0
    %863 = vmatpush2.bf16.msra.mxu0 0
    %864 = vmatprep.subr.bf16.mxu0 0
    %865 = vmatpush2.bf16.msra.mxu0 0
    %866 = vmatprep.subr.bf16.mxu0 0
    %867 = vmatpush2.bf16.msra.mxu0 0
    %868 = vmatprep.subr.bf16.mxu0 0
    %869 = vmatpush2.bf16.msra.mxu0 0
    %870 = vmatprep.subr.bf16.mxu0 0
    %871 = vmatpush2.bf16.msra.mxu0 0
    %872 = vmatprep.mubr.bf16.mxu0 0
    %873 = vmatmul.mubr.bf16.gmra.mxu0 %v795
    %v874 = vpop.f32.mrf.mxu0
    %v875 = vadd.f32 %v745, %v874
    %v876 = vpop.f32.mrf.mxu0
    %v877 = vadd.f32 %v749, %v876
    %v878 = vpop.f32.mrf.mxu0
    %v879 = vadd.f32 %v745, %v878
    %v880 = vpop.f32.mrf.mxu0
    %v881 = vadd.f32 %v749, %v880
    %882 = vdwg.mxu0
    %v915 = vunpack.c.l.b16 %v174
    %v916 = vunpack.c.h.b16 %v174
    %v917 = vunpack.c.l.b16 %v175
    %v918 = vunpack.c.h.b16 %v175
    %v919 = vunpack.c.l.b16 %v176
    %v920 = vunpack.c.h.b16 %v176
    %v921 = vunpack.c.l.b16 %v177
    %v922 = vunpack.c.h.b16 %v177
    %v923 = vunpack.c.l.b16 %v178
    %v924 = vunpack.c.h.b16 %v178
    %v925 = vunpack.c.l.b16 %v179
    %v926 = vunpack.c.h.b16 %v179
    %v927 = vunpack.c.l.b16 %v180
    %v928 = vunpack.c.h.b16 %v180
    %v929 = vunpack.c.l.b16 %v181
    %v930 = vunpack.c.h.b16 %v181
    %v931 = vunpack.c.l.b16 %v182
    %v932 = vunpack.c.h.b16 %v182
    %v933 = vunpack.c.l.b16 %v183
    %v934 = vunpack.c.h.b16 %v183
    %v935 = vunpack.c.l.b16 %v184
    %v936 = vunpack.c.h.b16 %v184
    %v937 = vunpack.c.l.b16 %v185
    %v938 = vunpack.c.h.b16 %v185
    %v939 = vunpack.c.l.b16 %v186
    %v940 = vunpack.c.h.b16 %v186
    %v941 = vunpack.c.l.b16 %v187
    %v942 = vunpack.c.h.b16 %v187
    %v943 = vunpack.c.l.b16 %v188
    %v944 = vunpack.c.h.b16 %v188
    %v945 = vunpack.c.l.b16 %v189
    %v946 = vunpack.c.h.b16 %v189
    %v947 = vunpack.c.l.b16 %v190
    %v948 = vunpack.c.h.b16 %v190
    %v949 = vunpack.c.l.b16 %v191
    %v950 = vunpack.c.h.b16 %v191
    %v951 = vunpack.c.l.b16 %v192
    %v952 = vunpack.c.h.b16 %v192
    %v953 = vunpack.c.l.b16 %v193
    %v954 = vunpack.c.h.b16 %v193
    %v955 = vunpack.c.l.b16 %v194
    %v956 = vunpack.c.h.b16 %v194
    %v957 = vunpack.c.l.b16 %v195
    %v958 = vunpack.c.h.b16 %v195
    %v959 = vunpack.c.l.b16 %v196
    %v960 = vunpack.c.h.b16 %v196
    %v961 = vunpack.c.l.b16 %v197
    %v962 = vunpack.c.h.b16 %v197
    %v963 = vunpack.c.l.b16 %v198
    %v964 = vunpack.c.h.b16 %v198
    %v965 = vunpack.c.l.b16 %v199
    %v966 = vunpack.c.h.b16 %v199
    %v967 = vunpack.c.l.b16 %v200
    %v968 = vunpack.c.h.b16 %v200
    %v969 = vunpack.c.l.b16 %v201
    %v970 = vunpack.c.h.b16 %v201
    %v971 = vunpack.c.l.b16 %v202
    %v972 = vunpack.c.h.b16 %v202
    %v973 = vunpack.c.l.b16 %v203
    %v974 = vunpack.c.h.b16 %v203
    %v975 = vunpack.c.l.b16 %v204
    %v976 = vunpack.c.h.b16 %v204
    %v977 = vunpack.c.l.b16 %v205
    %v978 = vunpack.c.h.b16 %v205
    %v979 = vpack.c.b16 %v919, %v915
    %v980 = vpack.c.b16 %v920, %v916
    %v981 = vpack.c.b16 %v921, %v917
    %v982 = vpack.c.b16 %v922, %v918
    %v983 = vpack.c.b16 %v927, %v923
    %v984 = vpack.c.b16 %v928, %v924
    %v985 = vpack.c.b16 %v929, %v925
    %v986 = vpack.c.b16 %v930, %v926
    %v987 = vpack.c.b16 %v935, %v931
    %v988 = vpack.c.b16 %v936, %v932
    %v989 = vpack.c.b16 %v937, %v933
    %v990 = vpack.c.b16 %v938, %v934
    %v991 = vpack.c.b16 %v943, %v939
    %v992 = vpack.c.b16 %v944, %v940
    %v993 = vpack.c.b16 %v945, %v941
    %v994 = vpack.c.b16 %v946, %v942
    %v995 = vpack.c.b16 %v951, %v947
    %v996 = vpack.c.b16 %v952, %v948
    %v997 = vpack.c.b16 %v953, %v949
    %v998 = vpack.c.b16 %v954, %v950
    %v999 = vpack.c.b16 %v959, %v955
    %v1000 = vpack.c.b16 %v960, %v956
    %v1001 = vpack.c.b16 %v961, %v957
    %v1002 = vpack.c.b16 %v962, %v958
    %v1003 = vpack.c.b16 %v967, %v963
    %v1004 = vpack.c.b16 %v968, %v964
    %v1005 = vpack.c.b16 %v969, %v965
    %v1006 = vpack.c.b16 %v970, %v966
    %v1007 = vpack.c.b16 %v975, %v971
    %v1008 = vpack.c.b16 %v976, %v972
    %v1009 = vpack.c.b16 %v977, %v973
    %v1010 = vpack.c.b16 %v978, %v974
    %1043 = vmatprep.subr.bf16.mxu0 %v1008
    %1044 = vmatpush1.bf16.msra.mxu0 %v1007
    %1045 = vmatprep.subr.bf16.mxu0 %v1004
    %1046 = vmatpush1.bf16.msra.mxu0 %v1003
    %1047 = vmatprep.subr.bf16.mxu0 %v1000
    %1048 = vmatpush1.bf16.msra.mxu0 %v999
    %1049 = vmatprep.subr.bf16.mxu0 %v996
    %1050 = vmatpush1.bf16.msra.mxu0 %v995
    %1051 = vmatprep.subr.bf16.mxu0 %v992
    %1052 = vmatpush1.bf16.msra.mxu0 %v991
    %1053 = vmatprep.subr.bf16.mxu0 %v988
    %1054 = vmatpush1.bf16.msra.mxu0 %v987
    %1055 = vmatprep.subr.bf16.mxu0 %v984
    %1056 = vmatpush1.bf16.msra.mxu0 %v983
    %1057 = vmatprep.subr.bf16.mxu0 %v980
    %1058 = vmatpush1.bf16.msra.mxu0 %v979
    %1059 = vmatprep.subr.bf16.mxu0 0
    %1060 = vmatpush2.bf16.msra.mxu0 0
    %1061 = vmatprep.subr.bf16.mxu0 0
    %1062 = vmatpush2.bf16.msra.mxu0 0
    %1063 = vmatprep.subr.bf16.mxu0 0
    %1064 = vmatpush2.bf16.msra.mxu0 0
    %1065 = vmatprep.subr.bf16.mxu0 0
    %1066 = vmatpush2.bf16.msra.mxu0 0
    %1067 = vmatprep.subr.bf16.mxu0 0
    %1068 = vmatpush2.bf16.msra.mxu0 0
    %1069 = vmatprep.subr.bf16.mxu0 0
    %1070 = vmatpush2.bf16.msra.mxu0 0
    %1071 = vmatprep.subr.bf16.mxu0 0
    %1072 = vmatpush2.bf16.msra.mxu0 0
    %1073 = vmatprep.subr.bf16.mxu0 0
    %1074 = vmatpush2.bf16.msra.mxu0 0
    %1075 = vmatprep.mubr.bf16.mxu0 0
    %1076 = vmatmul.mubr.bf16.gmra.mxu0 0
    %v1077 = vpop.f32.mrf.mxu0
    %v1078 = vadd.f32 0.0, %v1077
    %v1079 = vpop.f32.mrf.mxu0
    %v1080 = vadd.f32 0.0, %v1079
    %v1081 = vpop.f32.mrf.mxu0
    %v1082 = vpop.f32.mrf.mxu0
    %1083 = vdwg.mxu0
    %1084 = vmatprep.subr.bf16.mxu0 %v1010
    %1085 = vmatpush1.bf16.msra.mxu0 %v1009
    %1086 = vmatprep.subr.bf16.mxu0 %v1006
    %1087 = vmatpush1.bf16.msra.mxu0 %v1005
    %1088 = vmatprep.subr.bf16.mxu0 %v1002
    %1089 = vmatpush1.bf16.msra.mxu0 %v1001
    %1090 = vmatprep.subr.bf16.mxu0 %v998
    %1091 = vmatpush1.bf16.msra.mxu0 %v997
    %1092 = vmatprep.subr.bf16.mxu0 %v994
    %1093 = vmatpush1.bf16.msra.mxu0 %v993
    %1094 = vmatprep.subr.bf16.mxu0 %v990
    %1095 = vmatpush1.bf16.msra.mxu0 %v989
    %1096 = vmatprep.subr.bf16.mxu0 %v986
    %1097 = vmatpush1.bf16.msra.mxu0 %v985
    %1098 = vmatprep.subr.bf16.mxu0 %v982
    %1099 = vmatpush1.bf16.msra.mxu0 %v981
    %1100 = vmatprep.subr.bf16.mxu0 0
    %1101 = vmatpush2.bf16.msra.mxu0 0
    %1102 = vmatprep.subr.bf16.mxu0 0
    %1103 = vmatpush2.bf16.msra.mxu0 0
    %1104 = vmatprep.subr.bf16.mxu0 0
    %1105 = vmatpush2.bf16.msra.mxu0 0
    %1106 = vmatprep.subr.bf16.mxu0 0
    %1107 = vmatpush2.bf16.msra.mxu0 0
    %1108 = vmatprep.subr.bf16.mxu0 0
    %1109 = vmatpush2.bf16.msra.mxu0 0
    %1110 = vmatprep.subr.bf16.mxu0 0
    %1111 = vmatpush2.bf16.msra.mxu0 0
    %1112 = vmatprep.subr.bf16.mxu0 0
    %1113 = vmatpush2.bf16.msra.mxu0 0
    %1114 = vmatprep.subr.bf16.mxu0 0
    %1115 = vmatpush2.bf16.msra.mxu0 0
    %1116 = vmatprep.mubr.bf16.mxu0 0
    %1117 = vmatmul.mubr.bf16.gmra.mxu0 0
    %v1118 = vpop.f32.mrf.mxu0
    %v1119 = vadd.f32 0.0, %v1118
    %v1120 = vpop.f32.mrf.mxu0
    %v1121 = vadd.f32 0.0, %v1120
    %v1122 = vpop.f32.mrf.mxu0
    %v1123 = vpop.f32.mrf.mxu0
    %1124 = vdwg.mxu0
    %v1125 = vadd.f32 %v832, %v1078
    %v1126 = vadd.f32 %v834, %v1080
    %v1127 = vadd.f32 %v875, %v1119
    %v1128 = vadd.f32 %v877, %v1121
    %v1129 = vxor.u32 %v1125, 2147483648
    %v1130 = vxor.u32 %v1126, 2147483648
    %v1131 = vxor.u32 %v1127, 2147483648
    %v1132 = vmul.f32 %v1129, 1.442695
    %v1133 = vpow.pop %v1132
    %v1134 = vmul.f32 %v1130, 1.442695
    %v1135 = vpow.pop %v1134
    %v1136 = vmul.f32 %v1131, 1.442695
    %v1137 = vpow.pop %v1136
    %v1138 = vadd.f32 %v1133, 1.0
    %v1139 = vadd.f32 %v1135, 1.0
    %v1140 = vadd.f32 %v1137, 1.0
    %v1141 = vrcp.pop %v1138
    %v1142 = vmul.f32 1.0, %v1141
    %v1143 = vrcp.pop %v1139
    %v1144 = vmul.f32 1.0, %v1143
    %v1145 = vrcp.pop %v1140
    %v1146 = vmul.f32 1.0, %v1145
    %v1147 = vtanh.pop %v1128
    %v1148 = vmul.f32 %v1144, 0.0
    %v1149 = vmul.f32 %v1142, %v1147
    %v1150 = vadd.f32 %v1148, %v1149
    %v1151 = vtanh.pop %v1150
    %v1152 = vmul.f32 %v1146, %v1151
    %v1153 = vpack.c.bf16 %v1152, %v1152
    %1154 = vmatprep.subr.bf16.mxu0 %v1008
    %1155 = vmatpush1.bf16.msra.mxu0 %v1007
    %1156 = vmatprep.subr.bf16.mxu0 %v1004
    %1157 = vmatpush1.bf16.msra.mxu0 %v1003
    %1158 = vmatprep.subr.bf16.mxu0 %v1000
    %1159 = vmatpush1.bf16.msra.mxu0 %v999
    %1160 = vmatprep.subr.bf16.mxu0 %v996
    %1161 = vmatpush1.bf16.msra.mxu0 %v995
    %1162 = vmatprep.subr.bf16.mxu0 %v992
    %1163 = vmatpush1.bf16.msra.mxu0 %v991
    %1164 = vmatprep.subr.bf16.mxu0 %v988
    %1165 = vmatpush1.bf16.msra.mxu0 %v987
    %1166 = vmatprep.subr.bf16.mxu0 %v984
    %1167 = vmatpush1.bf16.msra.mxu0 %v983
    %1168 = vmatprep.subr.bf16.mxu0 %v980
    %1169 = vmatpush1.bf16.msra.mxu0 %v979
    %1170 = vmatprep.subr.bf16.mxu0 0
    %1171 = vmatpush2.bf16.msra.mxu0 0
    %1172 = vmatprep.subr.bf16.mxu0 0
    %1173 = vmatpush2.bf16.msra.mxu0 0
    %1174 = vmatprep.subr.bf16.mxu0 0
    %1175 = vmatpush2.bf16.msra.mxu0 0
    %1176 = vmatprep.subr.bf16.mxu0 0
    %1177 = vmatpush2.bf16.msra.mxu0 0
    %1178 = vmatprep.subr.bf16.mxu0 0
    %1179 = vmatpush2.bf16.msra.mxu0 0
    %1180 = vmatprep.subr.bf16.mxu0 0
    %1181 = vmatpush2.bf16.msra.mxu0 0
    %1182 = vmatprep.subr.bf16.mxu0 0
    %1183 = vmatpush2.bf16.msra.mxu0 0
    %1184 = vmatprep.subr.bf16.mxu0 0
    %1185 = vmatpush2.bf16.msra.mxu0 0
    %1186 = vmatprep.mubr.bf16.mxu0 0
    %1187 = vmatmul.mubr.bf16.gmra.mxu0 %v1153
    %v1188 = vpop.f32.mrf.mxu0
    %v1189 = vadd.f32 0.0, %v1188
    %v1190 = vpop.f32.mrf.mxu0
    %v1191 = vadd.f32 0.0, %v1190
    %v1192 = vpop.f32.mrf.mxu0
    %v1193 = vpop.f32.mrf.mxu0
    %1194 = vdwg.mxu0
    %1195 = vmatprep.subr.bf16.mxu0 %v1010
    %1196 = vmatpush1.bf16.msra.mxu0 %v1009
    %1197 = vmatprep.subr.bf16.mxu0 %v1006
    %1198 = vmatpush1.bf16.msra.mxu0 %v1005
    %1199 = vmatprep.subr.bf16.mxu0 %v1002
    %1200 = vmatpush1.bf16.msra.mxu0 %v1001
    %1201 = vmatprep.subr.bf16.mxu0 %v998
    %1202 = vmatpush1.bf16.msra.mxu0 %v997
    %1203 = vmatprep.subr.bf16.mxu0 %v994
    %1204 = vmatpush1.bf16.msra.mxu0 %v993
    %1205 = vmatprep.subr.bf16.mxu0 %v990
    %1206 = vmatpush1.bf16.msra.mxu0 %v989
    %1207 = vmatprep.subr.bf16.mxu0 %v986
    %1208 = vmatpush1.bf16.msra.mxu0 %v985
    %1209 = vmatprep.subr.bf16.mxu0 %v982
    %1210 = vmatpush1.bf16.msra.mxu0 %v981
    %1211 = vmatprep.subr.bf16.mxu0 0
    %1212 = vmatpush2.bf16.msra.mxu0 0
    %1213 = vmatprep.subr.bf16.mxu0 0
    %1214 = vmatpush2.bf16.msra.mxu0 0
    %1215 = vmatprep.subr.bf16.mxu0 0
    %1216 = vmatpush2.bf16.msra.mxu0 0
    %1217 = vmatprep.subr.bf16.mxu0 0
    %1218 = vmatpush2.bf16.msra.mxu0 0
    %1219 = vmatprep.subr.bf16.mxu0 0
    %1220 = vmatpush2.bf16.msra.mxu0 0
    %1221 = vmatprep.subr.bf16.mxu0 0
    %1222 = vmatpush2.bf16.msra.mxu0 0
    %1223 = vmatprep.subr.bf16.mxu0 0
    %1224 = vmatpush2.bf16.msra.mxu0 0
    %1225 = vmatprep.subr.bf16.mxu0 0
    %1226 = vmatpush2.bf16.msra.mxu0 0
    %1227 = vmatprep.mubr.bf16.mxu0 0
    %1228 = vmatmul.mubr.bf16.gmra.mxu0 %v1153
    %v1229 = vpop.f32.mrf.mxu0
    %v1230 = vadd.f32 0.0, %v1229
    %v1231 = vpop.f32.mrf.mxu0
    %v1232 = vadd.f32 0.0, %v1231
    %v1233 = vpop.f32.mrf.mxu0
    %v1234 = vpop.f32.mrf.mxu0
    %1235 = vdwg.mxu0
    %v1240 = vrot.slane %v1189, 7
    %v1241 = vrot.slane %v1191, 7
    %v1242 = vrot.slane %v1230, 7
    %v1243 = vrot.slane %v1232, 7
    %v1248 = vadd.f32 %v832, %v1240
    %v1249 = vadd.f32 %v834, %v1241
    %v1250 = vadd.f32 %v875, %v1242
    %v1251 = vadd.f32 %v877, %v1243
    %v1252 = vxor.u32 %v1248, 2147483648
    %v1253 = vxor.u32 %v1249, 2147483648
    %v1254 = vxor.u32 %v1250, 2147483648
    %v1255 = vmul.f32 %v1252, 1.442695
    %v1256 = vpow.pop %v1255
    %v1257 = vmul.f32 %v1253, 1.442695
    %v1258 = vpow.pop %v1257
    %v1259 = vmul.f32 %v1254, 1.442695
    %v1260 = vpow.pop %v1259
    %v1261 = vadd.f32 %v1256, 1.0
    %v1262 = vadd.f32 %v1258, 1.0
    %v1263 = vadd.f32 %v1260, 1.0
    %v1264 = vrcp.pop %v1261
    %v1265 = vmul.f32 1.0, %v1264
    %v1266 = vrcp.pop %v1262
    %v1267 = vmul.f32 1.0, %v1266
    %v1268 = vrcp.pop %v1263
    %v1269 = vmul.f32 1.0, %v1268
    %v1270 = vtanh.pop %v1251
    %v1272 = vrot.slane %v1150, 7
    %v1274 = vmul.f32 %v1267, %v1272
    %v1275 = vmul.f32 %v1265, %v1270
    %v1276 = vadd.f32 %v1274, %v1275
    %v1277 = vtanh.pop %v1276
    %v1278 = vmul.f32 %v1269, %v1277
    %v1279 = vpack.c.bf16 %v1278, %v1278
    %v1281 = vshrl.u32 %v1279, 16
    %1284 = vmatprep.subr.bf16.mxu0 %v1008
    %1285 = vmatpush1.bf16.msra.mxu0 %v1007
    %1286 = vmatprep.subr.bf16.mxu0 %v1004
    %1287 = vmatpush1.bf16.msra.mxu0 %v1003
    %1288 = vmatprep.subr.bf16.mxu0 %v1000
    %1289 = vmatpush1.bf16.msra.mxu0 %v999
    %1290 = vmatprep.subr.bf16.mxu0 %v996
    %1291 = vmatpush1.bf16.msra.mxu0 %v995
    %1292 = vmatprep.subr.bf16.mxu0 %v992
    %1293 = vmatpush1.bf16.msra.mxu0 %v991
    %1294 = vmatprep.subr.bf16.mxu0 %v988
    %1295 = vmatpush1.bf16.msra.mxu0 %v987
    %1296 = vmatprep.subr.bf16.mxu0 %v984
    %1297 = vmatpush1.bf16.msra.mxu0 %v983
    %1298 = vmatprep.subr.bf16.mxu0 %v980
    %1299 = vmatpush1.bf16.msra.mxu0 %v979
    %1300 = vmatprep.subr.bf16.mxu0 0
    %1301 = vmatpush2.bf16.msra.mxu0 0
    %1302 = vmatprep.subr.bf16.mxu0 0
    %1303 = vmatpush2.bf16.msra.mxu0 0
    %1304 = vmatprep.subr.bf16.mxu0 0
    %1305 = vmatpush2.bf16.msra.mxu0 0
    %1306 = vmatprep.subr.bf16.mxu0 0
    %1307 = vmatpush2.bf16.msra.mxu0 0
    %1308 = vmatprep.subr.bf16.mxu0 0
    %1309 = vmatpush2.bf16.msra.mxu0 0
    %1310 = vmatprep.subr.bf16.mxu0 0
    %1311 = vmatpush2.bf16.msra.mxu0 0
    %1312 = vmatprep.subr.bf16.mxu0 0
    %1313 = vmatpush2.bf16.msra.mxu0 0
    %1314 = vmatprep.subr.bf16.mxu0 0
    %1315 = vmatpush2.bf16.msra.mxu0 0
    %1316 = vmatprep.mubr.bf16.mxu0 0
    %1317 = vmatmul.mubr.bf16.gmra.mxu0 %v1281
    %v1318 = vpop.f32.mrf.mxu0
    %v1319 = vadd.f32 0.0, %v1318
    %v1320 = vpop.f32.mrf.mxu0
    %v1321 = vadd.f32 0.0, %v1320
    %v1322 = vpop.f32.mrf.mxu0
    %v1323 = vpop.f32.mrf.mxu0
    %1324 = vdwg.mxu0
    %1325 = vmatprep.subr.bf16.mxu0 %v1010
    %1326 = vmatpush1.bf16.msra.mxu0 %v1009
    %1327 = vmatprep.subr.bf16.mxu0 %v1006
    %1328 = vmatpush1.bf16.msra.mxu0 %v1005
    %1329 = vmatprep.subr.bf16.mxu0 %v1002
    %1330 = vmatpush1.bf16.msra.mxu0 %v1001
    %1331 = vmatprep.subr.bf16.mxu0 %v998
    %1332 = vmatpush1.bf16.msra.mxu0 %v997
    %1333 = vmatprep.subr.bf16.mxu0 %v994
    %1334 = vmatpush1.bf16.msra.mxu0 %v993
    %1335 = vmatprep.subr.bf16.mxu0 %v990
    %1336 = vmatpush1.bf16.msra.mxu0 %v989
    %1337 = vmatprep.subr.bf16.mxu0 %v986
    %1338 = vmatpush1.bf16.msra.mxu0 %v985
    %1339 = vmatprep.subr.bf16.mxu0 %v982
    %1340 = vmatpush1.bf16.msra.mxu0 %v981
    %1341 = vmatprep.subr.bf16.mxu0 0
    %1342 = vmatpush2.bf16.msra.mxu0 0
    %1343 = vmatprep.subr.bf16.mxu0 0
    %1344 = vmatpush2.bf16.msra.mxu0 0
    %1345 = vmatprep.subr.bf16.mxu0 0
    %1346 = vmatpush2.bf16.msra.mxu0 0
    %1347 = vmatprep.subr.bf16.mxu0 0
    %1348 = vmatpush2.bf16.msra.mxu0 0
    %1349 = vmatprep.subr.bf16.mxu0 0
    %1350 = vmatpush2.bf16.msra.mxu0 0
    %1351 = vmatprep.subr.bf16.mxu0 0
    %1352 = vmatpush2.bf16.msra.mxu0 0
    %1353 = vmatprep.subr.bf16.mxu0 0
    %1354 = vmatpush2.bf16.msra.mxu0 0
    %1355 = vmatprep.subr.bf16.mxu0 0
    %1356 = vmatpush2.bf16.msra.mxu0 0
    %1357 = vmatprep.mubr.bf16.mxu0 0
    %1358 = vmatmul.mubr.bf16.gmra.mxu0 %v1281
    %v1359 = vpop.f32.mrf.mxu0
    %v1360 = vadd.f32 0.0, %v1359
    %v1361 = vpop.f32.mrf.mxu0
    %v1362 = vadd.f32 0.0, %v1361
    %v1363 = vpop.f32.mrf.mxu0
    %v1364 = vpop.f32.mrf.mxu0
    %1365 = vdwg.mxu0
    %v1370 = vrot.slane %v1319, 6
    %v1371 = vrot.slane %v1321, 6
    %v1372 = vrot.slane %v1360, 6
    %v1373 = vrot.slane %v1362, 6
    %v1378 = vadd.f32 %v832, %v1370
    %v1379 = vadd.f32 %v834, %v1371
    %v1380 = vadd.f32 %v875, %v1372
    %v1381 = vadd.f32 %v877, %v1373
    %v1382 = vxor.u32 %v1378, 2147483648
    %v1383 = vxor.u32 %v1379, 2147483648
    %v1384 = vxor.u32 %v1380, 2147483648
    %v1385 = vmul.f32 %v1382, 1.442695
    %v1386 = vpow.pop %v1385
    %v1387 = vmul.f32 %v1383, 1.442695
    %v1388 = vpow.pop %v1387
    %v1389 = vmul.f32 %v1384, 1.442695
    %v1390 = vpow.pop %v1389
    %v1391 = vadd.f32 %v1386, 1.0
    %v1392 = vadd.f32 %v1388, 1.0
    %v1393 = vadd.f32 %v1390, 1.0
    %v1394 = vrcp.pop %v1391
    %v1395 = vmul.f32 1.0, %v1394
    %v1396 = vrcp.pop %v1392
    %v1397 = vmul.f32 1.0, %v1396
    %v1398 = vrcp.pop %v1393
    %v1399 = vmul.f32 1.0, %v1398
    %v1400 = vtanh.pop %v1381
    %v1402 = vrot.slane %v1276, 7
    %v1404 = vmul.f32 %v1397, %v1402
    %v1405 = vmul.f32 %v1395, %v1400
    %v1406 = vadd.f32 %v1404, %v1405
    %v1407 = vtanh.pop %v1406
    %v1408 = vmul.f32 %v1399, %v1407
    %v1409 = vpack.c.bf16 %v1408, %v1408
    %v1411 = vrot.slane %v1409, 1
    %1413 = vmatprep.subr.bf16.mxu0 %v1008
    %1414 = vmatpush1.bf16.msra.mxu0 %v1007
    %1415 = vmatprep.subr.bf16.mxu0 %v1004
    %1416 = vmatpush1.bf16.msra.mxu0 %v1003
    %1417 = vmatprep.subr.bf16.mxu0 %v1000
    %1418 = vmatpush1.bf16.msra.mxu0 %v999
    %1419 = vmatprep.subr.bf16.mxu0 %v996
    %1420 = vmatpush1.bf16.msra.mxu0 %v995
    %1421 = vmatprep.subr.bf16.mxu0 %v992
    %1422 = vmatpush1.bf16.msra.mxu0 %v991
    %1423 = vmatprep.subr.bf16.mxu0 %v988
    %1424 = vmatpush1.bf16.msra.mxu0 %v987
    %1425 = vmatprep.subr.bf16.mxu0 %v984
    %1426 = vmatpush1.bf16.msra.mxu0 %v983
    %1427 = vmatprep.subr.bf16.mxu0 %v980
    %1428 = vmatpush1.bf16.msra.mxu0 %v979
    %1429 = vmatprep.subr.bf16.mxu0 0
    %1430 = vmatpush2.bf16.msra.mxu0 0
    %1431 = vmatprep.subr.bf16.mxu0 0
    %1432 = vmatpush2.bf16.msra.mxu0 0
    %1433 = vmatprep.subr.bf16.mxu0 0
    %1434 = vmatpush2.bf16.msra.mxu0 0
    %1435 = vmatprep.subr.bf16.mxu0 0
    %1436 = vmatpush2.bf16.msra.mxu0 0
    %1437 = vmatprep.subr.bf16.mxu0 0
    %1438 = vmatpush2.bf16.msra.mxu0 0
    %1439 = vmatprep.subr.bf16.mxu0 0
    %1440 = vmatpush2.bf16.msra.mxu0 0
    %1441 = vmatprep.subr.bf16.mxu0 0
    %1442 = vmatpush2.bf16.msra.mxu0 0
    %1443 = vmatprep.subr.bf16.mxu0 0
    %1444 = vmatpush2.bf16.msra.mxu0 0
    %1445 = vmatprep.mubr.bf16.mxu0 0
    %1446 = vmatmul.mubr.bf16.gmra.mxu0 %v1411
    %v1447 = vpop.f32.mrf.mxu0
    %v1448 = vadd.f32 0.0, %v1447
    %v1449 = vpop.f32.mrf.mxu0
    %v1450 = vadd.f32 0.0, %v1449
    %v1451 = vpop.f32.mrf.mxu0
    %v1452 = vpop.f32.mrf.mxu0
    %1453 = vdwg.mxu0
    %1454 = vmatprep.subr.bf16.mxu0 %v1010
    %1455 = vmatpush1.bf16.msra.mxu0 %v1009
    %1456 = vmatprep.subr.bf16.mxu0 %v1006
    %1457 = vmatpush1.bf16.msra.mxu0 %v1005
    %1458 = vmatprep.subr.bf16.mxu0 %v1002
    %1459 = vmatpush1.bf16.msra.mxu0 %v1001
    %1460 = vmatprep.subr.bf16.mxu0 %v998
    %1461 = vmatpush1.bf16.msra.mxu0 %v997
    %1462 = vmatprep.subr.bf16.mxu0 %v994
    %1463 = vmatpush1.bf16.msra.mxu0 %v993
    %1464 = vmatprep.subr.bf16.mxu0 %v990
    %1465 = vmatpush1.bf16.msra.mxu0 %v989
    %1466 = vmatprep.subr.bf16.mxu0 %v986
    %1467 = vmatpush1.bf16.msra.mxu0 %v985
    %1468 = vmatprep.subr.bf16.mxu0 %v982
    %1469 = vmatpush1.bf16.msra.mxu0 %v981
    %1470 = vmatprep.subr.bf16.mxu0 0
    %1471 = vmatpush2.bf16.msra.mxu0 0
    %1472 = vmatprep.subr.bf16.mxu0 0
    %1473 = vmatpush2.bf16.msra.mxu0 0
    %1474 = vmatprep.subr.bf16.mxu0 0
    %1475 = vmatpush2.bf16.msra.mxu0 0
    %1476 = vmatprep.subr.bf16.mxu0 0
    %1477 = vmatpush2.bf16.msra.mxu0 0
    %1478 = vmatprep.subr.bf16.mxu0 0
    %1479 = vmatpush2.bf16.msra.mxu0 0
    %1480 = vmatprep.subr.bf16.mxu0 0
    %1481 = vmatpush2.bf16.msra.mxu0 0
    %1482 = vmatprep.subr.bf16.mxu0 0
    %1483 = vmatpush2.bf16.msra.mxu0 0
    %1484 = vmatprep.subr.bf16.mxu0 0
    %1485 = vmatpush2.bf16.msra.mxu0 0
    %1486 = vmatprep.mubr.bf16.mxu0 0
    %1487 = vmatmul.mubr.bf16.gmra.mxu0 %v1411
    %v1488 = vpop.f32.mrf.mxu0
    %v1489 = vadd.f32 0.0, %v1488
    %v1490 = vpop.f32.mrf.mxu0
    %v1491 = vadd.f32 0.0, %v1490
    %v1492 = vpop.f32.mrf.mxu0
    %v1493 = vpop.f32.mrf.mxu0
    %1494 = vdwg.mxu0
    %v1499 = vrot.slane %v1448, 5
    %v1500 = vrot.slane %v1450, 5
    %v1501 = vrot.slane %v1489, 5
    %v1502 = vrot.slane %v1491, 5
    %v1507 = vadd.f32 %v832, %v1499
    %v1508 = vadd.f32 %v834, %v1500
    %v1509 = vadd.f32 %v875, %v1501
    %v1510 = vadd.f32 %v877, %v1502
    %v1511 = vxor.u32 %v1507, 2147483648
    %v1512 = vxor.u32 %v1508, 2147483648
    %v1513 = vxor.u32 %v1509, 2147483648
    %v1514 = vmul.f32 %v1511, 1.442695
    %v1515 = vpow.pop %v1514
    %v1516 = vmul.f32 %v1512, 1.442695
    %v1517 = vpow.pop %v1516
    %v1518 = vmul.f32 %v1513, 1.442695
    %v1519 = vpow.pop %v1518
    %v1520 = vadd.f32 %v1515, 1.0
    %v1521 = vadd.f32 %v1517, 1.0
    %v1522 = vadd.f32 %v1519, 1.0
    %v1523 = vrcp.pop %v1520
    %v1524 = vmul.f32 1.0, %v1523
    %v1525 = vrcp.pop %v1521
    %v1526 = vmul.f32 1.0, %v1525
    %v1527 = vrcp.pop %v1522
    %v1528 = vmul.f32 1.0, %v1527
    %v1529 = vtanh.pop %v1510
    %v1531 = vrot.slane %v1406, 7
    %v1533 = vmul.f32 %v1526, %v1531
    %v1534 = vmul.f32 %v1524, %v1529
    %v1535 = vadd.f32 %v1533, %v1534
    %v1536 = vtanh.pop %v1535
    %v1537 = vmul.f32 %v1528, %v1536
    %v1538 = vpack.c.bf16 %v1537, %v1537
    %v1540 = vshrl.u32 %v1538, 16
    %v1542 = vrot.slane %v1540, 1
    %1544 = vmatprep.subr.bf16.mxu0 %v1008
    %1545 = vmatpush1.bf16.msra.mxu0 %v1007
    %1546 = vmatprep.subr.bf16.mxu0 %v1004
    %1547 = vmatpush1.bf16.msra.mxu0 %v1003
    %1548 = vmatprep.subr.bf16.mxu0 %v1000
    %1549 = vmatpush1.bf16.msra.mxu0 %v999
    %1550 = vmatprep.subr.bf16.mxu0 %v996
    %1551 = vmatpush1.bf16.msra.mxu0 %v995
    %1552 = vmatprep.subr.bf16.mxu0 %v992
    %1553 = vmatpush1.bf16.msra.mxu0 %v991
    %1554 = vmatprep.subr.bf16.mxu0 %v988
    %1555 = vmatpush1.bf16.msra.mxu0 %v987
    %1556 = vmatprep.subr.bf16.mxu0 %v984
    %1557 = vmatpush1.bf16.msra.mxu0 %v983
    %1558 = vmatprep.subr.bf16.mxu0 %v980
    %1559 = vmatpush1.bf16.msra.mxu0 %v979
    %1560 = vmatprep.subr.bf16.mxu0 0
    %1561 = vmatpush2.bf16.msra.mxu0 0
    %1562 = vmatprep.subr.bf16.mxu0 0
    %1563 = vmatpush2.bf16.msra.mxu0 0
    %1564 = vmatprep.subr.bf16.mxu0 0
    %1565 = vmatpush2.bf16.msra.mxu0 0
    %1566 = vmatprep.subr.bf16.mxu0 0
    %1567 = vmatpush2.bf16.msra.mxu0 0
    %1568 = vmatprep.subr.bf16.mxu0 0
    %1569 = vmatpush2.bf16.msra.mxu0 0
    %1570 = vmatprep.subr.bf16.mxu0 0
    %1571 = vmatpush2.bf16.msra.mxu0 0
    %1572 = vmatprep.subr.bf16.mxu0 0
    %1573 = vmatpush2.bf16.msra.mxu0 0
    %1574 = vmatprep.subr.bf16.mxu0 0
    %1575 = vmatpush2.bf16.msra.mxu0 0
    %1576 = vmatprep.mubr.bf16.mxu0 0
    %1577 = vmatmul.mubr.bf16.gmra.mxu0 %v1542
    %v1578 = vpop.f32.mrf.mxu0
    %v1579 = vadd.f32 0.0, %v1578
    %v1580 = vpop.f32.mrf.mxu0
    %v1581 = vadd.f32 0.0, %v1580
    %v1582 = vpop.f32.mrf.mxu0
    %v1583 = vpop.f32.mrf.mxu0
    %1584 = vdwg.mxu0
    %1585 = vmatprep.subr.bf16.mxu0 %v1010
    %1586 = vmatpush1.bf16.msra.mxu0 %v1009
    %1587 = vmatprep.subr.bf16.mxu0 %v1006
    %1588 = vmatpush1.bf16.msra.mxu0 %v1005
    %1589 = vmatprep.subr.bf16.mxu0 %v1002
    %1590 = vmatpush1.bf16.msra.mxu0 %v1001
    %1591 = vmatprep.subr.bf16.mxu0 %v998
    %1592 = vmatpush1.bf16.msra.mxu0 %v997
    %1593 = vmatprep.subr.bf16.mxu0 %v994
    %1594 = vmatpush1.bf16.msra.mxu0 %v993
    %1595 = vmatprep.subr.bf16.mxu0 %v990
    %1596 = vmatpush1.bf16.msra.mxu0 %v989
    %1597 = vmatprep.subr.bf16.mxu0 %v986
    %1598 = vmatpush1.bf16.msra.mxu0 %v985
    %1599 = vmatprep.subr.bf16.mxu0 %v982
    %1600 = vmatpush1.bf16.msra.mxu0 %v981
    %1601 = vmatprep.subr.bf16.mxu0 0
    %1602 = vmatpush2.bf16.msra.mxu0 0
    %1603 = vmatprep.subr.bf16.mxu0 0
    %1604 = vmatpush2.bf16.msra.mxu0 0
    %1605 = vmatprep.subr.bf16.mxu0 0
    %1606 = vmatpush2.bf16.msra.mxu0 0
    %1607 = vmatprep.subr.bf16.mxu0 0
    %1608 = vmatpush2.bf16.msra.mxu0 0
    %1609 = vmatprep.subr.bf16.mxu0 0
    %1610 = vmatpush2.bf16.msra.mxu0 0
    %1611 = vmatprep.subr.bf16.mxu0 0
    %1612 = vmatpush2.bf16.msra.mxu0 0
    %1613 = vmatprep.subr.bf16.mxu0 0
    %1614 = vmatpush2.bf16.msra.mxu0 0
    %1615 = vmatprep.subr.bf16.mxu0 0
    %1616 = vmatpush2.bf16.msra.mxu0 0
    %1617 = vmatprep.mubr.bf16.mxu0 0
    %1618 = vmatmul.mubr.bf16.gmra.mxu0 %v1542
    %v1619 = vpop.f32.mrf.mxu0
    %v1620 = vadd.f32 0.0, %v1619
    %v1621 = vpop.f32.mrf.mxu0
    %v1622 = vadd.f32 0.0, %v1621
    %v1623 = vpop.f32.mrf.mxu0
    %v1624 = vpop.f32.mrf.mxu0
    %1625 = vdwg.mxu0
    %v1630 = vrot.slane %v1579, 4
    %v1631 = vrot.slane %v1581, 4
    %v1632 = vrot.slane %v1620, 4
    %v1633 = vrot.slane %v1622, 4
    %v1638 = vadd.f32 %v832, %v1630
    %v1639 = vadd.f32 %v834, %v1631
    %v1640 = vadd.f32 %v875, %v1632
    %v1641 = vadd.f32 %v877, %v1633
    %v1642 = vxor.u32 %v1638, 2147483648
    %v1643 = vxor.u32 %v1639, 2147483648
    %v1644 = vxor.u32 %v1640, 2147483648
    %v1645 = vmul.f32 %v1642, 1.442695
    %v1646 = vpow.pop %v1645
    %v1647 = vmul.f32 %v1643, 1.442695
    %v1648 = vpow.pop %v1647
    %v1649 = vmul.f32 %v1644, 1.442695
    %v1650 = vpow.pop %v1649
    %v1651 = vadd.f32 %v1646, 1.0
    %v1652 = vadd.f32 %v1648, 1.0
    %v1653 = vadd.f32 %v1650, 1.0
    %v1654 = vrcp.pop %v1651
    %v1655 = vmul.f32 1.0, %v1654
    %v1656 = vrcp.pop %v1652
    %v1657 = vmul.f32 1.0, %v1656
    %v1658 = vrcp.pop %v1653
    %v1659 = vmul.f32 1.0, %v1658
    %v1660 = vtanh.pop %v1641
    %v1662 = vrot.slane %v1535, 7
    %v1664 = vmul.f32 %v1657, %v1662
    %v1665 = vmul.f32 %v1655, %v1660
    %v1666 = vadd.f32 %v1664, %v1665
    %v1667 = vtanh.pop %v1666
    %v1668 = vmul.f32 %v1659, %v1667
    %v1669 = vpack.c.bf16 %v1668, %v1668
    %v1671 = vrot.slane %v1669, 2
    %1673 = vmatprep.subr.bf16.mxu0 %v1008
    %1674 = vmatpush1.bf16.msra.mxu0 %v1007
    %1675 = vmatprep.subr.bf16.mxu0 %v1004
    %1676 = vmatpush1.bf16.msra.mxu0 %v1003
    %1677 = vmatprep.subr.bf16.mxu0 %v1000
    %1678 = vmatpush1.bf16.msra.mxu0 %v999
    %1679 = vmatprep.subr.bf16.mxu0 %v996
    %1680 = vmatpush1.bf16.msra.mxu0 %v995
    %1681 = vmatprep.subr.bf16.mxu0 %v992
    %1682 = vmatpush1.bf16.msra.mxu0 %v991
    %1683 = vmatprep.subr.bf16.mxu0 %v988
    %1684 = vmatpush1.bf16.msra.mxu0 %v987
    %1685 = vmatprep.subr.bf16.mxu0 %v984
    %1686 = vmatpush1.bf16.msra.mxu0 %v983
    %1687 = vmatprep.subr.bf16.mxu0 %v980
    %1688 = vmatpush1.bf16.msra.mxu0 %v979
    %1689 = vmatprep.subr.bf16.mxu0 0
    %1690 = vmatpush2.bf16.msra.mxu0 0
    %1691 = vmatprep.subr.bf16.mxu0 0
    %1692 = vmatpush2.bf16.msra.mxu0 0
    %1693 = vmatprep.subr.bf16.mxu0 0
    %1694 = vmatpush2.bf16.msra.mxu0 0
    %1695 = vmatprep.subr.bf16.mxu0 0
    %1696 = vmatpush2.bf16.msra.mxu0 0
    %1697 = vmatprep.subr.bf16.mxu0 0
    %1698 = vmatpush2.bf16.msra.mxu0 0
    %1699 = vmatprep.subr.bf16.mxu0 0
    %1700 = vmatpush2.bf16.msra.mxu0 0
    %1701 = vmatprep.subr.bf16.mxu0 0
    %1702 = vmatpush2.bf16.msra.mxu0 0
    %1703 = vmatprep.subr.bf16.mxu0 0
    %1704 = vmatpush2.bf16.msra.mxu0 0
    %1705 = vmatprep.mubr.bf16.mxu0 0
    %1706 = vmatmul.mubr.bf16.gmra.mxu0 %v1671
    %v1707 = vpop.f32.mrf.mxu0
    %v1708 = vadd.f32 0.0, %v1707
    %v1709 = vpop.f32.mrf.mxu0
    %v1710 = vadd.f32 0.0, %v1709
    %v1711 = vpop.f32.mrf.mxu0
    %v1712 = vpop.f32.mrf.mxu0
    %1713 = vdwg.mxu0
    %1714 = vmatprep.subr.bf16.mxu0 %v1010
    %1715 = vmatpush1.bf16.msra.mxu0 %v1009
    %1716 = vmatprep.subr.bf16.mxu0 %v1006
    %1717 = vmatpush1.bf16.msra.mxu0 %v1005
    %1718 = vmatprep.subr.bf16.mxu0 %v1002
    %1719 = vmatpush1.bf16.msra.mxu0 %v1001
    %1720 = vmatprep.subr.bf16.mxu0 %v998
    %1721 = vmatpush1.bf16.msra.mxu0 %v997
    %1722 = vmatprep.subr.bf16.mxu0 %v994
    %1723 = vmatpush1.bf16.msra.mxu0 %v993
    %1724 = vmatprep.subr.bf16.mxu0 %v990
    %1725 = vmatpush1.bf16.msra.mxu0 %v989
    %1726 = vmatprep.subr.bf16.mxu0 %v986
    %1727 = vmatpush1.bf16.msra.mxu0 %v985
    %1728 = vmatprep.subr.bf16.mxu0 %v982
    %1729 = vmatpush1.bf16.msra.mxu0 %v981
    %1730 = vmatprep.subr.bf16.mxu0 0
    %1731 = vmatpush2.bf16.msra.mxu0 0
    %1732 = vmatprep.subr.bf16.mxu0 0
    %1733 = vmatpush2.bf16.msra.mxu0 0
    %1734 = vmatprep.subr.bf16.mxu0 0
    %1735 = vmatpush2.bf16.msra.mxu0 0
    %1736 = vmatprep.subr.bf16.mxu0 0
    %1737 = vmatpush2.bf16.msra.mxu0 0
    %1738 = vmatprep.subr.bf16.mxu0 0
    %1739 = vmatpush2.bf16.msra.mxu0 0
    %1740 = vmatprep.subr.bf16.mxu0 0
    %1741 = vmatpush2.bf16.msra.mxu0 0
    %1742 = vmatprep.subr.bf16.mxu0 0
    %1743 = vmatpush2.bf16.msra.mxu0 0
    %1744 = vmatprep.subr.bf16.mxu0 0
    %1745 = vmatpush2.bf16.msra.mxu0 0
    %1746 = vmatprep.mubr.bf16.mxu0 0
    %1747 = vmatmul.mubr.bf16.gmra.mxu0 %v1671
    %v1748 = vpop.f32.mrf.mxu0
    %v1749 = vadd.f32 0.0, %v1748
    %v1750 = vpop.f32.mrf.mxu0
    %v1751 = vadd.f32 0.0, %v1750
    %v1752 = vpop.f32.mrf.mxu0
    %v1753 = vpop.f32.mrf.mxu0
    %1754 = vdwg.mxu0
    %v1759 = vrot.slane %v1708, 3
    %v1760 = vrot.slane %v1710, 3
    %v1761 = vrot.slane %v1749, 3
    %v1762 = vrot.slane %v1751, 3
    %v1767 = vadd.f32 %v832, %v1759
    %v1768 = vadd.f32 %v834, %v1760
    %v1769 = vadd.f32 %v875, %v1761
    %v1770 = vadd.f32 %v877, %v1762
    %v1771 = vxor.u32 %v1767, 2147483648
    %v1772 = vxor.u32 %v1768, 2147483648
    %v1773 = vxor.u32 %v1769, 2147483648
    %v1774 = vmul.f32 %v1771, 1.442695
    %v1775 = vpow.pop %v1774
    %v1776 = vmul.f32 %v1772, 1.442695
    %v1777 = vpow.pop %v1776
    %v1778 = vmul.f32 %v1773, 1.442695
    %v1779 = vpow.pop %v1778
    %v1780 = vadd.f32 %v1775, 1.0
    %v1781 = vadd.f32 %v1777, 1.0
    %v1782 = vadd.f32 %v1779, 1.0
    %v1783 = vrcp.pop %v1780
    %v1784 = vmul.f32 1.0, %v1783
    %v1785 = vrcp.pop %v1781
    %v1786 = vmul.f32 1.0, %v1785
    %v1787 = vrcp.pop %v1782
    %v1788 = vmul.f32 1.0, %v1787
    %v1789 = vtanh.pop %v1770
    %v1791 = vrot.slane %v1666, 7
    %v1793 = vmul.f32 %v1786, %v1791
    %v1794 = vmul.f32 %v1784, %v1789
    %v1795 = vadd.f32 %v1793, %v1794
    %v1796 = vtanh.pop %v1795
    %v1797 = vmul.f32 %v1788, %v1796
    %v1798 = vpack.c.bf16 %v1797, %v1797
    %v1800 = vshrl.u32 %v1798, 16
    %v1802 = vrot.slane %v1800, 2
    %1804 = vmatprep.subr.bf16.mxu0 %v1008
    %1805 = vmatpush1.bf16.msra.mxu0 %v1007
    %1806 = vmatprep.subr.bf16.mxu0 %v1004
    %1807 = vmatpush1.bf16.msra.mxu0 %v1003
    %1808 = vmatprep.subr.bf16.mxu0 %v1000
    %1809 = vmatpush1.bf16.msra.mxu0 %v999
    %1810 = vmatprep.subr.bf16.mxu0 %v996
    %1811 = vmatpush1.bf16.msra.mxu0 %v995
    %1812 = vmatprep.subr.bf16.mxu0 %v992
    %1813 = vmatpush1.bf16.msra.mxu0 %v991
    %1814 = vmatprep.subr.bf16.mxu0 %v988
    %1815 = vmatpush1.bf16.msra.mxu0 %v987
    %1816 = vmatprep.subr.bf16.mxu0 %v984
    %1817 = vmatpush1.bf16.msra.mxu0 %v983
    %1818 = vmatprep.subr.bf16.mxu0 %v980
    %1819 = vmatpush1.bf16.msra.mxu0 %v979
    %1820 = vmatprep.subr.bf16.mxu0 0
    %1821 = vmatpush2.bf16.msra.mxu0 0
    %1822 = vmatprep.subr.bf16.mxu0 0
    %1823 = vmatpush2.bf16.msra.mxu0 0
    %1824 = vmatprep.subr.bf16.mxu0 0
    %1825 = vmatpush2.bf16.msra.mxu0 0
    %1826 = vmatprep.subr.bf16.mxu0 0
    %1827 = vmatpush2.bf16.msra.mxu0 0
    %1828 = vmatprep.subr.bf16.mxu0 0
    %1829 = vmatpush2.bf16.msra.mxu0 0
    %1830 = vmatprep.subr.bf16.mxu0 0
    %1831 = vmatpush2.bf16.msra.mxu0 0
    %1832 = vmatprep.subr.bf16.mxu0 0
    %1833 = vmatpush2.bf16.msra.mxu0 0
    %1834 = vmatprep.subr.bf16.mxu0 0
    %1835 = vmatpush2.bf16.msra.mxu0 0
    %1836 = vmatprep.mubr.bf16.mxu0 0
    %1837 = vmatmul.mubr.bf16.gmra.mxu0 %v1802
    %v1838 = vpop.f32.mrf.mxu0
    %v1839 = vadd.f32 0.0, %v1838
    %v1840 = vpop.f32.mrf.mxu0
    %v1841 = vadd.f32 0.0, %v1840
    %v1842 = vpop.f32.mrf.mxu0
    %v1843 = vpop.f32.mrf.mxu0
    %1844 = vdwg.mxu0
    %1845 = vmatprep.subr.bf16.mxu0 %v1010
    %1846 = vmatpush1.bf16.msra.mxu0 %v1009
    %1847 = vmatprep.subr.bf16.mxu0 %v1006
    %1848 = vmatpush1.bf16.msra.mxu0 %v1005
    %1849 = vmatprep.subr.bf16.mxu0 %v1002
    %1850 = vmatpush1.bf16.msra.mxu0 %v1001
    %1851 = vmatprep.subr.bf16.mxu0 %v998
    %1852 = vmatpush1.bf16.msra.mxu0 %v997
    %1853 = vmatprep.subr.bf16.mxu0 %v994
    %1854 = vmatpush1.bf16.msra.mxu0 %v993
    %1855 = vmatprep.subr.bf16.mxu0 %v990
    %1856 = vmatpush1.bf16.msra.mxu0 %v989
    %1857 = vmatprep.subr.bf16.mxu0 %v986
    %1858 = vmatpush1.bf16.msra.mxu0 %v985
    %1859 = vmatprep.subr.bf16.mxu0 %v982
    %1860 = vmatpush1.bf16.msra.mxu0 %v981
    %1861 = vmatprep.subr.bf16.mxu0 0
    %1862 = vmatpush2.bf16.msra.mxu0 0
    %1863 = vmatprep.subr.bf16.mxu0 0
    %1864 = vmatpush2.bf16.msra.mxu0 0
    %1865 = vmatprep.subr.bf16.mxu0 0
    %1866 = vmatpush2.bf16.msra.mxu0 0
    %1867 = vmatprep.subr.bf16.mxu0 0
    %1868 = vmatpush2.bf16.msra.mxu0 0
    %1869 = vmatprep.subr.bf16.mxu0 0
    %1870 = vmatpush2.bf16.msra.mxu0 0
    %1871 = vmatprep.subr.bf16.mxu0 0
    %1872 = vmatpush2.bf16.msra.mxu0 0
    %1873 = vmatprep.subr.bf16.mxu0 0
    %1874 = vmatpush2.bf16.msra.mxu0 0
    %1875 = vmatprep.subr.bf16.mxu0 0
    %1876 = vmatpush2.bf16.msra.mxu0 0
    %1877 = vmatprep.mubr.bf16.mxu0 0
    %1878 = vmatmul.mubr.bf16.gmra.mxu0 %v1802
    %v1879 = vpop.f32.mrf.mxu0
    %v1880 = vadd.f32 0.0, %v1879
    %v1881 = vpop.f32.mrf.mxu0
    %v1882 = vadd.f32 0.0, %v1881
    %v1883 = vpop.f32.mrf.mxu0
    %v1884 = vpop.f32.mrf.mxu0
    %1885 = vdwg.mxu0
    %v1890 = vrot.slane %v1839, 2
    %v1891 = vrot.slane %v1841, 2
    %v1892 = vrot.slane %v1880, 2
    %v1893 = vrot.slane %v1882, 2
    %v1898 = vadd.f32 %v832, %v1890
    %v1899 = vadd.f32 %v834, %v1891
    %v1900 = vadd.f32 %v875, %v1892
    %v1901 = vadd.f32 %v877, %v1893
    %v1902 = vxor.u32 %v1898, 2147483648
    %v1903 = vxor.u32 %v1899, 2147483648
    %v1904 = vxor.u32 %v1900, 2147483648
    %v1905 = vmul.f32 %v1902, 1.442695
    %v1906 = vpow.pop %v1905
    %v1907 = vmul.f32 %v1903, 1.442695
    %v1908 = vpow.pop %v1907
    %v1909 = vmul.f32 %v1904, 1.442695
    %v1910 = vpow.pop %v1909
    %v1911 = vadd.f32 %v1906, 1.0
    %v1912 = vadd.f32 %v1908, 1.0
    %v1913 = vadd.f32 %v1910, 1.0
    %v1914 = vrcp.pop %v1911
    %v1915 = vmul.f32 1.0, %v1914
    %v1916 = vrcp.pop %v1912
    %v1917 = vmul.f32 1.0, %v1916
    %v1918 = vrcp.pop %v1913
    %v1919 = vmul.f32 1.0, %v1918
    %v1920 = vtanh.pop %v1901
    %v1922 = vrot.slane %v1795, 7
    %v1924 = vmul.f32 %v1917, %v1922
    %v1925 = vmul.f32 %v1915, %v1920
    %v1926 = vadd.f32 %v1924, %v1925
    %v1927 = vtanh.pop %v1926
    %v1928 = vmul.f32 %v1919, %v1927
    %v1929 = vpack.c.bf16 %v1928, %v1928
    %v1931 = vrot.slane %v1929, 3
    %1933 = vmatprep.subr.bf16.mxu0 %v1008
    %1934 = vmatpush1.bf16.msra.mxu0 %v1007
    %1935 = vmatprep.subr.bf16.mxu0 %v1004
    %1936 = vmatpush1.bf16.msra.mxu0 %v1003
    %1937 = vmatprep.subr.bf16.mxu0 %v1000
    %1938 = vmatpush1.bf16.msra.mxu0 %v999
    %1939 = vmatprep.subr.bf16.mxu0 %v996
    %1940 = vmatpush1.bf16.msra.mxu0 %v995
    %1941 = vmatprep.subr.bf16.mxu0 %v992
    %1942 = vmatpush1.bf16.msra.mxu0 %v991
    %1943 = vmatprep.subr.bf16.mxu0 %v988
    %1944 = vmatpush1.bf16.msra.mxu0 %v987
    %1945 = vmatprep.subr.bf16.mxu0 %v984
    %1946 = vmatpush1.bf16.msra.mxu0 %v983
    %1947 = vmatprep.subr.bf16.mxu0 %v980
    %1948 = vmatpush1.bf16.msra.mxu0 %v979
    %1949 = vmatprep.subr.bf16.mxu0 0
    %1950 = vmatpush2.bf16.msra.mxu0 0
    %1951 = vmatprep.subr.bf16.mxu0 0
    %1952 = vmatpush2.bf16.msra.mxu0 0
    %1953 = vmatprep.subr.bf16.mxu0 0
    %1954 = vmatpush2.bf16.msra.mxu0 0
    %1955 = vmatprep.subr.bf16.mxu0 0
    %1956 = vmatpush2.bf16.msra.mxu0 0
    %1957 = vmatprep.subr.bf16.mxu0 0
    %1958 = vmatpush2.bf16.msra.mxu0 0
    %1959 = vmatprep.subr.bf16.mxu0 0
    %1960 = vmatpush2.bf16.msra.mxu0 0
    %1961 = vmatprep.subr.bf16.mxu0 0
    %1962 = vmatpush2.bf16.msra.mxu0 0
    %1963 = vmatprep.subr.bf16.mxu0 0
    %1964 = vmatpush2.bf16.msra.mxu0 0
    %1965 = vmatprep.mubr.bf16.mxu0 0
    %1966 = vmatmul.mubr.bf16.gmra.mxu0 %v1931
    %v1967 = vpop.f32.mrf.mxu0
    %v1968 = vadd.f32 0.0, %v1967
    %v1969 = vpop.f32.mrf.mxu0
    %v1970 = vadd.f32 0.0, %v1969
    %v1971 = vpop.f32.mrf.mxu0
    %v1972 = vpop.f32.mrf.mxu0
    %1973 = vdwg.mxu0
    %1974 = vmatprep.subr.bf16.mxu0 %v1010
    %1975 = vmatpush1.bf16.msra.mxu0 %v1009
    %1976 = vmatprep.subr.bf16.mxu0 %v1006
    %1977 = vmatpush1.bf16.msra.mxu0 %v1005
    %1978 = vmatprep.subr.bf16.mxu0 %v1002
    %1979 = vmatpush1.bf16.msra.mxu0 %v1001
    %1980 = vmatprep.subr.bf16.mxu0 %v998
    %1981 = vmatpush1.bf16.msra.mxu0 %v997
    %1982 = vmatprep.subr.bf16.mxu0 %v994
    %1983 = vmatpush1.bf16.msra.mxu0 %v993
    %1984 = vmatprep.subr.bf16.mxu0 %v990
    %1985 = vmatpush1.bf16.msra.mxu0 %v989
    %1986 = vmatprep.subr.bf16.mxu0 %v986
    %1987 = vmatpush1.bf16.msra.mxu0 %v985
    %1988 = vmatprep.subr.bf16.mxu0 %v982
    %1989 = vmatpush1.bf16.msra.mxu0 %v981
    %1990 = vmatprep.subr.bf16.mxu0 0
    %1991 = vmatpush2.bf16.msra.mxu0 0
    %1992 = vmatprep.subr.bf16.mxu0 0
    %1993 = vmatpush2.bf16.msra.mxu0 0
    %1994 = vmatprep.subr.bf16.mxu0 0
    %1995 = vmatpush2.bf16.msra.mxu0 0
    %1996 = vmatprep.subr.bf16.mxu0 0
    %1997 = vmatpush2.bf16.msra.mxu0 0
    %1998 = vmatprep.subr.bf16.mxu0 0
    %1999 = vmatpush2.bf16.msra.mxu0 0
    %2000 = vmatprep.subr.bf16.mxu0 0
    %2001 = vmatpush2.bf16.msra.mxu0 0
    %2002 = vmatprep.subr.bf16.mxu0 0
    %2003 = vmatpush2.bf16.msra.mxu0 0
    %2004 = vmatprep.subr.bf16.mxu0 0
    %2005 = vmatpush2.bf16.msra.mxu0 0
    %2006 = vmatprep.mubr.bf16.mxu0 0
    %2007 = vmatmul.mubr.bf16.gmra.mxu0 %v1931
    %v2008 = vpop.f32.mrf.mxu0
    %v2009 = vadd.f32 0.0, %v2008
    %v2010 = vpop.f32.mrf.mxu0
    %v2011 = vadd.f32 0.0, %v2010
    %v2012 = vpop.f32.mrf.mxu0
    %v2013 = vpop.f32.mrf.mxu0
    %2014 = vdwg.mxu0
    %v2019 = vrot.slane %v1968, 1
    %v2020 = vrot.slane %v1970, 1
    %v2021 = vrot.slane %v2009, 1
    %v2022 = vrot.slane %v2011, 1
    %v2027 = vadd.f32 %v832, %v2019
    %v2028 = vadd.f32 %v834, %v2020
    %v2029 = vadd.f32 %v875, %v2021
    %v2030 = vadd.f32 %v877, %v2022
    %v2031 = vxor.u32 %v2027, 2147483648
    %v2032 = vxor.u32 %v2028, 2147483648
    %v2033 = vxor.u32 %v2029, 2147483648
    %v2034 = vmul.f32 %v2031, 1.442695
    %v2035 = vpow.pop %v2034
    %v2036 = vmul.f32 %v2032, 1.442695
    %v2037 = vpow.pop %v2036
    %v2038 = vmul.f32 %v2033, 1.442695
    %v2039 = vpow.pop %v2038
    %v2040 = vadd.f32 %v2035, 1.0
    %v2041 = vadd.f32 %v2037, 1.0
    %v2042 = vadd.f32 %v2039, 1.0
    %v2043 = vrcp.pop %v2040
    %v2044 = vmul.f32 1.0, %v2043
    %v2045 = vrcp.pop %v2041
    %v2046 = vmul.f32 1.0, %v2045
    %v2047 = vrcp.pop %v2042
    %v2048 = vmul.f32 1.0, %v2047
    %v2049 = vtanh.pop %v2030
    %v2051 = vrot.slane %v1926, 7
    %v2053 = vmul.f32 %v2046, %v2051
    %v2054 = vmul.f32 %v2044, %v2049
    %v2055 = vadd.f32 %v2053, %v2054
    %v2056 = vtanh.pop %v2055
    %v2057 = vmul.f32 %v2048, %v2056
    %v2058 = vpack.c.bf16 %v2057, %v2057
    %v2060 = vshrl.u32 %v2058, 16
    %v2062 = vrot.slane %v2060, 3
    %2064 = vmatprep.subr.bf16.mxu0 %v1008
    %2065 = vmatpush1.bf16.msra.mxu0 %v1007
    %2066 = vmatprep.subr.bf16.mxu0 %v1004
    %2067 = vmatpush1.bf16.msra.mxu0 %v1003
    %2068 = vmatprep.subr.bf16.mxu0 %v1000
    %2069 = vmatpush1.bf16.msra.mxu0 %v999
    %2070 = vmatprep.subr.bf16.mxu0 %v996
    %2071 = vmatpush1.bf16.msra.mxu0 %v995
    %2072 = vmatprep.subr.bf16.mxu0 %v992
    %2073 = vmatpush1.bf16.msra.mxu0 %v991
    %2074 = vmatprep.subr.bf16.mxu0 %v988
    %2075 = vmatpush1.bf16.msra.mxu0 %v987
    %2076 = vmatprep.subr.bf16.mxu0 %v984
    %2077 = vmatpush1.bf16.msra.mxu0 %v983
    %2078 = vmatprep.subr.bf16.mxu0 %v980
    %2079 = vmatpush1.bf16.msra.mxu0 %v979
    %2080 = vmatprep.subr.bf16.mxu0 0
    %2081 = vmatpush2.bf16.msra.mxu0 0
    %2082 = vmatprep.subr.bf16.mxu0 0
    %2083 = vmatpush2.bf16.msra.mxu0 0
    %2084 = vmatprep.subr.bf16.mxu0 0
    %2085 = vmatpush2.bf16.msra.mxu0 0
    %2086 = vmatprep.subr.bf16.mxu0 0
    %2087 = vmatpush2.bf16.msra.mxu0 0
    %2088 = vmatprep.subr.bf16.mxu0 0
    %2089 = vmatpush2.bf16.msra.mxu0 0
    %2090 = vmatprep.subr.bf16.mxu0 0
    %2091 = vmatpush2.bf16.msra.mxu0 0
    %2092 = vmatprep.subr.bf16.mxu0 0
    %2093 = vmatpush2.bf16.msra.mxu0 0
    %2094 = vmatprep.subr.bf16.mxu0 0
    %2095 = vmatpush2.bf16.msra.mxu0 0
    %2096 = vmatprep.mubr.bf16.mxu0 0
    %2097 = vmatmul.mubr.bf16.gmra.mxu0 %v2062
    %v2098 = vpop.f32.mrf.mxu0
    %v2099 = vadd.f32 0.0, %v2098
    %v2100 = vpop.f32.mrf.mxu0
    %v2101 = vadd.f32 0.0, %v2100
    %v2102 = vpop.f32.mrf.mxu0
    %v2103 = vpop.f32.mrf.mxu0
    %2104 = vdwg.mxu0
    %2105 = vmatprep.subr.bf16.mxu0 %v1010
    %2106 = vmatpush1.bf16.msra.mxu0 %v1009
    %2107 = vmatprep.subr.bf16.mxu0 %v1006
    %2108 = vmatpush1.bf16.msra.mxu0 %v1005
    %2109 = vmatprep.subr.bf16.mxu0 %v1002
    %2110 = vmatpush1.bf16.msra.mxu0 %v1001
    %2111 = vmatprep.subr.bf16.mxu0 %v998
    %2112 = vmatpush1.bf16.msra.mxu0 %v997
    %2113 = vmatprep.subr.bf16.mxu0 %v994
    %2114 = vmatpush1.bf16.msra.mxu0 %v993
    %2115 = vmatprep.subr.bf16.mxu0 %v990
    %2116 = vmatpush1.bf16.msra.mxu0 %v989
    %2117 = vmatprep.subr.bf16.mxu0 %v986
    %2118 = vmatpush1.bf16.msra.mxu0 %v985
    %2119 = vmatprep.subr.bf16.mxu0 %v982
    %2120 = vmatpush1.bf16.msra.mxu0 %v981
    %2121 = vmatprep.subr.bf16.mxu0 0
    %2122 = vmatpush2.bf16.msra.mxu0 0
    %2123 = vmatprep.subr.bf16.mxu0 0
    %2124 = vmatpush2.bf16.msra.mxu0 0
    %2125 = vmatprep.subr.bf16.mxu0 0
    %2126 = vmatpush2.bf16.msra.mxu0 0
    %2127 = vmatprep.subr.bf16.mxu0 0
    %2128 = vmatpush2.bf16.msra.mxu0 0
    %2129 = vmatprep.subr.bf16.mxu0 0
    %2130 = vmatpush2.bf16.msra.mxu0 0
    %2131 = vmatprep.subr.bf16.mxu0 0
    %2132 = vmatpush2.bf16.msra.mxu0 0
    %2133 = vmatprep.subr.bf16.mxu0 0
    %2134 = vmatpush2.bf16.msra.mxu0 0
    %2135 = vmatprep.subr.bf16.mxu0 0
    %2136 = vmatpush2.bf16.msra.mxu0 0
    %2137 = vmatprep.mubr.bf16.mxu0 0
    %2138 = vmatmul.mubr.bf16.gmra.mxu0 %v2062
    %v2139 = vpop.f32.mrf.mxu0
    %v2140 = vadd.f32 0.0, %v2139
    %v2141 = vpop.f32.mrf.mxu0
    %v2142 = vadd.f32 0.0, %v2141
    %v2143 = vpop.f32.mrf.mxu0
    %v2144 = vpop.f32.mrf.mxu0
    %2145 = vdwg.mxu0
    %v2146 = vadd.f32 %v836, %v2099
    %v2147 = vadd.f32 %v838, %v2101
    %v2148 = vadd.f32 %v879, %v2140
    %v2149 = vadd.f32 %v881, %v2142
    %v2150 = vxor.u32 %v2146, 2147483648
    %v2151 = vxor.u32 %v2147, 2147483648
    %v2152 = vxor.u32 %v2148, 2147483648
    %v2153 = vmul.f32 %v2150, 1.442695
    %v2154 = vpow.pop %v2153
    %v2155 = vmul.f32 %v2151, 1.442695
    %v2156 = vpow.pop %v2155
    %v2157 = vmul.f32 %v2152, 1.442695
    %v2158 = vpow.pop %v2157
    %v2159 = vadd.f32 %v2154, 1.0
    %v2160 = vadd.f32 %v2156, 1.0
    %v2161 = vadd.f32 %v2158, 1.0
    %v2162 = vrcp.pop %v2159
    %v2163 = vmul.f32 1.0, %v2162
    %v2164 = vrcp.pop %v2160
    %v2165 = vmul.f32 1.0, %v2164
    %v2166 = vrcp.pop %v2161
    %v2167 = vmul.f32 1.0, %v2166
    %v2168 = vtanh.pop %v2149
    %v2170 = vrot.slane %v2055, 7
    %v2172 = vmul.f32 %v2165, %v2170
    %v2173 = vmul.f32 %v2163, %v2168
    %v2174 = vadd.f32 %v2172, %v2173
    %v2175 = vtanh.pop %v2174
    %v2176 = vmul.f32 %v2167, %v2175
    %v2177 = vpack.c.bf16 %v2176, %v2176
    %2178 = vmatprep.subr.bf16.mxu0 %v1008
    %2179 = vmatpush1.bf16.msra.mxu0 %v1007
    %2180 = vmatprep.subr.bf16.mxu0 %v1004
    %2181 = vmatpush1.bf16.msra.mxu0 %v1003
    %2182 = vmatprep.subr.bf16.mxu0 %v1000
    %2183 = vmatpush1.bf16.msra.mxu0 %v999
    %2184 = vmatprep.subr.bf16.mxu0 %v996
    %2185 = vmatpush1.bf16.msra.mxu0 %v995
    %2186 = vmatprep.subr.bf16.mxu0 %v992
    %2187 = vmatpush1.bf16.msra.mxu0 %v991
    %2188 = vmatprep.subr.bf16.mxu0 %v988
    %2189 = vmatpush1.bf16.msra.mxu0 %v987
    %2190 = vmatprep.subr.bf16.mxu0 %v984
    %2191 = vmatpush1.bf16.msra.mxu0 %v983
    %2192 = vmatprep.subr.bf16.mxu0 %v980
    %2193 = vmatpush1.bf16.msra.mxu0 %v979
    %2194 = vmatprep.subr.bf16.mxu0 0
    %2195 = vmatpush2.bf16.msra.mxu0 0
    %2196 = vmatprep.subr.bf16.mxu0 0
    %2197 = vmatpush2.bf16.msra.mxu0 0
    %2198 = vmatprep.subr.bf16.mxu0 0
    %2199 = vmatpush2.bf16.msra.mxu0 0
    %2200 = vmatprep.subr.bf16.mxu0 0
    %2201 = vmatpush2.bf16.msra.mxu0 0
    %2202 = vmatprep.subr.bf16.mxu0 0
    %2203 = vmatpush2.bf16.msra.mxu0 0
    %2204 = vmatprep.subr.bf16.mxu0 0
    %2205 = vmatpush2.bf16.msra.mxu0 0
    %2206 = vmatprep.subr.bf16.mxu0 0
    %2207 = vmatpush2.bf16.msra.mxu0 0
    %2208 = vmatprep.subr.bf16.mxu0 0
    %2209 = vmatpush2.bf16.msra.mxu0 0
    %2210 = vmatprep.mubr.bf16.mxu0 0
    %2211 = vmatmul.mubr.bf16.gmra.mxu0 %v2177
    %v2212 = vpop.f32.mrf.mxu0
    %v2213 = vadd.f32 0.0, %v2212
    %v2214 = vpop.f32.mrf.mxu0
    %v2215 = vadd.f32 0.0, %v2214
    %v2216 = vpop.f32.mrf.mxu0
    %v2217 = vpop.f32.mrf.mxu0
    %2218 = vdwg.mxu0
    %2219 = vmatprep.subr.bf16.mxu0 %v1010
    %2220 = vmatpush1.bf16.msra.mxu0 %v1009
    %2221 = vmatprep.subr.bf16.mxu0 %v1006
    %2222 = vmatpush1.bf16.msra.mxu0 %v1005
    %2223 = vmatprep.subr.bf16.mxu0 %v1002
    %2224 = vmatpush1.bf16.msra.mxu0 %v1001
    %2225 = vmatprep.subr.bf16.mxu0 %v998
    %2226 = vmatpush1.bf16.msra.mxu0 %v997
    %2227 = vmatprep.subr.bf16.mxu0 %v994
    %2228 = vmatpush1.bf16.msra.mxu0 %v993
    %2229 = vmatprep.subr.bf16.mxu0 %v990
    %2230 = vmatpush1.bf16.msra.mxu0 %v989
    %2231 = vmatprep.subr.bf16.mxu0 %v986
    %2232 = vmatpush1.bf16.msra.mxu0 %v985
    %2233 = vmatprep.subr.bf16.mxu0 %v982
    %2234 = vmatpush1.bf16.msra.mxu0 %v981
    %2235 = vmatprep.subr.bf16.mxu0 0
    %2236 = vmatpush2.bf16.msra.mxu0 0
    %2237 = vmatprep.subr.bf16.mxu0 0
    %2238 = vmatpush2.bf16.msra.mxu0 0
    %2239 = vmatprep.subr.bf16.mxu0 0
    %2240 = vmatpush2.bf16.msra.mxu0 0
    %2241 = vmatprep.subr.bf16.mxu0 0
    %2242 = vmatpush2.bf16.msra.mxu0 0
    %2243 = vmatprep.subr.bf16.mxu0 0
    %2244 = vmatpush2.bf16.msra.mxu0 0
    %2245 = vmatprep.subr.bf16.mxu0 0
    %2246 = vmatpush2.bf16.msra.mxu0 0
    %2247 = vmatprep.subr.bf16.mxu0 0
    %2248 = vmatpush2.bf16.msra.mxu0 0
    %2249 = vmatprep.subr.bf16.mxu0 0
    %2250 = vmatpush2.bf16.msra.mxu0 0
    %2251 = vmatprep.mubr.bf16.mxu0 0
    %2252 = vmatmul.mubr.bf16.gmra.mxu0 %v2177
    %v2253 = vpop.f32.mrf.mxu0
    %v2254 = vadd.f32 0.0, %v2253
    %v2255 = vpop.f32.mrf.mxu0
    %v2256 = vadd.f32 0.0, %v2255
    %v2257 = vpop.f32.mrf.mxu0
    %v2258 = vpop.f32.mrf.mxu0
    %2259 = vdwg.mxu0
    %v2264 = vrot.slane %v2213, 7
    %v2265 = vrot.slane %v2215, 7
    %v2266 = vrot.slane %v2254, 7
    %v2267 = vrot.slane %v2256, 7
    %v2272 = vadd.f32 %v836, %v2264
    %v2273 = vadd.f32 %v838, %v2265
    %v2274 = vadd.f32 %v879, %v2266
    %v2275 = vadd.f32 %v881, %v2267
    %v2276 = vxor.u32 %v2272, 2147483648
    %v2277 = vxor.u32 %v2273, 2147483648
    %v2278 = vxor.u32 %v2274, 2147483648
    %v2279 = vmul.f32 %v2276, 1.442695
    %v2280 = vpow.pop %v2279
    %v2281 = vmul.f32 %v2277, 1.442695
    %v2282 = vpow.pop %v2281
    %v2283 = vmul.f32 %v2278, 1.442695
    %v2284 = vpow.pop %v2283
    %v2285 = vadd.f32 %v2280, 1.0
    %v2286 = vadd.f32 %v2282, 1.0
    %v2287 = vadd.f32 %v2284, 1.0
    %v2288 = vrcp.pop %v2285
    %v2289 = vmul.f32 1.0, %v2288
    %v2290 = vrcp.pop %v2286
    %v2291 = vmul.f32 1.0, %v2290
    %v2292 = vrcp.pop %v2287
    %v2293 = vmul.f32 1.0, %v2292
    %v2294 = vtanh.pop %v2275
    %v2296 = vrot.slane %v2174, 7
    %v2298 = vmul.f32 %v2291, %v2296
    %v2299 = vmul.f32 %v2289, %v2294
    %v2300 = vadd.f32 %v2298, %v2299
    %v2301 = vtanh.pop %v2300
    %v2302 = vmul.f32 %v2293, %v2301
    %v2303 = vpack.c.bf16 %v2302, %v2302
    %v2305 = vshrl.u32 %v2303, 16
    %2308 = vmatprep.subr.bf16.mxu0 %v1008
    %2309 = vmatpush1.bf16.msra.mxu0 %v1007
    %2310 = vmatprep.subr.bf16.mxu0 %v1004
    %2311 = vmatpush1.bf16.msra.mxu0 %v1003
    %2312 = vmatprep.subr.bf16.mxu0 %v1000
    %2313 = vmatpush1.bf16.msra.mxu0 %v999
    %2314 = vmatprep.subr.bf16.mxu0 %v996
    %2315 = vmatpush1.bf16.msra.mxu0 %v995
    %2316 = vmatprep.subr.bf16.mxu0 %v992
    %2317 = vmatpush1.bf16.msra.mxu0 %v991
    %2318 = vmatprep.subr.bf16.mxu0 %v988
    %2319 = vmatpush1.bf16.msra.mxu0 %v987
    %2320 = vmatprep.subr.bf16.mxu0 %v984
    %2321 = vmatpush1.bf16.msra.mxu0 %v983
    %2322 = vmatprep.subr.bf16.mxu0 %v980
    %2323 = vmatpush1.bf16.msra.mxu0 %v979
    %2324 = vmatprep.subr.bf16.mxu0 0
    %2325 = vmatpush2.bf16.msra.mxu0 0
    %2326 = vmatprep.subr.bf16.mxu0 0
    %2327 = vmatpush2.bf16.msra.mxu0 0
    %2328 = vmatprep.subr.bf16.mxu0 0
    %2329 = vmatpush2.bf16.msra.mxu0 0
    %2330 = vmatprep.subr.bf16.mxu0 0
    %2331 = vmatpush2.bf16.msra.mxu0 0
    %2332 = vmatprep.subr.bf16.mxu0 0
    %2333 = vmatpush2.bf16.msra.mxu0 0
    %2334 = vmatprep.subr.bf16.mxu0 0
    %2335 = vmatpush2.bf16.msra.mxu0 0
    %2336 = vmatprep.subr.bf16.mxu0 0
    %2337 = vmatpush2.bf16.msra.mxu0 0
    %2338 = vmatprep.subr.bf16.mxu0 0
    %2339 = vmatpush2.bf16.msra.mxu0 0
    %2340 = vmatprep.mubr.bf16.mxu0 0
    %2341 = vmatmul.mubr.bf16.gmra.mxu0 %v2305
    %v2342 = vpop.f32.mrf.mxu0
    %v2343 = vadd.f32 0.0, %v2342
    %v2344 = vpop.f32.mrf.mxu0
    %v2345 = vadd.f32 0.0, %v2344
    %v2346 = vpop.f32.mrf.mxu0
    %v2347 = vpop.f32.mrf.mxu0
    %2348 = vdwg.mxu0
    %2349 = vmatprep.subr.bf16.mxu0 %v1010
    %2350 = vmatpush1.bf16.msra.mxu0 %v1009
    %2351 = vmatprep.subr.bf16.mxu0 %v1006
    %2352 = vmatpush1.bf16.msra.mxu0 %v1005
    %2353 = vmatprep.subr.bf16.mxu0 %v1002
    %2354 = vmatpush1.bf16.msra.mxu0 %v1001
    %2355 = vmatprep.subr.bf16.mxu0 %v998
    %2356 = vmatpush1.bf16.msra.mxu0 %v997
    %2357 = vmatprep.subr.bf16.mxu0 %v994
    %2358 = vmatpush1.bf16.msra.mxu0 %v993
    %2359 = vmatprep.subr.bf16.mxu0 %v990
    %2360 = vmatpush1.bf16.msra.mxu0 %v989
    %2361 = vmatprep.subr.bf16.mxu0 %v986
    %2362 = vmatpush1.bf16.msra.mxu0 %v985
    %2363 = vmatprep.subr.bf16.mxu0 %v982
    %2364 = vmatpush1.bf16.msra.mxu0 %v981
    %2365 = vmatprep.subr.bf16.mxu0 0
    %2366 = vmatpush2.bf16.msra.mxu0 0
    %2367 = vmatprep.subr.bf16.mxu0 0
    %2368 = vmatpush2.bf16.msra.mxu0 0
    %2369 = vmatprep.subr.bf16.mxu0 0
    %2370 = vmatpush2.bf16.msra.mxu0 0
    %2371 = vmatprep.subr.bf16.mxu0 0
    %2372 = vmatpush2.bf16.msra.mxu0 0
    %2373 = vmatprep.subr.bf16.mxu0 0
    %2374 = vmatpush2.bf16.msra.mxu0 0
    %2375 = vmatprep.subr.bf16.mxu0 0
    %2376 = vmatpush2.bf16.msra.mxu0 0
    %2377 = vmatprep.subr.bf16.mxu0 0
    %2378 = vmatpush2.bf16.msra.mxu0 0
    %2379 = vmatprep.subr.bf16.mxu0 0
    %2380 = vmatpush2.bf16.msra.mxu0 0
    %2381 = vmatprep.mubr.bf16.mxu0 0
    %2382 = vmatmul.mubr.bf16.gmra.mxu0 %v2305
    %v2383 = vpop.f32.mrf.mxu0
    %v2384 = vadd.f32 0.0, %v2383
    %v2385 = vpop.f32.mrf.mxu0
    %v2386 = vadd.f32 0.0, %v2385
    %v2387 = vpop.f32.mrf.mxu0
    %v2388 = vpop.f32.mrf.mxu0
    %2389 = vdwg.mxu0
    %v2394 = vrot.slane %v2343, 6
    %v2395 = vrot.slane %v2345, 6
    %v2396 = vrot.slane %v2384, 6
    %v2397 = vrot.slane %v2386, 6
    %v2402 = vadd.f32 %v836, %v2394
    %v2403 = vadd.f32 %v838, %v2395
    %v2404 = vadd.f32 %v879, %v2396
    %v2405 = vadd.f32 %v881, %v2397
    %v2406 = vxor.u32 %v2402, 2147483648
    %v2407 = vxor.u32 %v2403, 2147483648
    %v2408 = vxor.u32 %v2404, 2147483648
    %v2409 = vmul.f32 %v2406, 1.442695
    %v2410 = vpow.pop %v2409
    %v2411 = vmul.f32 %v2407, 1.442695
    %v2412 = vpow.pop %v2411
    %v2413 = vmul.f32 %v2408, 1.442695
    %v2414 = vpow.pop %v2413
    %v2415 = vadd.f32 %v2410, 1.0
    %v2416 = vadd.f32 %v2412, 1.0
    %v2417 = vadd.f32 %v2414, 1.0
    %v2418 = vrcp.pop %v2415
    %v2419 = vmul.f32 1.0, %v2418
    %v2420 = vrcp.pop %v2416
    %v2421 = vmul.f32 1.0, %v2420
    %v2422 = vrcp.pop %v2417
    %v2423 = vmul.f32 1.0, %v2422
    %v2424 = vtanh.pop %v2405
    %v2426 = vrot.slane %v2300, 7
    %v2428 = vmul.f32 %v2421, %v2426
    %v2429 = vmul.f32 %v2419, %v2424
    %v2430 = vadd.f32 %v2428, %v2429
    %v2431 = vtanh.pop %v2430
    %v2432 = vmul.f32 %v2423, %v2431
    %v2433 = vpack.c.bf16 %v2432, %v2432
    %v2435 = vrot.slane %v2433, 1
    %2437 = vmatprep.subr.bf16.mxu0 %v1008
    %2438 = vmatpush1.bf16.msra.mxu0 %v1007
    %2439 = vmatprep.subr.bf16.mxu0 %v1004
    %2440 = vmatpush1.bf16.msra.mxu0 %v1003
    %2441 = vmatprep.subr.bf16.mxu0 %v1000
    %2442 = vmatpush1.bf16.msra.mxu0 %v999
    %2443 = vmatprep.subr.bf16.mxu0 %v996
    %2444 = vmatpush1.bf16.msra.mxu0 %v995
    %2445 = vmatprep.subr.bf16.mxu0 %v992
    %2446 = vmatpush1.bf16.msra.mxu0 %v991
    %2447 = vmatprep.subr.bf16.mxu0 %v988
    %2448 = vmatpush1.bf16.msra.mxu0 %v987
    %2449 = vmatprep.subr.bf16.mxu0 %v984
    %2450 = vmatpush1.bf16.msra.mxu0 %v983
    %2451 = vmatprep.subr.bf16.mxu0 %v980
    %2452 = vmatpush1.bf16.msra.mxu0 %v979
    %2453 = vmatprep.subr.bf16.mxu0 0
    %2454 = vmatpush2.bf16.msra.mxu0 0
    %2455 = vmatprep.subr.bf16.mxu0 0
    %2456 = vmatpush2.bf16.msra.mxu0 0
    %2457 = vmatprep.subr.bf16.mxu0 0
    %2458 = vmatpush2.bf16.msra.mxu0 0
    %2459 = vmatprep.subr.bf16.mxu0 0
    %2460 = vmatpush2.bf16.msra.mxu0 0
    %2461 = vmatprep.subr.bf16.mxu0 0
    %2462 = vmatpush2.bf16.msra.mxu0 0
    %2463 = vmatprep.subr.bf16.mxu0 0
    %2464 = vmatpush2.bf16.msra.mxu0 0
    %2465 = vmatprep.subr.bf16.mxu0 0
    %2466 = vmatpush2.bf16.msra.mxu0 0
    %2467 = vmatprep.subr.bf16.mxu0 0
    %2468 = vmatpush2.bf16.msra.mxu0 0
    %2469 = vmatprep.mubr.bf16.mxu0 0
    %2470 = vmatmul.mubr.bf16.gmra.mxu0 %v2435
    %v2471 = vpop.f32.mrf.mxu0
    %v2472 = vadd.f32 0.0, %v2471
    %v2473 = vpop.f32.mrf.mxu0
    %v2474 = vadd.f32 0.0, %v2473
    %v2475 = vpop.f32.mrf.mxu0
    %v2476 = vpop.f32.mrf.mxu0
    %2477 = vdwg.mxu0
    %2478 = vmatprep.subr.bf16.mxu0 %v1010
    %2479 = vmatpush1.bf16.msra.mxu0 %v1009
    %2480 = vmatprep.subr.bf16.mxu0 %v1006
    %2481 = vmatpush1.bf16.msra.mxu0 %v1005
    %2482 = vmatprep.subr.bf16.mxu0 %v1002
    %2483 = vmatpush1.bf16.msra.mxu0 %v1001
    %2484 = vmatprep.subr.bf16.mxu0 %v998
    %2485 = vmatpush1.bf16.msra.mxu0 %v997
    %2486 = vmatprep.subr.bf16.mxu0 %v994
    %2487 = vmatpush1.bf16.msra.mxu0 %v993
    %2488 = vmatprep.subr.bf16.mxu0 %v990
    %2489 = vmatpush1.bf16.msra.mxu0 %v989
    %2490 = vmatprep.subr.bf16.mxu0 %v986
    %2491 = vmatpush1.bf16.msra.mxu0 %v985
    %2492 = vmatprep.subr.bf16.mxu0 %v982
    %2493 = vmatpush1.bf16.msra.mxu0 %v981
    %2494 = vmatprep.subr.bf16.mxu0 0
    %2495 = vmatpush2.bf16.msra.mxu0 0
    %2496 = vmatprep.subr.bf16.mxu0 0
    %2497 = vmatpush2.bf16.msra.mxu0 0
    %2498 = vmatprep.subr.bf16.mxu0 0
    %2499 = vmatpush2.bf16.msra.mxu0 0
    %2500 = vmatprep.subr.bf16.mxu0 0
    %2501 = vmatpush2.bf16.msra.mxu0 0
    %2502 = vmatprep.subr.bf16.mxu0 0
    %2503 = vmatpush2.bf16.msra.mxu0 0
    %2504 = vmatprep.subr.bf16.mxu0 0
    %2505 = vmatpush2.bf16.msra.mxu0 0
    %2506 = vmatprep.subr.bf16.mxu0 0
    %2507 = vmatpush2.bf16.msra.mxu0 0
    %2508 = vmatprep.subr.bf16.mxu0 0
    %2509 = vmatpush2.bf16.msra.mxu0 0
    %2510 = vmatprep.mubr.bf16.mxu0 0
    %2511 = vmatmul.mubr.bf16.gmra.mxu0 %v2435
    %v2512 = vpop.f32.mrf.mxu0
    %v2513 = vadd.f32 0.0, %v2512
    %v2514 = vpop.f32.mrf.mxu0
    %v2515 = vadd.f32 0.0, %v2514
    %v2516 = vpop.f32.mrf.mxu0
    %v2517 = vpop.f32.mrf.mxu0
    %2518 = vdwg.mxu0
    %v2523 = vrot.slane %v2472, 5
    %v2524 = vrot.slane %v2474, 5
    %v2525 = vrot.slane %v2513, 5
    %v2526 = vrot.slane %v2515, 5
    %v2531 = vadd.f32 %v836, %v2523
    %v2532 = vadd.f32 %v838, %v2524
    %v2533 = vadd.f32 %v879, %v2525
    %v2534 = vadd.f32 %v881, %v2526
    %v2535 = vxor.u32 %v2531, 2147483648
    %v2536 = vxor.u32 %v2532, 2147483648
    %v2537 = vxor.u32 %v2533, 2147483648
    %v2538 = vmul.f32 %v2535, 1.442695
    %v2539 = vpow.pop %v2538
    %v2540 = vmul.f32 %v2536, 1.442695
    %v2541 = vpow.pop %v2540
    %v2542 = vmul.f32 %v2537, 1.442695
    %v2543 = vpow.pop %v2542
    %v2544 = vadd.f32 %v2539, 1.0
    %v2545 = vadd.f32 %v2541, 1.0
    %v2546 = vadd.f32 %v2543, 1.0
    %v2547 = vrcp.pop %v2544
    %v2548 = vmul.f32 1.0, %v2547
    %v2549 = vrcp.pop %v2545
    %v2550 = vmul.f32 1.0, %v2549
    %v2551 = vrcp.pop %v2546
    %v2552 = vmul.f32 1.0, %v2551
    %v2553 = vtanh.pop %v2534
    %v2555 = vrot.slane %v2430, 7
    %v2557 = vmul.f32 %v2550, %v2555
    %v2558 = vmul.f32 %v2548, %v2553
    %v2559 = vadd.f32 %v2557, %v2558
    %v2560 = vtanh.pop %v2559
    %v2561 = vmul.f32 %v2552, %v2560
    %v2562 = vpack.c.bf16 %v2561, %v2561
    %v2564 = vshrl.u32 %v2562, 16
    %v2566 = vrot.slane %v2564, 1
    %2568 = vmatprep.subr.bf16.mxu0 %v1008
    %2569 = vmatpush1.bf16.msra.mxu0 %v1007
    %2570 = vmatprep.subr.bf16.mxu0 %v1004
    %2571 = vmatpush1.bf16.msra.mxu0 %v1003
    %2572 = vmatprep.subr.bf16.mxu0 %v1000
    %2573 = vmatpush1.bf16.msra.mxu0 %v999
    %2574 = vmatprep.subr.bf16.mxu0 %v996
    %2575 = vmatpush1.bf16.msra.mxu0 %v995
    %2576 = vmatprep.subr.bf16.mxu0 %v992
    %2577 = vmatpush1.bf16.msra.mxu0 %v991
    %2578 = vmatprep.subr.bf16.mxu0 %v988
    %2579 = vmatpush1.bf16.msra.mxu0 %v987
    %2580 = vmatprep.subr.bf16.mxu0 %v984
    %2581 = vmatpush1.bf16.msra.mxu0 %v983
    %2582 = vmatprep.subr.bf16.mxu0 %v980
    %2583 = vmatpush1.bf16.msra.mxu0 %v979
    %2584 = vmatprep.subr.bf16.mxu0 0
    %2585 = vmatpush2.bf16.msra.mxu0 0
    %2586 = vmatprep.subr.bf16.mxu0 0
    %2587 = vmatpush2.bf16.msra.mxu0 0
    %2588 = vmatprep.subr.bf16.mxu0 0
    %2589 = vmatpush2.bf16.msra.mxu0 0
    %2590 = vmatprep.subr.bf16.mxu0 0
    %2591 = vmatpush2.bf16.msra.mxu0 0
    %2592 = vmatprep.subr.bf16.mxu0 0
    %2593 = vmatpush2.bf16.msra.mxu0 0
    %2594 = vmatprep.subr.bf16.mxu0 0
    %2595 = vmatpush2.bf16.msra.mxu0 0
    %2596 = vmatprep.subr.bf16.mxu0 0
    %2597 = vmatpush2.bf16.msra.mxu0 0
    %2598 = vmatprep.subr.bf16.mxu0 0
    %2599 = vmatpush2.bf16.msra.mxu0 0
    %2600 = vmatprep.mubr.bf16.mxu0 0
    %2601 = vmatmul.mubr.bf16.gmra.mxu0 %v2566
    %v2602 = vpop.f32.mrf.mxu0
    %v2603 = vadd.f32 0.0, %v2602
    %v2604 = vpop.f32.mrf.mxu0
    %v2605 = vadd.f32 0.0, %v2604
    %v2606 = vpop.f32.mrf.mxu0
    %v2607 = vpop.f32.mrf.mxu0
    %2608 = vdwg.mxu0
    %2609 = vmatprep.subr.bf16.mxu0 %v1010
    %2610 = vmatpush1.bf16.msra.mxu0 %v1009
    %2611 = vmatprep.subr.bf16.mxu0 %v1006
    %2612 = vmatpush1.bf16.msra.mxu0 %v1005
    %2613 = vmatprep.subr.bf16.mxu0 %v1002
    %2614 = vmatpush1.bf16.msra.mxu0 %v1001
    %2615 = vmatprep.subr.bf16.mxu0 %v998
    %2616 = vmatpush1.bf16.msra.mxu0 %v997
    %2617 = vmatprep.subr.bf16.mxu0 %v994
    %2618 = vmatpush1.bf16.msra.mxu0 %v993
    %2619 = vmatprep.subr.bf16.mxu0 %v990
    %2620 = vmatpush1.bf16.msra.mxu0 %v989
    %2621 = vmatprep.subr.bf16.mxu0 %v986
    %2622 = vmatpush1.bf16.msra.mxu0 %v985
    %2623 = vmatprep.subr.bf16.mxu0 %v982
    %2624 = vmatpush1.bf16.msra.mxu0 %v981
    %2625 = vmatprep.subr.bf16.mxu0 0
    %2626 = vmatpush2.bf16.msra.mxu0 0
    %2627 = vmatprep.subr.bf16.mxu0 0
    %2628 = vmatpush2.bf16.msra.mxu0 0
    %2629 = vmatprep.subr.bf16.mxu0 0
    %2630 = vmatpush2.bf16.msra.mxu0 0
    %2631 = vmatprep.subr.bf16.mxu0 0
    %2632 = vmatpush2.bf16.msra.mxu0 0
    %2633 = vmatprep.subr.bf16.mxu0 0
    %2634 = vmatpush2.bf16.msra.mxu0 0
    %2635 = vmatprep.subr.bf16.mxu0 0
    %2636 = vmatpush2.bf16.msra.mxu0 0
    %2637 = vmatprep.subr.bf16.mxu0 0
    %2638 = vmatpush2.bf16.msra.mxu0 0
    %2639 = vmatprep.subr.bf16.mxu0 0
    %2640 = vmatpush2.bf16.msra.mxu0 0
    %2641 = vmatprep.mubr.bf16.mxu0 0
    %2642 = vmatmul.mubr.bf16.gmra.mxu0 %v2566
    %v2643 = vpop.f32.mrf.mxu0
    %v2644 = vadd.f32 0.0, %v2643
    %v2645 = vpop.f32.mrf.mxu0
    %v2646 = vadd.f32 0.0, %v2645
    %v2647 = vpop.f32.mrf.mxu0
    %v2648 = vpop.f32.mrf.mxu0
    %2649 = vdwg.mxu0
    %v2654 = vrot.slane %v2603, 4
    %v2655 = vrot.slane %v2605, 4
    %v2656 = vrot.slane %v2644, 4
    %v2657 = vrot.slane %v2646, 4
    %v2662 = vadd.f32 %v836, %v2654
    %v2663 = vadd.f32 %v838, %v2655
    %v2664 = vadd.f32 %v879, %v2656
    %v2665 = vadd.f32 %v881, %v2657
    %v2666 = vxor.u32 %v2662, 2147483648
    %v2667 = vxor.u32 %v2663, 2147483648
    %v2668 = vxor.u32 %v2664, 2147483648
    %v2669 = vmul.f32 %v2666, 1.442695
    %v2670 = vpow.pop %v2669
    %v2671 = vmul.f32 %v2667, 1.442695
    %v2672 = vpow.pop %v2671
    %v2673 = vmul.f32 %v2668, 1.442695
    %v2674 = vpow.pop %v2673
    %v2675 = vadd.f32 %v2670, 1.0
    %v2676 = vadd.f32 %v2672, 1.0
    %v2677 = vadd.f32 %v2674, 1.0
    %v2678 = vrcp.pop %v2675
    %v2679 = vmul.f32 1.0, %v2678
    %v2680 = vrcp.pop %v2676
    %v2681 = vmul.f32 1.0, %v2680
    %v2682 = vrcp.pop %v2677
    %v2683 = vmul.f32 1.0, %v2682
    %v2684 = vtanh.pop %v2665
    %v2686 = vrot.slane %v2559, 7
    %v2688 = vmul.f32 %v2681, %v2686
    %v2689 = vmul.f32 %v2679, %v2684
    %v2690 = vadd.f32 %v2688, %v2689
    %v2691 = vtanh.pop %v2690
    %v2692 = vmul.f32 %v2683, %v2691
    %v2693 = vpack.c.bf16 %v2692, %v2692
    %v2695 = vrot.slane %v2693, 2
    %2697 = vmatprep.subr.bf16.mxu0 %v1008
    %2698 = vmatpush1.bf16.msra.mxu0 %v1007
    %2699 = vmatprep.subr.bf16.mxu0 %v1004
    %2700 = vmatpush1.bf16.msra.mxu0 %v1003
    %2701 = vmatprep.subr.bf16.mxu0 %v1000
    %2702 = vmatpush1.bf16.msra.mxu0 %v999
    %2703 = vmatprep.subr.bf16.mxu0 %v996
    %2704 = vmatpush1.bf16.msra.mxu0 %v995
    %2705 = vmatprep.subr.bf16.mxu0 %v992
    %2706 = vmatpush1.bf16.msra.mxu0 %v991
    %2707 = vmatprep.subr.bf16.mxu0 %v988
    %2708 = vmatpush1.bf16.msra.mxu0 %v987
    %2709 = vmatprep.subr.bf16.mxu0 %v984
    %2710 = vmatpush1.bf16.msra.mxu0 %v983
    %2711 = vmatprep.subr.bf16.mxu0 %v980
    %2712 = vmatpush1.bf16.msra.mxu0 %v979
    %2713 = vmatprep.subr.bf16.mxu0 0
    %2714 = vmatpush2.bf16.msra.mxu0 0
    %2715 = vmatprep.subr.bf16.mxu0 0
    %2716 = vmatpush2.bf16.msra.mxu0 0
    %2717 = vmatprep.subr.bf16.mxu0 0
    %2718 = vmatpush2.bf16.msra.mxu0 0
    %2719 = vmatprep.subr.bf16.mxu0 0
    %2720 = vmatpush2.bf16.msra.mxu0 0
    %2721 = vmatprep.subr.bf16.mxu0 0
    %2722 = vmatpush2.bf16.msra.mxu0 0
    %2723 = vmatprep.subr.bf16.mxu0 0
    %2724 = vmatpush2.bf16.msra.mxu0 0
    %2725 = vmatprep.subr.bf16.mxu0 0
    %2726 = vmatpush2.bf16.msra.mxu0 0
    %2727 = vmatprep.subr.bf16.mxu0 0
    %2728 = vmatpush2.bf16.msra.mxu0 0
    %2729 = vmatprep.mubr.bf16.mxu0 0
    %2730 = vmatmul.mubr.bf16.gmra.mxu0 %v2695
    %v2731 = vpop.f32.mrf.mxu0
    %v2732 = vadd.f32 0.0, %v2731
    %v2733 = vpop.f32.mrf.mxu0
    %v2734 = vadd.f32 0.0, %v2733
    %v2735 = vpop.f32.mrf.mxu0
    %v2736 = vpop.f32.mrf.mxu0
    %2737 = vdwg.mxu0
    %2738 = vmatprep.subr.bf16.mxu0 %v1010
    %2739 = vmatpush1.bf16.msra.mxu0 %v1009
    %2740 = vmatprep.subr.bf16.mxu0 %v1006
    %2741 = vmatpush1.bf16.msra.mxu0 %v1005
    %2742 = vmatprep.subr.bf16.mxu0 %v1002
    %2743 = vmatpush1.bf16.msra.mxu0 %v1001
    %2744 = vmatprep.subr.bf16.mxu0 %v998
    %2745 = vmatpush1.bf16.msra.mxu0 %v997
    %2746 = vmatprep.subr.bf16.mxu0 %v994
    %2747 = vmatpush1.bf16.msra.mxu0 %v993
    %2748 = vmatprep.subr.bf16.mxu0 %v990
    %2749 = vmatpush1.bf16.msra.mxu0 %v989
    %2750 = vmatprep.subr.bf16.mxu0 %v986
    %2751 = vmatpush1.bf16.msra.mxu0 %v985
    %2752 = vmatprep.subr.bf16.mxu0 %v982
    %2753 = vmatpush1.bf16.msra.mxu0 %v981
    %2754 = vmatprep.subr.bf16.mxu0 0
    %2755 = vmatpush2.bf16.msra.mxu0 0
    %2756 = vmatprep.subr.bf16.mxu0 0
    %2757 = vmatpush2.bf16.msra.mxu0 0
    %2758 = vmatprep.subr.bf16.mxu0 0
    %2759 = vmatpush2.bf16.msra.mxu0 0
    %2760 = vmatprep.subr.bf16.mxu0 0
    %2761 = vmatpush2.bf16.msra.mxu0 0
    %2762 = vmatprep.subr.bf16.mxu0 0
    %2763 = vmatpush2.bf16.msra.mxu0 0
    %2764 = vmatprep.subr.bf16.mxu0 0
    %2765 = vmatpush2.bf16.msra.mxu0 0
    %2766 = vmatprep.subr.bf16.mxu0 0
    %2767 = vmatpush2.bf16.msra.mxu0 0
    %2768 = vmatprep.subr.bf16.mxu0 0
    %2769 = vmatpush2.bf16.msra.mxu0 0
    %2770 = vmatprep.mubr.bf16.mxu0 0
    %2771 = vmatmul.mubr.bf16.gmra.mxu0 %v2695
    %v2772 = vpop.f32.mrf.mxu0
    %v2773 = vadd.f32 0.0, %v2772
    %v2774 = vpop.f32.mrf.mxu0
    %v2775 = vadd.f32 0.0, %v2774
    %v2776 = vpop.f32.mrf.mxu0
    %v2777 = vpop.f32.mrf.mxu0
    %2778 = vdwg.mxu0
    %v2783 = vrot.slane %v2732, 3
    %v2784 = vrot.slane %v2734, 3
    %v2785 = vrot.slane %v2773, 3
    %v2786 = vrot.slane %v2775, 3
    %v2791 = vadd.f32 %v836, %v2783
    %v2792 = vadd.f32 %v838, %v2784
    %v2793 = vadd.f32 %v879, %v2785
    %v2794 = vadd.f32 %v881, %v2786
    %v2795 = vxor.u32 %v2791, 2147483648
    %v2796 = vxor.u32 %v2792, 2147483648
    %v2797 = vxor.u32 %v2793, 2147483648
    %v2798 = vmul.f32 %v2795, 1.442695
    %v2799 = vpow.pop %v2798
    %v2800 = vmul.f32 %v2796, 1.442695
    %v2801 = vpow.pop %v2800
    %v2802 = vmul.f32 %v2797, 1.442695
    %v2803 = vpow.pop %v2802
    %v2804 = vadd.f32 %v2799, 1.0
    %v2805 = vadd.f32 %v2801, 1.0
    %v2806 = vadd.f32 %v2803, 1.0
    %v2807 = vrcp.pop %v2804
    %v2808 = vmul.f32 1.0, %v2807
    %v2809 = vrcp.pop %v2805
    %v2810 = vmul.f32 1.0, %v2809
    %v2811 = vrcp.pop %v2806
    %v2812 = vmul.f32 1.0, %v2811
    %v2813 = vtanh.pop %v2794
    %v2815 = vrot.slane %v2690, 7
    %v2817 = vmul.f32 %v2810, %v2815
    %v2818 = vmul.f32 %v2808, %v2813
    %v2819 = vadd.f32 %v2817, %v2818
    %v2820 = vtanh.pop %v2819
    %v2821 = vmul.f32 %v2812, %v2820
    %v2822 = vpack.c.bf16 %v2821, %v2821
    %v2824 = vshrl.u32 %v2822, 16
    %v2826 = vrot.slane %v2824, 2
    %2828 = vmatprep.subr.bf16.mxu0 %v1008
    %2829 = vmatpush1.bf16.msra.mxu0 %v1007
    %2830 = vmatprep.subr.bf16.mxu0 %v1004
    %2831 = vmatpush1.bf16.msra.mxu0 %v1003
    %2832 = vmatprep.subr.bf16.mxu0 %v1000
    %2833 = vmatpush1.bf16.msra.mxu0 %v999
    %2834 = vmatprep.subr.bf16.mxu0 %v996
    %2835 = vmatpush1.bf16.msra.mxu0 %v995
    %2836 = vmatprep.subr.bf16.mxu0 %v992
    %2837 = vmatpush1.bf16.msra.mxu0 %v991
    %2838 = vmatprep.subr.bf16.mxu0 %v988
    %2839 = vmatpush1.bf16.msra.mxu0 %v987
    %2840 = vmatprep.subr.bf16.mxu0 %v984
    %2841 = vmatpush1.bf16.msra.mxu0 %v983
    %2842 = vmatprep.subr.bf16.mxu0 %v980
    %2843 = vmatpush1.bf16.msra.mxu0 %v979
    %2844 = vmatprep.subr.bf16.mxu0 0
    %2845 = vmatpush2.bf16.msra.mxu0 0
    %2846 = vmatprep.subr.bf16.mxu0 0
    %2847 = vmatpush2.bf16.msra.mxu0 0
    %2848 = vmatprep.subr.bf16.mxu0 0
    %2849 = vmatpush2.bf16.msra.mxu0 0
    %2850 = vmatprep.subr.bf16.mxu0 0
    %2851 = vmatpush2.bf16.msra.mxu0 0
    %2852 = vmatprep.subr.bf16.mxu0 0
    %2853 = vmatpush2.bf16.msra.mxu0 0
    %2854 = vmatprep.subr.bf16.mxu0 0
    %2855 = vmatpush2.bf16.msra.mxu0 0
    %2856 = vmatprep.subr.bf16.mxu0 0
    %2857 = vmatpush2.bf16.msra.mxu0 0
    %2858 = vmatprep.subr.bf16.mxu0 0
    %2859 = vmatpush2.bf16.msra.mxu0 0
    %2860 = vmatprep.mubr.bf16.mxu0 0
    %2861 = vmatmul.mubr.bf16.gmra.mxu0 %v2826
    %v2862 = vpop.f32.mrf.mxu0
    %v2863 = vadd.f32 0.0, %v2862
    %v2864 = vpop.f32.mrf.mxu0
    %v2865 = vadd.f32 0.0, %v2864
    %v2866 = vpop.f32.mrf.mxu0
    %v2867 = vpop.f32.mrf.mxu0
    %2868 = vdwg.mxu0
    %2869 = vmatprep.subr.bf16.mxu0 %v1010
    %2870 = vmatpush1.bf16.msra.mxu0 %v1009
    %2871 = vmatprep.subr.bf16.mxu0 %v1006
    %2872 = vmatpush1.bf16.msra.mxu0 %v1005
    %2873 = vmatprep.subr.bf16.mxu0 %v1002
    %2874 = vmatpush1.bf16.msra.mxu0 %v1001
    %2875 = vmatprep.subr.bf16.mxu0 %v998
    %2876 = vmatpush1.bf16.msra.mxu0 %v997
    %2877 = vmatprep.subr.bf16.mxu0 %v994
    %2878 = vmatpush1.bf16.msra.mxu0 %v993
    %2879 = vmatprep.subr.bf16.mxu0 %v990
    %2880 = vmatpush1.bf16.msra.mxu0 %v989
    %2881 = vmatprep.subr.bf16.mxu0 %v986
    %2882 = vmatpush1.bf16.msra.mxu0 %v985
    %2883 = vmatprep.subr.bf16.mxu0 %v982
    %2884 = vmatpush1.bf16.msra.mxu0 %v981
    %2885 = vmatprep.subr.bf16.mxu0 0
    %2886 = vmatpush2.bf16.msra.mxu0 0
    %2887 = vmatprep.subr.bf16.mxu0 0
    %2888 = vmatpush2.bf16.msra.mxu0 0
    %2889 = vmatprep.subr.bf16.mxu0 0
    %2890 = vmatpush2.bf16.msra.mxu0 0
    %2891 = vmatprep.subr.bf16.mxu0 0
    %2892 = vmatpush2.bf16.msra.mxu0 0
    %2893 = vmatprep.subr.bf16.mxu0 0
    %2894 = vmatpush2.bf16.msra.mxu0 0
    %2895 = vmatprep.subr.bf16.mxu0 0
    %2896 = vmatpush2.bf16.msra.mxu0 0
    %2897 = vmatprep.subr.bf16.mxu0 0
    %2898 = vmatpush2.bf16.msra.mxu0 0
    %2899 = vmatprep.subr.bf16.mxu0 0
    %2900 = vmatpush2.bf16.msra.mxu0 0
    %2901 = vmatprep.mubr.bf16.mxu0 0
    %2902 = vmatmul.mubr.bf16.gmra.mxu0 %v2826
    %v2903 = vpop.f32.mrf.mxu0
    %v2904 = vadd.f32 0.0, %v2903
    %v2905 = vpop.f32.mrf.mxu0
    %v2906 = vadd.f32 0.0, %v2905
    %v2907 = vpop.f32.mrf.mxu0
    %v2908 = vpop.f32.mrf.mxu0
    %2909 = vdwg.mxu0
    %v2914 = vrot.slane %v2863, 2
    %v2915 = vrot.slane %v2865, 2
    %v2916 = vrot.slane %v2904, 2
    %v2917 = vrot.slane %v2906, 2
    %v2922 = vadd.f32 %v836, %v2914
    %v2923 = vadd.f32 %v838, %v2915
    %v2924 = vadd.f32 %v879, %v2916
    %v2925 = vadd.f32 %v881, %v2917
    %v2926 = vxor.u32 %v2922, 2147483648
    %v2927 = vxor.u32 %v2923, 2147483648
    %v2928 = vxor.u32 %v2924, 2147483648
    %v2929 = vmul.f32 %v2926, 1.442695
    %v2930 = vpow.pop %v2929
    %v2931 = vmul.f32 %v2927, 1.442695
    %v2932 = vpow.pop %v2931
    %v2933 = vmul.f32 %v2928, 1.442695
    %v2934 = vpow.pop %v2933
    %v2935 = vadd.f32 %v2930, 1.0
    %v2936 = vadd.f32 %v2932, 1.0
    %v2937 = vadd.f32 %v2934, 1.0
    %v2938 = vrcp.pop %v2935
    %v2939 = vmul.f32 1.0, %v2938
    %v2940 = vrcp.pop %v2936
    %v2941 = vmul.f32 1.0, %v2940
    %v2942 = vrcp.pop %v2937
    %v2943 = vmul.f32 1.0, %v2942
    %v2944 = vtanh.pop %v2925
    %v2946 = vrot.slane %v2819, 7
    %v2948 = vmul.f32 %v2941, %v2946
    %v2949 = vmul.f32 %v2939, %v2944
    %v2950 = vadd.f32 %v2948, %v2949
    %v2951 = vtanh.pop %v2950
    %v2952 = vmul.f32 %v2943, %v2951
    %v2953 = vpack.c.bf16 %v2952, %v2952
    %v2955 = vrot.slane %v2953, 3
    %2957 = vmatprep.subr.bf16.mxu0 %v1008
    %2958 = vmatpush1.bf16.msra.mxu0 %v1007
    %2959 = vmatprep.subr.bf16.mxu0 %v1004
    %2960 = vmatpush1.bf16.msra.mxu0 %v1003
    %2961 = vmatprep.subr.bf16.mxu0 %v1000
    %2962 = vmatpush1.bf16.msra.mxu0 %v999
    %2963 = vmatprep.subr.bf16.mxu0 %v996
    %2964 = vmatpush1.bf16.msra.mxu0 %v995
    %2965 = vmatprep.subr.bf16.mxu0 %v992
    %2966 = vmatpush1.bf16.msra.mxu0 %v991
    %2967 = vmatprep.subr.bf16.mxu0 %v988
    %2968 = vmatpush1.bf16.msra.mxu0 %v987
    %2969 = vmatprep.subr.bf16.mxu0 %v984
    %2970 = vmatpush1.bf16.msra.mxu0 %v983
    %2971 = vmatprep.subr.bf16.mxu0 %v980
    %2972 = vmatpush1.bf16.msra.mxu0 %v979
    %2973 = vmatprep.subr.bf16.mxu0 0
    %2974 = vmatpush2.bf16.msra.mxu0 0
    %2975 = vmatprep.subr.bf16.mxu0 0
    %2976 = vmatpush2.bf16.msra.mxu0 0
    %2977 = vmatprep.subr.bf16.mxu0 0
    %2978 = vmatpush2.bf16.msra.mxu0 0
    %2979 = vmatprep.subr.bf16.mxu0 0
    %2980 = vmatpush2.bf16.msra.mxu0 0
    %2981 = vmatprep.subr.bf16.mxu0 0
    %2982 = vmatpush2.bf16.msra.mxu0 0
    %2983 = vmatprep.subr.bf16.mxu0 0
    %2984 = vmatpush2.bf16.msra.mxu0 0
    %2985 = vmatprep.subr.bf16.mxu0 0
    %2986 = vmatpush2.bf16.msra.mxu0 0
    %2987 = vmatprep.subr.bf16.mxu0 0
    %2988 = vmatpush2.bf16.msra.mxu0 0
    %2989 = vmatprep.mubr.bf16.mxu0 0
    %2990 = vmatmul.mubr.bf16.gmra.mxu0 %v2955
    %v2991 = vpop.f32.mrf.mxu0
    %v2992 = vadd.f32 0.0, %v2991
    %v2993 = vpop.f32.mrf.mxu0
    %v2994 = vadd.f32 0.0, %v2993
    %v2995 = vpop.f32.mrf.mxu0
    %v2996 = vpop.f32.mrf.mxu0
    %2997 = vdwg.mxu0
    %2998 = vmatprep.subr.bf16.mxu0 %v1010
    %2999 = vmatpush1.bf16.msra.mxu0 %v1009
    %3000 = vmatprep.subr.bf16.mxu0 %v1006
    %3001 = vmatpush1.bf16.msra.mxu0 %v1005
    %3002 = vmatprep.subr.bf16.mxu0 %v1002
    %3003 = vmatpush1.bf16.msra.mxu0 %v1001
    %3004 = vmatprep.subr.bf16.mxu0 %v998
    %3005 = vmatpush1.bf16.msra.mxu0 %v997
    %3006 = vmatprep.subr.bf16.mxu0 %v994
    %3007 = vmatpush1.bf16.msra.mxu0 %v993
    %3008 = vmatprep.subr.bf16.mxu0 %v990
    %3009 = vmatpush1.bf16.msra.mxu0 %v989
    %3010 = vmatprep.subr.bf16.mxu0 %v986
    %3011 = vmatpush1.bf16.msra.mxu0 %v985
    %3012 = vmatprep.subr.bf16.mxu0 %v982
    %3013 = vmatpush1.bf16.msra.mxu0 %v981
    %3014 = vmatprep.subr.bf16.mxu0 0
    %3015 = vmatpush2.bf16.msra.mxu0 0
    %3016 = vmatprep.subr.bf16.mxu0 0
    %3017 = vmatpush2.bf16.msra.mxu0 0
    %3018 = vmatprep.subr.bf16.mxu0 0
    %3019 = vmatpush2.bf16.msra.mxu0 0
    %3020 = vmatprep.subr.bf16.mxu0 0
    %3021 = vmatpush2.bf16.msra.mxu0 0
    %3022 = vmatprep.subr.bf16.mxu0 0
    %3023 = vmatpush2.bf16.msra.mxu0 0
    %3024 = vmatprep.subr.bf16.mxu0 0
    %3025 = vmatpush2.bf16.msra.mxu0 0
    %3026 = vmatprep.subr.bf16.mxu0 0
    %3027 = vmatpush2.bf16.msra.mxu0 0
    %3028 = vmatprep.subr.bf16.mxu0 0
    %3029 = vmatpush2.bf16.msra.mxu0 0
    %3030 = vmatprep.mubr.bf16.mxu0 0
    %3031 = vmatmul.mubr.bf16.gmra.mxu0 %v2955
    %v3032 = vpop.f32.mrf.mxu0
    %v3033 = vadd.f32 0.0, %v3032
    %v3034 = vpop.f32.mrf.mxu0
    %v3035 = vadd.f32 0.0, %v3034
    %v3036 = vpop.f32.mrf.mxu0
    %v3037 = vpop.f32.mrf.mxu0
    %3038 = vdwg.mxu0
    %v3043 = vrot.slane %v2992, 1
    %v3044 = vrot.slane %v2994, 1
    %v3045 = vrot.slane %v3033, 1
    %v3046 = vrot.slane %v3035, 1
    %v3051 = vadd.f32 %v836, %v3043
    %v3052 = vadd.f32 %v838, %v3044
    %v3053 = vadd.f32 %v879, %v3045
    %v3054 = vadd.f32 %v881, %v3046
    %v3055 = vxor.u32 %v3051, 2147483648
    %v3056 = vxor.u32 %v3052, 2147483648
    %v3057 = vxor.u32 %v3053, 2147483648
    %v3058 = vmul.f32 %v3055, 1.442695
    %v3059 = vpow.pop %v3058
    %v3060 = vmul.f32 %v3056, 1.442695
    %v3061 = vpow.pop %v3060
    %v3062 = vmul.f32 %v3057, 1.442695
    %v3063 = vpow.pop %v3062
    %v3064 = vadd.f32 %v3059, 1.0
    %v3065 = vadd.f32 %v3061, 1.0
    %v3066 = vadd.f32 %v3063, 1.0
    %v3067 = vrcp.pop %v3064
    %v3068 = vmul.f32 1.0, %v3067
    %v3069 = vrcp.pop %v3065
    %v3070 = vmul.f32 1.0, %v3069
    %v3071 = vrcp.pop %v3066
    %v3072 = vmul.f32 1.0, %v3071
    %v3073 = vtanh.pop %v3054
    %v3075 = vrot.slane %v2950, 7
    %v3077 = vmul.f32 %v3070, %v3075
    %v3078 = vmul.f32 %v3068, %v3073
    %v3079 = vadd.f32 %v3077, %v3078
    %v3080 = vtanh.pop %v3079
    %v3081 = vmul.f32 %v3072, %v3080
    %vm3082 = vcmask 1040384
    %v3083 = vsel %vm3082, %v1152, %v1278
    %vm3084 = vcmask 1041408
    %v3085 = vsel %vm3084, %v3083, %v1408
    %vm3086 = vcmask 1042432
    %v3087 = vsel %vm3086, %v3085, %v1537
    %vm3088 = vcmask 1043456
    %v3089 = vsel %vm3088, %v3087, %v1668
    %vm3090 = vcmask 1044480
    %v3091 = vsel %vm3090, %v3089, %v1797
    %vm3092 = vcmask 1045504
    %v3093 = vsel %vm3092, %v3091, %v1928
    %vm3094 = vcmask 1046528
    %v3095 = vsel %vm3094, %v3093, %v2057
    %v3096 = vsel %vm3082, %v2176, %v2302
    %v3097 = vsel %vm3084, %v3096, %v2432
    %v3098 = vsel %vm3086, %v3097, %v2561
    %v3099 = vsel %vm3088, %v3098, %v2692
    %v3100 = vsel %vm3090, %v3099, %v2821
    %v3101 = vsel %vm3092, %v3100, %v2952
    %v3102 = vsel %vm3094, %v3101, %v3081
    %v3103 = vpack.c.bf16 %v3102, %v3095
    %v3120 = vunpack.c.l.b16 %v150
    %v3121 = vunpack.c.l.b16 %v151
    %v3122 = vunpack.c.l.b16 %v152
    %v3123 = vunpack.c.l.b16 %v153
    %v3124 = vunpack.c.l.b16 %v154
    %v3125 = vunpack.c.l.b16 %v155
    %v3126 = vunpack.c.l.b16 %v156
    %v3127 = vunpack.c.l.b16 %v157
    %v3128 = vunpack.c.l.b16 %v158
    %v3129 = vunpack.c.l.b16 %v159
    %v3130 = vunpack.c.l.b16 %v160
    %v3131 = vunpack.c.l.b16 %v161
    %v3132 = vunpack.c.l.b16 %v162
    %v3133 = vunpack.c.l.b16 %v163
    %v3134 = vunpack.c.l.b16 %v164
    %v3135 = vunpack.c.l.b16 %v165
    %v3136 = vpack.c.b16 %v3121, %v3120
    %v3137 = vpack.c.b16 %v3123, %v3122
    %v3138 = vpack.c.b16 %v3125, %v3124
    %v3139 = vpack.c.b16 %v3127, %v3126
    %v3140 = vpack.c.b16 %v3129, %v3128
    %v3141 = vpack.c.b16 %v3131, %v3130
    %v3142 = vpack.c.b16 %v3133, %v3132
    %v3143 = vpack.c.b16 %v3135, %v3134
    %3152 = vmatprep.subr.bf16.mxu0 0
    %3153 = vmatpush1.bf16.msra.mxu0 %v3143
    %3154 = vmatprep.subr.bf16.mxu0 0
    %3155 = vmatpush1.bf16.msra.mxu0 %v3142
    %3156 = vmatprep.subr.bf16.mxu0 0
    %3157 = vmatpush1.bf16.msra.mxu0 %v3141
    %3158 = vmatprep.subr.bf16.mxu0 0
    %3159 = vmatpush1.bf16.msra.mxu0 %v3140
    %3160 = vmatprep.subr.bf16.mxu0 0
    %3161 = vmatpush1.bf16.msra.mxu0 %v3139
    %3162 = vmatprep.subr.bf16.mxu0 0
    %3163 = vmatpush1.bf16.msra.mxu0 %v3138
    %3164 = vmatprep.subr.bf16.mxu0 0
    %3165 = vmatpush1.bf16.msra.mxu0 %v3137
    %3166 = vmatprep.subr.bf16.mxu0 0
    %3167 = vmatpush1.bf16.msra.mxu0 %v3136
    %3168 = vmatprep.subr.bf16.mxu0 0
    %3169 = vmatpush2.bf16.msra.mxu0 0
    %3170 = vmatprep.subr.bf16.mxu0 0
    %3171 = vmatpush2.bf16.msra.mxu0 0
    %3172 = vmatprep.subr.bf16.mxu0 0
    %3173 = vmatpush2.bf16.msra.mxu0 0
    %3174 = vmatprep.subr.bf16.mxu0 0
    %3175 = vmatpush2.bf16.msra.mxu0 0
    %3176 = vmatprep.subr.bf16.mxu0 0
    %3177 = vmatpush2.bf16.msra.mxu0 0
    %3178 = vmatprep.subr.bf16.mxu0 0
    %3179 = vmatpush2.bf16.msra.mxu0 0
    %3180 = vmatprep.subr.bf16.mxu0 0
    %3181 = vmatpush2.bf16.msra.mxu0 0
    %3182 = vmatprep.subr.bf16.mxu0 0
    %3183 = vmatpush2.bf16.msra.mxu0 0
    %3184 = vmatprep.mubr.bf16.mxu0 0
    %3185 = vmatmul.mubr.bf16.gmra.mxu0 %v3103
    %v3186 = vpop.f32.mrf.mxu0
    %v3187 = vadd.f32 %v212, %v3186
    %v3188 = vpop.f32.mrf.mxu0
    %v3189 = vpop.f32.mrf.mxu0
    %v3190 = vadd.f32 %v212, %v3189
    %v3191 = vpop.f32.mrf.mxu0
    %3192 = vdwg.mxu0
    %3193 = vst [vmem:[#allocation10 + $0x8] sm:$0xff] %v3187
    %3194 = vst [vmem:[#allocation10 + $0x18] sm:$0xff] %v3190
    // Predicated region
    $region34: #{tpu_custom_call.1} parent=1 // pred_check
      _
    $region35: #{tpu_custom_call.1} parent=1 // pred_check_branch
      %3196 = sbr.rel (0) target = $region37
    $region36: #{tpu_custom_call.1} parent=1 // pred_region
      %s3198 = ssub.s32 512, 512
      %3199 = vsyncadd [#allocation4], %s3198
      %s3200 = sshll.u32 [#allocation10], 4
      %s3201 = int_to_ptr.vmem [resolvable:$true] %s3200
      %3206 = dma.vmem_to_hbm [thread:$0]  %s3201, 512, %s4, [#allocation4], 256, 256, 16
    $region37: #{tpu_custom_call.1} parent=1 // pred_fallthru
      _
    // Predicated region
    $region38: #{tpu_custom_call.1} parent=1 // pred_check
      _
    $region39: #{tpu_custom_call.1} parent=1 // pred_check_branch
      %3208 = sbr.rel (0) target = $region41
    $region40: #{tpu_custom_call.1} parent=1 // pred_region
      %3209 = dma.done [#allocation4], 512
    $region41: #{tpu_custom_call.1} parent=1 // pred_fallthru
      _
    %3210 = vsyncpa [#allocation3], 1
    %3211 = vsyncpa [#allocation6], 1
    %3212 = vsyncpa [#allocation9], 1
    %3213 = vsyncpa [#allocation4], 1

</llo_original>
